<compile_context>
chip_gen: v7x
topology: tpu7x:2x2x1
jax: 0.10.0
libtpu: 0.0.40
codegen_flags: <defaults>
</compile_context>

<pallas_src>
import functools

import jax
import jax.numpy as jnp
from jax.experimental import pallas as pl
from jax.experimental.pallas import tpu as pltpu

HIDDEN = 256          # hidden width of the MLP
BLOCK_ELEMS = 2048    # batch elements (lanes) processed per grid step (mult. of 128)


def kernelnet_kernel(t_ref, w1_ref, b1_ref, w2_ref, b2_ref, o_ref):
    # t_ref : (1, B)       lane-dense slab of scalar inputs
    # w1_ref: (HIDDEN, B)  layer-1 weights, pre-broadcast across lanes
    # b1_ref: (HIDDEN, B)  layer-1 bias,    pre-broadcast across lanes
    # w2_ref: (HIDDEN, B)  layer-2 weights, pre-broadcast across lanes
    # b2_ref: (1, 1)       layer-2 bias scalar (SMEM)
    # o_ref : (1, B)       lane-dense output slab
    t_row = t_ref[...]                                           # (1, B)

    # Layer 1: outer product + bias + ReLU on the VPU.
    # (A K=1 MXU matmul would use 1/256th of the contraction depth - wasteful.)
    h = jnp.maximum(t_row * w1_ref[...] + b1_ref[...], 0.0)      # (HIDDEN, B)

    # Layer 2: elementwise scale + reduction over the hidden (sublane) axis.
    y = jnp.sum(h * w2_ref[...], axis=0, keepdims=True)          # (1, B)

    o_ref[...] = y + b2_ref[0, 0]


@functools.partial(jax.jit, static_argnames=("block_elems",))
def kernelnet_forward(t, w1, b1, w2, b2, *, block_elems=BLOCK_ELEMS):
    """KernelNet forward: t (..., 1) -> (..., 1)."""
    orig_shape = t.shape
    t_flat = t.reshape(-1).astype(jnp.float32)                   # (N,)
    n = t_flat.shape[0]

    block = block_elems
    n_pad = pl.cdiv(n, block) * block
    t_flat = jnp.pad(t_flat, (0, n_pad - n))
    t_row = t_flat.reshape(1, n_pad)                             # lane-dense (1, N_pad)

    # Pre-broadcast tiny params across the lane axis (constant across grid steps,
    # DMA'd into VMEM once; ~2 MiB each at block=2048).
    w1b = jnp.broadcast_to(w1.reshape(HIDDEN, 1).astype(jnp.float32), (HIDDEN, block))
    b1b = jnp.broadcast_to(b1.reshape(HIDDEN, 1).astype(jnp.float32), (HIDDEN, block))
    w2b = jnp.broadcast_to(w2.reshape(HIDDEN, 1).astype(jnp.float32), (HIDDEN, block))
    b2s = jnp.asarray(b2, jnp.float32).reshape(1, 1)             # scalar -> SMEM

    grid = (n_pad // block,)

    out_row = pl.pallas_call(
        kernelnet_kernel,
        out_shape=jax.ShapeDtypeStruct((1, n_pad), jnp.float32),
        grid=grid,
        in_specs=[
            pl.BlockSpec((1, block), lambda i: (0, i)),          # t: new slab per step
            pl.BlockSpec((HIDDEN, block), lambda i: (0, 0)),     # w1 (constant block)
            pl.BlockSpec((HIDDEN, block), lambda i: (0, 0)),     # b1 (constant block)
            pl.BlockSpec((HIDDEN, block), lambda i: (0, 0)),     # w2 (constant block)
            pl.BlockSpec(memory_space=pltpu.MemorySpace.SMEM),   # b2 scalar
        ],
        out_specs=pl.BlockSpec((1, block), lambda i: (0, i)),
        compiler_params=pltpu.CompilerParams(
            # Disjoint output slabs per step -> parallel (dual-TC sharding on v7x).
            dimension_semantics=("parallel",),
            # ~16 MiB peak (3 x 2 MiB weights double-buffered + ~4 MiB temps);
            # 32 MiB is within scope on v5e/v6e/v7x and lifts v5e's 16 MiB default.
            vmem_limit_bytes=32 << 20,
        ),
        cost_estimate=pl.CostEstimate(
            flops=5 * HIDDEN * n_pad,                            # mul+add+relu+mul+add / unit
            transcendentals=0,
            bytes_accessed=8 * n_pad + 3 * HIDDEN * block * 4 + 4,
        ),
    )(t_row, w1b, b1b, w2b, b2s)

    out = out_row.reshape(n_pad)[:n]                             # drop padded tail
    return out.reshape(orig_shape[:-1] + (1,))


def init_params(key):
    # Mimics torch.nn.Linear default init: U(-1/sqrt(fan_in), 1/sqrt(fan_in)).
    k1, k2, k3, k4 = jax.random.split(key, 4)
    bound1 = 1.0                      # fan_in = 1
    bound2 = 1.0 / jnp.sqrt(256.0)    # fan_in = 256
    w1 = jax.random.uniform(k1, (HIDDEN,), jnp.float32, -bound1, bound1)
    b1 = jax.random.uniform(k2, (HIDDEN,), jnp.float32, -bound1, bound1)
    w2 = jax.random.uniform(k3, (HIDDEN,), jnp.float32, -bound2, bound2)
    b2 = jax.random.uniform(k4, (), jnp.float32, -bound2, bound2)
    return w1, b1, w2, b2


if __name__ == "__main__":
    key = jax.random.PRNGKey(0)
    pkey, xkey = jax.random.split(key)
    w1, b1, w2, b2 = init_params(pkey)

    # Small batch of scalar time-points, shape (8, 1), like t in the module.
    t = jax.random.normal(xkey, (8, 1), jnp.float32)

    out = jax.block_until_ready(kernelnet_forward(t, w1, b1, w2, b2))

    # Pure-JAX reference (elementwise + sum: exact f32, no bf16 matmul rounding).
    ref = jnp.sum(
        jnp.maximum(t * w1[None, :] + b1[None, :], 0.0) * w2[None, :],
        axis=1, keepdims=True,
    ) + b2

    assert out.shape == (8, 1)
    assert jnp.allclose(out, ref, atol=1e-4, rtol=1e-4)

    print("KERNEL_OK")
</pallas_src>

<mosaic_0001>
module attributes {stable_mosaic.version = 11 : i64} {
  func.func @kernelnet_kernel(%arg0: i32, %arg1: memref<1x2048xf32, #tpu.memory_space<vmem>>, %arg2: memref<256x2048xf32, #tpu.memory_space<vmem>>, %arg3: memref<256x2048xf32, #tpu.memory_space<vmem>>, %arg4: memref<256x2048xf32, #tpu.memory_space<vmem>>, %arg5: memref<1x1xf32, #tpu.memory_space<smem>>, %arg6: memref<1x2048xf32, #tpu.memory_space<vmem>>) attributes {dimension_semantics = [#tpu.dimension_semantics<parallel>], iteration_bounds = array<i64: 1>, scalar_prefetch = 0 : i64, scratch_operands = 0 : i64, tpu.core_type = #tpu.core_type<tc>, window_params = [{transform_indices = @transform_0, window_bounds = array<i64: 1, 2048>}, {pipeline_mode = #tpu.pipeline_mode<synchronous>, transform_indices = @transform_1, window_bounds = array<i64: 256, 2048>}, {pipeline_mode = #tpu.pipeline_mode<synchronous>, transform_indices = @transform_2, window_bounds = array<i64: 256, 2048>}, {pipeline_mode = #tpu.pipeline_mode<synchronous>, transform_indices = @transform_3, window_bounds = array<i64: 256, 2048>}, {transform_indices = @transform_4, window_bounds = array<i64: 1, 1>}, {transform_indices = @transform_5, window_bounds = array<i64: 1, 2048>}]} {
    %c0 = arith.constant 0 : index
    %c0_0 = arith.constant 0 : index
    %0 = vector.load %arg1[%c0, %c0_0] : memref<1x2048xf32, #tpu.memory_space<vmem>>, vector<1x2048xf32>
    %c0_1 = arith.constant 0 : index
    %c0_2 = arith.constant 0 : index
    %1 = vector.load %arg2[%c0_1, %c0_2] : memref<256x2048xf32, #tpu.memory_space<vmem>>, vector<256x2048xf32>
    %2 = vector.broadcast %0 : vector<1x2048xf32> to vector<256x2048xf32>
    %3 = arith.mulf %2, %1 : vector<256x2048xf32>
    %c0_3 = arith.constant 0 : index
    %c0_4 = arith.constant 0 : index
    %4 = vector.load %arg3[%c0_3, %c0_4] : memref<256x2048xf32, #tpu.memory_space<vmem>>, vector<256x2048xf32>
    %5 = arith.addf %3, %4 : vector<256x2048xf32>
    %cst = arith.constant 0.000000e+00 : f32
    %6 = vector.broadcast %cst : f32 to vector<256x2048xf32>
    %7 = arith.maximumf %5, %6 : vector<256x2048xf32>
    %c0_5 = arith.constant 0 : index
    %c0_6 = arith.constant 0 : index
    %8 = vector.load %arg4[%c0_5, %c0_6] : memref<256x2048xf32, #tpu.memory_space<vmem>>, vector<256x2048xf32>
    %9 = arith.mulf %7, %8 : vector<256x2048xf32>
    %cst_7 = arith.constant dense<0.000000e+00> : vector<2048xf32>
    %10 = vector.multi_reduction <add>, %9, %cst_7 [0] : vector<256x2048xf32> to vector<2048xf32>
    %11 = vector.shape_cast %10 : vector<2048xf32> to vector<1x2048xf32>
    %c0_8 = arith.constant 0 : index
    %c0_9 = arith.constant 0 : index
    %12 = memref.load %arg5[%c0_8, %c0_9] : memref<1x1xf32, #tpu.memory_space<smem>>
    %13 = vector.broadcast %12 : f32 to vector<1x2048xf32>
    %14 = arith.addf %11, %13 : vector<1x2048xf32>
    %c0_10 = arith.constant 0 : index
    %c0_11 = arith.constant 0 : index
    %15 = vector.load %arg6[%c0_10, %c0_11] : memref<1x2048xf32, #tpu.memory_space<vmem>>, vector<1x2048xf32>
    tpu.vector_store %arg6[%c0_10, %c0_11], %14 {strides = array<i32>} : memref<1x2048xf32, #tpu.memory_space<vmem>>, vector<1x2048xf32>,
    return
  }
  func.func @transform_0(%arg0: i32) -> (i32, i32) {
    %c0_i32 = arith.constant 0 : i32
    %c0_i32_0 = arith.constant 0 : i32
    return %c0_i32, %arg0 : i32, i32
  }
  func.func @transform_1(%arg0: i32) -> (i32, i32) {
    %c0_i32 = arith.constant 0 : i32
    %c0_i32_0 = arith.constant 0 : i32
    %c0_i32_1 = arith.constant 0 : i32
    return %c0_i32, %c0_i32_0 : i32, i32
  }
  func.func @transform_2(%arg0: i32) -> (i32, i32) {
    %c0_i32 = arith.constant 0 : i32
    %c0_i32_0 = arith.constant 0 : i32
    %c0_i32_1 = arith.constant 0 : i32
    return %c0_i32, %c0_i32_0 : i32, i32
  }
  func.func @transform_3(%arg0: i32) -> (i32, i32) {
    %c0_i32 = arith.constant 0 : i32
    %c0_i32_0 = arith.constant 0 : i32
    %c0_i32_1 = arith.constant 0 : i32
    return %c0_i32, %c0_i32_0 : i32, i32
  }
  func.func @transform_4(%arg0: i32) -> (i32, i32) {
    %c0_i32 = arith.constant 0 : i32
    %c0_i32_0 = arith.constant 0 : i32
    %c0_i32_1 = arith.constant 0 : i32
    return %c0_i32, %c0_i32_0 : i32, i32
  }
  func.func @transform_5(%arg0: i32) -> (i32, i32) {
    %c0_i32 = arith.constant 0 : i32
    %c0_i32_0 = arith.constant 0 : i32
    return %c0_i32, %arg0 : i32, i32
  }
}

</mosaic_0001>

<llo_original>
// kernel: kernelnet_forward.1
$region0: #{kernelnet_forward.1}
  #allocation0 [shape = 'u32[]', space=smem, size = 0x4, offset = 0x4, fixed_abs, tag = 'smem constant byte address 0x4 - core index']
  #allocation1 [shape = 'u32[144,128]{1,0:T(1,128)}', space=vmem, size = 0x12000, scoped, tag = 'internal scratch']
  #allocation2 [shape = 'f32[1,1]{1,0:T(1,128)S(6)}', space=smem, size = 0x200, scoped, tag = 'scoped memory for kernelnet_forward.1']
  %s0 = inlined_call_operand.vmem [shape: f32[1,2048], index: 0, kind: input, shape index: {}]
  %s1 = inlined_call_operand.vmem [shape: f32[256,2048], index: 1, kind: input, shape index: {}]
  %s2 = inlined_call_operand.vmem [shape: f32[256,2048], index: 2, kind: input, shape index: {}]
  %s3 = inlined_call_operand.vmem [shape: f32[256,2048], index: 3, kind: input, shape index: {}]
  %s4 = inlined_call_operand.<no memory space> [shape: f32[1,1], index: 4, kind: input, shape index: {}]
  %s5 = inlined_call_operand.vmem [shape: f32[1,2048], index: 5, kind: output, shape index: {}]
  %s6 = sld [smem:[#allocation0]]
  $region30: #{kernelnet_forward.1} parent=0
    _
  %s8 = ssub.s32 1, %s6
  %s9 = scalar_select 0, %s8, %s6
  %10 = sst [smem:[#allocation2]] %s4
  // Predicated region
  $region2: #{kernelnet_forward.1} parent=0 // pred_check
    _
  $region3: #{kernelnet_forward.1} parent=0 // pred_check_branch
    %12 = sbr.rel (0) target = $region5
  $region4: #{kernelnet_forward.1} parent=0 // pred_region
    _
  $region5: #{kernelnet_forward.1} parent=0 // pred_fallthru
    _
  // Predicated region
  $region6: #{kernelnet_forward.1} parent=0 // pred_check
    _
  $region7: #{kernelnet_forward.1} parent=0 // pred_check_branch
    %14 = sbr.rel (0) target = $region9
  $region8: #{kernelnet_forward.1} parent=0 // pred_region
    _
  $region9: #{kernelnet_forward.1} parent=0 // pred_fallthru
    _
  // Predicated region
  $region10: #{kernelnet_forward.1} parent=0 // pred_check
    _
  $region11: #{kernelnet_forward.1} parent=0 // pred_check_branch
    %16 = sbr.rel (0) target = $region13
  $region12: #{kernelnet_forward.1} parent=0 // pred_region
    _
  $region13: #{kernelnet_forward.1} parent=0 // pred_fallthru
    _
  // Predicated region
  $region14: #{kernelnet_forward.1} parent=0 // pred_check
    _
  $region15: #{kernelnet_forward.1} parent=0 // pred_check_branch
    %18 = sbr.rel (0) target = $region17
  $region16: #{kernelnet_forward.1} parent=0 // pred_region
    _
  $region17: #{kernelnet_forward.1} parent=0 // pred_fallthru
    _
  // Predicated region
  $region18: #{kernelnet_forward.1} parent=0 // pred_check
    _
  $region19: #{kernelnet_forward.1} parent=0 // pred_check_branch
    %20 = sbr.rel (0) target = $region21
  $region20: #{kernelnet_forward.1} parent=0 // pred_region
    _
  $region21: #{kernelnet_forward.1} parent=0 // pred_fallthru
    _
  %v21 = vld [vmem:[%s0] sm:$0xff]
  %v22 = vld [vmem:[%s0 + $0x8] sm:$0xff]
  %v23 = vld [vmem:[%s1] sm:$0xff]
  %v24 = vld [vmem:[%s1 + $0x8] sm:$0xff]
  %v25 = vld [vmem:[%s1 + $0x10] sm:$0xff]
  %v26 = vld [vmem:[%s1 + $0x18] sm:$0xff]
  %v27 = vld [vmem:[%s1 + $0x20] sm:$0xff]
  %v28 = vld [vmem:[%s1 + $0x28] sm:$0xff]
  %v29 = vld [vmem:[%s1 + $0x30] sm:$0xff]
  %v30 = vld [vmem:[%s1 + $0x38] sm:$0xff]
  %v31 = vld [vmem:[%s1 + $0x40] sm:$0xff]
  %v32 = vld [vmem:[%s1 + $0x48] sm:$0xff]
  %v33 = vld [vmem:[%s1 + $0x50] sm:$0xff]
  %v34 = vld [vmem:[%s1 + $0x58] sm:$0xff]
  %v35 = vld [vmem:[%s1 + $0x60] sm:$0xff]
  %v36 = vld [vmem:[%s1 + $0x68] sm:$0xff]
  %v37 = vld [vmem:[%s1 + $0x70] sm:$0xff]
  %v38 = vld [vmem:[%s1 + $0x78] sm:$0xff]
  %v39 = vld [vmem:[%s1 + $0x80] sm:$0xff]
  %v40 = vld [vmem:[%s1 + $0x88] sm:$0xff]
  %v41 = vld [vmem:[%s1 + $0x90] sm:$0xff]
  %v42 = vld [vmem:[%s1 + $0x98] sm:$0xff]
  %v43 = vld [vmem:[%s1 + $0xa0] sm:$0xff]
  %v44 = vld [vmem:[%s1 + $0xa8] sm:$0xff]
  %v45 = vld [vmem:[%s1 + $0xb0] sm:$0xff]
  %v46 = vld [vmem:[%s1 + $0xb8] sm:$0xff]
  %v47 = vld [vmem:[%s1 + $0xc0] sm:$0xff]
  %v48 = vld [vmem:[%s1 + $0xc8] sm:$0xff]
  %v49 = vld [vmem:[%s1 + $0xd0] sm:$0xff]
  %v50 = vld [vmem:[%s1 + $0xd8] sm:$0xff]
  %v51 = vld [vmem:[%s1 + $0xe0] sm:$0xff]
  %v52 = vld [vmem:[%s1 + $0xe8] sm:$0xff]
  %v53 = vld [vmem:[%s1 + $0xf0] sm:$0xff]
  %v54 = vld [vmem:[%s1 + $0xf8] sm:$0xff]
  %v55 = vld [vmem:[%s1 + $0x100] sm:$0xff]
  %v56 = vld [vmem:[%s1 + $0x108] sm:$0xff]
  %v57 = vld [vmem:[%s1 + $0x110] sm:$0xff]
  %v58 = vld [vmem:[%s1 + $0x118] sm:$0xff]
  %v59 = vld [vmem:[%s1 + $0x120] sm:$0xff]
  %v60 = vld [vmem:[%s1 + $0x128] sm:$0xff]
  %v61 = vld [vmem:[%s1 + $0x130] sm:$0xff]
  %v62 = vld [vmem:[%s1 + $0x138] sm:$0xff]
  %v63 = vld [vmem:[%s1 + $0x140] sm:$0xff]
  %v64 = vld [vmem:[%s1 + $0x148] sm:$0xff]
  %v65 = vld [vmem:[%s1 + $0x150] sm:$0xff]
  %v66 = vld [vmem:[%s1 + $0x158] sm:$0xff]
  %v67 = vld [vmem:[%s1 + $0x160] sm:$0xff]
  %v68 = vld [vmem:[%s1 + $0x168] sm:$0xff]
  %v69 = vld [vmem:[%s1 + $0x170] sm:$0xff]
  %v70 = vld [vmem:[%s1 + $0x178] sm:$0xff]
  %v71 = vld [vmem:[%s1 + $0x180] sm:$0xff]
  %v72 = vld [vmem:[%s1 + $0x188] sm:$0xff]
  %v73 = vld [vmem:[%s1 + $0x190] sm:$0xff]
  %v74 = vld [vmem:[%s1 + $0x198] sm:$0xff]
  %v75 = vld [vmem:[%s1 + $0x1a0] sm:$0xff]
  %v76 = vld [vmem:[%s1 + $0x1a8] sm:$0xff]
  %v77 = vld [vmem:[%s1 + $0x1b0] sm:$0xff]
  %v78 = vld [vmem:[%s1 + $0x1b8] sm:$0xff]
  %v79 = vld [vmem:[%s1 + $0x1c0] sm:$0xff]
  %v80 = vld [vmem:[%s1 + $0x1c8] sm:$0xff]
  %v81 = vld [vmem:[%s1 + $0x1d0] sm:$0xff]
  %v82 = vld [vmem:[%s1 + $0x1d8] sm:$0xff]
  %v83 = vld [vmem:[%s1 + $0x1e0] sm:$0xff]
  %v84 = vld [vmem:[%s1 + $0x1e8] sm:$0xff]
  %v85 = vld [vmem:[%s1 + $0x1f0] sm:$0xff]
  %v86 = vld [vmem:[%s1 + $0x1f8] sm:$0xff]
  %v87 = vld [vmem:[%s1 + $0x200] sm:$0xff]
  %v88 = vld [vmem:[%s1 + $0x208] sm:$0xff]
  %v89 = vld [vmem:[%s1 + $0x210] sm:$0xff]
  %v90 = vld [vmem:[%s1 + $0x218] sm:$0xff]
  %v91 = vld [vmem:[%s1 + $0x220] sm:$0xff]
  %v92 = vld [vmem:[%s1 + $0x228] sm:$0xff]
  %v93 = vld [vmem:[%s1 + $0x230] sm:$0xff]
  %v94 = vld [vmem:[%s1 + $0x238] sm:$0xff]
  %v95 = vld [vmem:[%s1 + $0x240] sm:$0xff]
  %v96 = vld [vmem:[%s1 + $0x248] sm:$0xff]
  %v97 = vld [vmem:[%s1 + $0x250] sm:$0xff]
  %v98 = vld [vmem:[%s1 + $0x258] sm:$0xff]
  %v99 = vld [vmem:[%s1 + $0x260] sm:$0xff]
  %v100 = vld [vmem:[%s1 + $0x268] sm:$0xff]
  %v101 = vld [vmem:[%s1 + $0x270] sm:$0xff]
  %v102 = vld [vmem:[%s1 + $0x278] sm:$0xff]
  %v103 = vld [vmem:[%s1 + $0x280] sm:$0xff]
  %v104 = vld [vmem:[%s1 + $0x288] sm:$0xff]
  %v105 = vld [vmem:[%s1 + $0x290] sm:$0xff]
  %v106 = vld [vmem:[%s1 + $0x298] sm:$0xff]
  %v107 = vld [vmem:[%s1 + $0x2a0] sm:$0xff]
  %v108 = vld [vmem:[%s1 + $0x2a8] sm:$0xff]
  %v109 = vld [vmem:[%s1 + $0x2b0] sm:$0xff]
  %v110 = vld [vmem:[%s1 + $0x2b8] sm:$0xff]
  %v111 = vld [vmem:[%s1 + $0x2c0] sm:$0xff]
  %v112 = vld [vmem:[%s1 + $0x2c8] sm:$0xff]
  %v113 = vld [vmem:[%s1 + $0x2d0] sm:$0xff]
  %v114 = vld [vmem:[%s1 + $0x2d8] sm:$0xff]
  %v115 = vld [vmem:[%s1 + $0x2e0] sm:$0xff]
  %v116 = vld [vmem:[%s1 + $0x2e8] sm:$0xff]
  %v117 = vld [vmem:[%s1 + $0x2f0] sm:$0xff]
  %v118 = vld [vmem:[%s1 + $0x2f8] sm:$0xff]
  %v119 = vld [vmem:[%s1 + $0x300] sm:$0xff]
  %v120 = vld [vmem:[%s1 + $0x308] sm:$0xff]
  %v121 = vld [vmem:[%s1 + $0x310] sm:$0xff]
  %v122 = vld [vmem:[%s1 + $0x318] sm:$0xff]
  %v123 = vld [vmem:[%s1 + $0x320] sm:$0xff]
  %v124 = vld [vmem:[%s1 + $0x328] sm:$0xff]
  %v125 = vld [vmem:[%s1 + $0x330] sm:$0xff]
  %v126 = vld [vmem:[%s1 + $0x338] sm:$0xff]
  %v127 = vld [vmem:[%s1 + $0x340] sm:$0xff]
  %v128 = vld [vmem:[%s1 + $0x348] sm:$0xff]
  %v129 = vld [vmem:[%s1 + $0x350] sm:$0xff]
  %v130 = vld [vmem:[%s1 + $0x358] sm:$0xff]
  %v131 = vld [vmem:[%s1 + $0x360] sm:$0xff]
  %v132 = vld [vmem:[%s1 + $0x368] sm:$0xff]
  %v133 = vld [vmem:[%s1 + $0x370] sm:$0xff]
  %v134 = vld [vmem:[%s1 + $0x378] sm:$0xff]
  %v135 = vld [vmem:[%s1 + $0x380] sm:$0xff]
  %v136 = vld [vmem:[%s1 + $0x388] sm:$0xff]
  %v137 = vld [vmem:[%s1 + $0x390] sm:$0xff]
  %v138 = vld [vmem:[%s1 + $0x398] sm:$0xff]
  %v139 = vld [vmem:[%s1 + $0x3a0] sm:$0xff]
  %v140 = vld [vmem:[%s1 + $0x3a8] sm:$0xff]
  %v141 = vld [vmem:[%s1 + $0x3b0] sm:$0xff]
  %v142 = vld [vmem:[%s1 + $0x3b8] sm:$0xff]
  %v143 = vld [vmem:[%s1 + $0x3c0] sm:$0xff]
  %v144 = vld [vmem:[%s1 + $0x3c8] sm:$0xff]
  %v145 = vld [vmem:[%s1 + $0x3d0] sm:$0xff]
  %v146 = vld [vmem:[%s1 + $0x3d8] sm:$0xff]
  %v147 = vld [vmem:[%s1 + $0x3e0] sm:$0xff]
  %v148 = vld [vmem:[%s1 + $0x3e8] sm:$0xff]
  %v149 = vld [vmem:[%s1 + $0x3f0] sm:$0xff]
  %v150 = vld [vmem:[%s1 + $0x3f8] sm:$0xff]
  %v151 = vld [vmem:[%s1 + $0x400] sm:$0xff]
  %v152 = vld [vmem:[%s1 + $0x408] sm:$0xff]
  %v153 = vld [vmem:[%s1 + $0x410] sm:$0xff]
  %v154 = vld [vmem:[%s1 + $0x418] sm:$0xff]
  %v155 = vld [vmem:[%s1 + $0x420] sm:$0xff]
  %v156 = vld [vmem:[%s1 + $0x428] sm:$0xff]
  %v157 = vld [vmem:[%s1 + $0x430] sm:$0xff]
  %v158 = vld [vmem:[%s1 + $0x438] sm:$0xff]
  %v159 = vld [vmem:[%s1 + $0x440] sm:$0xff]
  %v160 = vld [vmem:[%s1 + $0x448] sm:$0xff]
  %v161 = vld [vmem:[%s1 + $0x450] sm:$0xff]
  %v162 = vld [vmem:[%s1 + $0x458] sm:$0xff]
  %v163 = vld [vmem:[%s1 + $0x460] sm:$0xff]
  %v164 = vld [vmem:[%s1 + $0x468] sm:$0xff]
  %v165 = vld [vmem:[%s1 + $0x470] sm:$0xff]
  %v166 = vld [vmem:[%s1 + $0x478] sm:$0xff]
  %v167 = vld [vmem:[%s1 + $0x480] sm:$0xff]
  %v168 = vld [vmem:[%s1 + $0x488] sm:$0xff]
  %v169 = vld [vmem:[%s1 + $0x490] sm:$0xff]
  %v170 = vld [vmem:[%s1 + $0x498] sm:$0xff]
  %v171 = vld [vmem:[%s1 + $0x4a0] sm:$0xff]
  %v172 = vld [vmem:[%s1 + $0x4a8] sm:$0xff]
  %v173 = vld [vmem:[%s1 + $0x4b0] sm:$0xff]
  %v174 = vld [vmem:[%s1 + $0x4b8] sm:$0xff]
  %v175 = vld [vmem:[%s1 + $0x4c0] sm:$0xff]
  %v176 = vld [vmem:[%s1 + $0x4c8] sm:$0xff]
  %v177 = vld [vmem:[%s1 + $0x4d0] sm:$0xff]
  %v178 = vld [vmem:[%s1 + $0x4d8] sm:$0xff]
  %v179 = vld [vmem:[%s1 + $0x4e0] sm:$0xff]
  %v180 = vld [vmem:[%s1 + $0x4e8] sm:$0xff]
  %v181 = vld [vmem:[%s1 + $0x4f0] sm:$0xff]
  %v182 = vld [vmem:[%s1 + $0x4f8] sm:$0xff]
  %v183 = vld [vmem:[%s1 + $0x500] sm:$0xff]
  %v184 = vld [vmem:[%s1 + $0x508] sm:$0xff]
  %v185 = vld [vmem:[%s1 + $0x510] sm:$0xff]
  %v186 = vld [vmem:[%s1 + $0x518] sm:$0xff]
  %v187 = vld [vmem:[%s1 + $0x520] sm:$0xff]
  %v188 = vld [vmem:[%s1 + $0x528] sm:$0xff]
  %v189 = vld [vmem:[%s1 + $0x530] sm:$0xff]
  %v190 = vld [vmem:[%s1 + $0x538] sm:$0xff]
  %v191 = vld [vmem:[%s1 + $0x540] sm:$0xff]
  %v192 = vld [vmem:[%s1 + $0x548] sm:$0xff]
  %v193 = vld [vmem:[%s1 + $0x550] sm:$0xff]
  %v194 = vld [vmem:[%s1 + $0x558] sm:$0xff]
  %v195 = vld [vmem:[%s1 + $0x560] sm:$0xff]
  %v196 = vld [vmem:[%s1 + $0x568] sm:$0xff]
  %v197 = vld [vmem:[%s1 + $0x570] sm:$0xff]
  %v198 = vld [vmem:[%s1 + $0x578] sm:$0xff]
  %v199 = vld [vmem:[%s1 + $0x580] sm:$0xff]
  %v200 = vld [vmem:[%s1 + $0x588] sm:$0xff]
  %v201 = vld [vmem:[%s1 + $0x590] sm:$0xff]
  %v202 = vld [vmem:[%s1 + $0x598] sm:$0xff]
  %v203 = vld [vmem:[%s1 + $0x5a0] sm:$0xff]
  %v204 = vld [vmem:[%s1 + $0x5a8] sm:$0xff]
  %v205 = vld [vmem:[%s1 + $0x5b0] sm:$0xff]
  %v206 = vld [vmem:[%s1 + $0x5b8] sm:$0xff]
  %v207 = vld [vmem:[%s1 + $0x5c0] sm:$0xff]
  %v208 = vld [vmem:[%s1 + $0x5c8] sm:$0xff]
  %v209 = vld [vmem:[%s1 + $0x5d0] sm:$0xff]
  %v210 = vld [vmem:[%s1 + $0x5d8] sm:$0xff]
  %v211 = vld [vmem:[%s1 + $0x5e0] sm:$0xff]
  %v212 = vld [vmem:[%s1 + $0x5e8] sm:$0xff]
  %v213 = vld [vmem:[%s1 + $0x5f0] sm:$0xff]
  %v214 = vld [vmem:[%s1 + $0x5f8] sm:$0xff]
  %v215 = vld [vmem:[%s1 + $0x600] sm:$0xff]
  %v216 = vld [vmem:[%s1 + $0x608] sm:$0xff]
  %v217 = vld [vmem:[%s1 + $0x610] sm:$0xff]
  %v218 = vld [vmem:[%s1 + $0x618] sm:$0xff]
  %v219 = vld [vmem:[%s1 + $0x620] sm:$0xff]
  %v220 = vld [vmem:[%s1 + $0x628] sm:$0xff]
  %v221 = vld [vmem:[%s1 + $0x630] sm:$0xff]
  %v222 = vld [vmem:[%s1 + $0x638] sm:$0xff]
  %v223 = vld [vmem:[%s1 + $0x640] sm:$0xff]
  %v224 = vld [vmem:[%s1 + $0x648] sm:$0xff]
  %v225 = vld [vmem:[%s1 + $0x650] sm:$0xff]
  %v226 = vld [vmem:[%s1 + $0x658] sm:$0xff]
  %v227 = vld [vmem:[%s1 + $0x660] sm:$0xff]
  %v228 = vld [vmem:[%s1 + $0x668] sm:$0xff]
  %v229 = vld [vmem:[%s1 + $0x670] sm:$0xff]
  %v230 = vld [vmem:[%s1 + $0x678] sm:$0xff]
  %v231 = vld [vmem:[%s1 + $0x680] sm:$0xff]
  %v232 = vld [vmem:[%s1 + $0x688] sm:$0xff]
  %v233 = vld [vmem:[%s1 + $0x690] sm:$0xff]
  %v234 = vld [vmem:[%s1 + $0x698] sm:$0xff]
  %v235 = vld [vmem:[%s1 + $0x6a0] sm:$0xff]
  %v236 = vld [vmem:[%s1 + $0x6a8] sm:$0xff]
  %v237 = vld [vmem:[%s1 + $0x6b0] sm:$0xff]
  %v238 = vld [vmem:[%s1 + $0x6b8] sm:$0xff]
  %v239 = vld [vmem:[%s1 + $0x6c0] sm:$0xff]
  %v240 = vld [vmem:[%s1 + $0x6c8] sm:$0xff]
  %v241 = vld [vmem:[%s1 + $0x6d0] sm:$0xff]
  %v242 = vld [vmem:[%s1 + $0x6d8] sm:$0xff]
  %v243 = vld [vmem:[%s1 + $0x6e0] sm:$0xff]
  %v244 = vld [vmem:[%s1 + $0x6e8] sm:$0xff]
  %v245 = vld [vmem:[%s1 + $0x6f0] sm:$0xff]
  %v246 = vld [vmem:[%s1 + $0x6f8] sm:$0xff]
  %v247 = vld [vmem:[%s1 + $0x700] sm:$0xff]
  %v248 = vld [vmem:[%s1 + $0x708] sm:$0xff]
  %v249 = vld [vmem:[%s1 + $0x710] sm:$0xff]
  %v250 = vld [vmem:[%s1 + $0x718] sm:$0xff]
  %v251 = vld [vmem:[%s1 + $0x720] sm:$0xff]
  %v252 = vld [vmem:[%s1 + $0x728] sm:$0xff]
  %v253 = vld [vmem:[%s1 + $0x730] sm:$0xff]
  %v254 = vld [vmem:[%s1 + $0x738] sm:$0xff]
  %v255 = vld [vmem:[%s1 + $0x740] sm:$0xff]
  %v256 = vld [vmem:[%s1 + $0x748] sm:$0xff]
  %v257 = vld [vmem:[%s1 + $0x750] sm:$0xff]
  %v258 = vld [vmem:[%s1 + $0x758] sm:$0xff]
  %v259 = vld [vmem:[%s1 + $0x760] sm:$0xff]
  %v260 = vld [vmem:[%s1 + $0x768] sm:$0xff]
  %v261 = vld [vmem:[%s1 + $0x770] sm:$0xff]
  %v262 = vld [vmem:[%s1 + $0x778] sm:$0xff]
  %v263 = vld [vmem:[%s1 + $0x780] sm:$0xff]
  %v264 = vld [vmem:[%s1 + $0x788] sm:$0xff]
  %v265 = vld [vmem:[%s1 + $0x790] sm:$0xff]
  %v266 = vld [vmem:[%s1 + $0x798] sm:$0xff]
  %v267 = vld [vmem:[%s1 + $0x7a0] sm:$0xff]
  %v268 = vld [vmem:[%s1 + $0x7a8] sm:$0xff]
  %v269 = vld [vmem:[%s1 + $0x7b0] sm:$0xff]
  %v270 = vld [vmem:[%s1 + $0x7b8] sm:$0xff]
  %v271 = vld [vmem:[%s1 + $0x7c0] sm:$0xff]
  %v272 = vld [vmem:[%s1 + $0x7c8] sm:$0xff]
  %v273 = vld [vmem:[%s1 + $0x7d0] sm:$0xff]
  %v274 = vld [vmem:[%s1 + $0x7d8] sm:$0xff]
  %v275 = vld [vmem:[%s1 + $0x7e0] sm:$0xff]
  %v276 = vld [vmem:[%s1 + $0x7e8] sm:$0xff]
  %v277 = vld [vmem:[%s1 + $0x7f0] sm:$0xff]
  %v278 = vld [vmem:[%s1 + $0x7f8] sm:$0xff]
  %v279 = vld [vmem:[%s1 + $0x800] sm:$0xff]
  %v280 = vld [vmem:[%s1 + $0x808] sm:$0xff]
  %v281 = vld [vmem:[%s1 + $0x810] sm:$0xff]
  %v282 = vld [vmem:[%s1 + $0x818] sm:$0xff]
  %v283 = vld [vmem:[%s1 + $0x820] sm:$0xff]
  %v284 = vld [vmem:[%s1 + $0x828] sm:$0xff]
  %v285 = vld [vmem:[%s1 + $0x830] sm:$0xff]
  %v286 = vld [vmem:[%s1 + $0x838] sm:$0xff]
  %v287 = vld [vmem:[%s1 + $0x840] sm:$0xff]
  %v288 = vld [vmem:[%s1 + $0x848] sm:$0xff]
  %v289 = vld [vmem:[%s1 + $0x850] sm:$0xff]
  %v290 = vld [vmem:[%s1 + $0x858] sm:$0xff]
  %v291 = vld [vmem:[%s1 + $0x860] sm:$0xff]
  %v292 = vld [vmem:[%s1 + $0x868] sm:$0xff]
  %v293 = vld [vmem:[%s1 + $0x870] sm:$0xff]
  %v294 = vld [vmem:[%s1 + $0x878] sm:$0xff]
  %v295 = vld [vmem:[%s1 + $0x880] sm:$0xff]
  %v296 = vld [vmem:[%s1 + $0x888] sm:$0xff]
  %v297 = vld [vmem:[%s1 + $0x890] sm:$0xff]
  %v298 = vld [vmem:[%s1 + $0x898] sm:$0xff]
  %v299 = vld [vmem:[%s1 + $0x8a0] sm:$0xff]
  %v300 = vld [vmem:[%s1 + $0x8a8] sm:$0xff]
  %v301 = vld [vmem:[%s1 + $0x8b0] sm:$0xff]
  %v302 = vld [vmem:[%s1 + $0x8b8] sm:$0xff]
  %v303 = vld [vmem:[%s1 + $0x8c0] sm:$0xff]
  %v304 = vld [vmem:[%s1 + $0x8c8] sm:$0xff]
  %v305 = vld [vmem:[%s1 + $0x8d0] sm:$0xff]
  %v306 = vld [vmem:[%s1 + $0x8d8] sm:$0xff]
  %v307 = vld [vmem:[%s1 + $0x8e0] sm:$0xff]
  %v308 = vld [vmem:[%s1 + $0x8e8] sm:$0xff]
  %v309 = vld [vmem:[%s1 + $0x8f0] sm:$0xff]
  %v310 = vld [vmem:[%s1 + $0x8f8] sm:$0xff]
  %v311 = vld [vmem:[%s1 + $0x900] sm:$0xff]
  %v312 = vld [vmem:[%s1 + $0x908] sm:$0xff]
  %v313 = vld [vmem:[%s1 + $0x910] sm:$0xff]
  %v314 = vld [vmem:[%s1 + $0x918] sm:$0xff]
  %v315 = vld [vmem:[%s1 + $0x920] sm:$0xff]
  %v316 = vld [vmem:[%s1 + $0x928] sm:$0xff]
  %v317 = vld [vmem:[%s1 + $0x930] sm:$0xff]
  %v318 = vld [vmem:[%s1 + $0x938] sm:$0xff]
  %v319 = vld [vmem:[%s1 + $0x940] sm:$0xff]
  %v320 = vld [vmem:[%s1 + $0x948] sm:$0xff]
  %v321 = vld [vmem:[%s1 + $0x950] sm:$0xff]
  %v322 = vld [vmem:[%s1 + $0x958] sm:$0xff]
  %v323 = vld [vmem:[%s1 + $0x960] sm:$0xff]
  %v324 = vld [vmem:[%s1 + $0x968] sm:$0xff]
  %v325 = vld [vmem:[%s1 + $0x970] sm:$0xff]
  %v326 = vld [vmem:[%s1 + $0x978] sm:$0xff]
  %v327 = vld [vmem:[%s1 + $0x980] sm:$0xff]
  %v328 = vld [vmem:[%s1 + $0x988] sm:$0xff]
  %v329 = vld [vmem:[%s1 + $0x990] sm:$0xff]
  %v330 = vld [vmem:[%s1 + $0x998] sm:$0xff]
  %v331 = vld [vmem:[%s1 + $0x9a0] sm:$0xff]
  %v332 = vld [vmem:[%s1 + $0x9a8] sm:$0xff]
  %v333 = vld [vmem:[%s1 + $0x9b0] sm:$0xff]
  %v334 = vld [vmem:[%s1 + $0x9b8] sm:$0xff]
  %v335 = vld [vmem:[%s1 + $0x9c0] sm:$0xff]
  %v336 = vld [vmem:[%s1 + $0x9c8] sm:$0xff]
  %v337 = vld [vmem:[%s1 + $0x9d0] sm:$0xff]
  %v338 = vld [vmem:[%s1 + $0x9d8] sm:$0xff]
  %v339 = vld [vmem:[%s1 + $0x9e0] sm:$0xff]
  %v340 = vld [vmem:[%s1 + $0x9e8] sm:$0xff]
  %v341 = vld [vmem:[%s1 + $0x9f0] sm:$0xff]
  %v342 = vld [vmem:[%s1 + $0x9f8] sm:$0xff]
  %v343 = vld [vmem:[%s1 + $0xa00] sm:$0xff]
  %v344 = vld [vmem:[%s1 + $0xa08] sm:$0xff]
  %v345 = vld [vmem:[%s1 + $0xa10] sm:$0xff]
  %v346 = vld [vmem:[%s1 + $0xa18] sm:$0xff]
  %v347 = vld [vmem:[%s1 + $0xa20] sm:$0xff]
  %v348 = vld [vmem:[%s1 + $0xa28] sm:$0xff]
  %v349 = vld [vmem:[%s1 + $0xa30] sm:$0xff]
  %v350 = vld [vmem:[%s1 + $0xa38] sm:$0xff]
  %v351 = vld [vmem:[%s1 + $0xa40] sm:$0xff]
  %v352 = vld [vmem:[%s1 + $0xa48] sm:$0xff]
  %v353 = vld [vmem:[%s1 + $0xa50] sm:$0xff]
  %v354 = vld [vmem:[%s1 + $0xa58] sm:$0xff]
  %v355 = vld [vmem:[%s1 + $0xa60] sm:$0xff]
  %v356 = vld [vmem:[%s1 + $0xa68] sm:$0xff]
  %v357 = vld [vmem:[%s1 + $0xa70] sm:$0xff]
  %v358 = vld [vmem:[%s1 + $0xa78] sm:$0xff]
  %v359 = vld [vmem:[%s1 + $0xa80] sm:$0xff]
  %v360 = vld [vmem:[%s1 + $0xa88] sm:$0xff]
  %v361 = vld [vmem:[%s1 + $0xa90] sm:$0xff]
  %v362 = vld [vmem:[%s1 + $0xa98] sm:$0xff]
  %v363 = vld [vmem:[%s1 + $0xaa0] sm:$0xff]
  %v364 = vld [vmem:[%s1 + $0xaa8] sm:$0xff]
  %v365 = vld [vmem:[%s1 + $0xab0] sm:$0xff]
  %v366 = vld [vmem:[%s1 + $0xab8] sm:$0xff]
  %v367 = vld [vmem:[%s1 + $0xac0] sm:$0xff]
  %v368 = vld [vmem:[%s1 + $0xac8] sm:$0xff]
  %v369 = vld [vmem:[%s1 + $0xad0] sm:$0xff]
  %v370 = vld [vmem:[%s1 + $0xad8] sm:$0xff]
  %v371 = vld [vmem:[%s1 + $0xae0] sm:$0xff]
  %v372 = vld [vmem:[%s1 + $0xae8] sm:$0xff]
  %v373 = vld [vmem:[%s1 + $0xaf0] sm:$0xff]
  %v374 = vld [vmem:[%s1 + $0xaf8] sm:$0xff]
  %v375 = vld [vmem:[%s1 + $0xb00] sm:$0xff]
  %v376 = vld [vmem:[%s1 + $0xb08] sm:$0xff]
  %v377 = vld [vmem:[%s1 + $0xb10] sm:$0xff]
  %v378 = vld [vmem:[%s1 + $0xb18] sm:$0xff]
  %v379 = vld [vmem:[%s1 + $0xb20] sm:$0xff]
  %v380 = vld [vmem:[%s1 + $0xb28] sm:$0xff]
  %v381 = vld [vmem:[%s1 + $0xb30] sm:$0xff]
  %v382 = vld [vmem:[%s1 + $0xb38] sm:$0xff]
  %v383 = vld [vmem:[%s1 + $0xb40] sm:$0xff]
  %v384 = vld [vmem:[%s1 + $0xb48] sm:$0xff]
  %v385 = vld [vmem:[%s1 + $0xb50] sm:$0xff]
  %v386 = vld [vmem:[%s1 + $0xb58] sm:$0xff]
  %v387 = vld [vmem:[%s1 + $0xb60] sm:$0xff]
  %v388 = vld [vmem:[%s1 + $0xb68] sm:$0xff]
  %v389 = vld [vmem:[%s1 + $0xb70] sm:$0xff]
  %v390 = vld [vmem:[%s1 + $0xb78] sm:$0xff]
  %v391 = vld [vmem:[%s1 + $0xb80] sm:$0xff]
  %v392 = vld [vmem:[%s1 + $0xb88] sm:$0xff]
  %v393 = vld [vmem:[%s1 + $0xb90] sm:$0xff]
  %v394 = vld [vmem:[%s1 + $0xb98] sm:$0xff]
  %v395 = vld [vmem:[%s1 + $0xba0] sm:$0xff]
  %v396 = vld [vmem:[%s1 + $0xba8] sm:$0xff]
  %v397 = vld [vmem:[%s1 + $0xbb0] sm:$0xff]
  %v398 = vld [vmem:[%s1 + $0xbb8] sm:$0xff]
  %v399 = vld [vmem:[%s1 + $0xbc0] sm:$0xff]
  %v400 = vld [vmem:[%s1 + $0xbc8] sm:$0xff]
  %v401 = vld [vmem:[%s1 + $0xbd0] sm:$0xff]
  %v402 = vld [vmem:[%s1 + $0xbd8] sm:$0xff]
  %v403 = vld [vmem:[%s1 + $0xbe0] sm:$0xff]
  %v404 = vld [vmem:[%s1 + $0xbe8] sm:$0xff]
  %v405 = vld [vmem:[%s1 + $0xbf0] sm:$0xff]
  %v406 = vld [vmem:[%s1 + $0xbf8] sm:$0xff]
  %v407 = vld [vmem:[%s1 + $0xc00] sm:$0xff]
  %v408 = vld [vmem:[%s1 + $0xc08] sm:$0xff]
  %v409 = vld [vmem:[%s1 + $0xc10] sm:$0xff]
  %v410 = vld [vmem:[%s1 + $0xc18] sm:$0xff]
  %v411 = vld [vmem:[%s1 + $0xc20] sm:$0xff]
  %v412 = vld [vmem:[%s1 + $0xc28] sm:$0xff]
  %v413 = vld [vmem:[%s1 + $0xc30] sm:$0xff]
  %v414 = vld [vmem:[%s1 + $0xc38] sm:$0xff]
  %v415 = vld [vmem:[%s1 + $0xc40] sm:$0xff]
  %v416 = vld [vmem:[%s1 + $0xc48] sm:$0xff]
  %v417 = vld [vmem:[%s1 + $0xc50] sm:$0xff]
  %v418 = vld [vmem:[%s1 + $0xc58] sm:$0xff]
  %v419 = vld [vmem:[%s1 + $0xc60] sm:$0xff]
  %v420 = vld [vmem:[%s1 + $0xc68] sm:$0xff]
  %v421 = vld [vmem:[%s1 + $0xc70] sm:$0xff]
  %v422 = vld [vmem:[%s1 + $0xc78] sm:$0xff]
  %v423 = vld [vmem:[%s1 + $0xc80] sm:$0xff]
  %v424 = vld [vmem:[%s1 + $0xc88] sm:$0xff]
  %v425 = vld [vmem:[%s1 + $0xc90] sm:$0xff]
  %v426 = vld [vmem:[%s1 + $0xc98] sm:$0xff]
  %v427 = vld [vmem:[%s1 + $0xca0] sm:$0xff]
  %v428 = vld [vmem:[%s1 + $0xca8] sm:$0xff]
  %v429 = vld [vmem:[%s1 + $0xcb0] sm:$0xff]
  %v430 = vld [vmem:[%s1 + $0xcb8] sm:$0xff]
  %v431 = vld [vmem:[%s1 + $0xcc0] sm:$0xff]
  %v432 = vld [vmem:[%s1 + $0xcc8] sm:$0xff]
  %v433 = vld [vmem:[%s1 + $0xcd0] sm:$0xff]
  %v434 = vld [vmem:[%s1 + $0xcd8] sm:$0xff]
  %v435 = vld [vmem:[%s1 + $0xce0] sm:$0xff]
  %v436 = vld [vmem:[%s1 + $0xce8] sm:$0xff]
  %v437 = vld [vmem:[%s1 + $0xcf0] sm:$0xff]
  %v438 = vld [vmem:[%s1 + $0xcf8] sm:$0xff]
  %v439 = vld [vmem:[%s1 + $0xd00] sm:$0xff]
  %v440 = vld [vmem:[%s1 + $0xd08] sm:$0xff]
  %v441 = vld [vmem:[%s1 + $0xd10] sm:$0xff]
  %v442 = vld [vmem:[%s1 + $0xd18] sm:$0xff]
  %v443 = vld [vmem:[%s1 + $0xd20] sm:$0xff]
  %v444 = vld [vmem:[%s1 + $0xd28] sm:$0xff]
  %v445 = vld [vmem:[%s1 + $0xd30] sm:$0xff]
  %v446 = vld [vmem:[%s1 + $0xd38] sm:$0xff]
  %v447 = vld [vmem:[%s1 + $0xd40] sm:$0xff]
  %v448 = vld [vmem:[%s1 + $0xd48] sm:$0xff]
  %v449 = vld [vmem:[%s1 + $0xd50] sm:$0xff]
  %v450 = vld [vmem:[%s1 + $0xd58] sm:$0xff]
  %v451 = vld [vmem:[%s1 + $0xd60] sm:$0xff]
  %v452 = vld [vmem:[%s1 + $0xd68] sm:$0xff]
  %v453 = vld [vmem:[%s1 + $0xd70] sm:$0xff]
  %v454 = vld [vmem:[%s1 + $0xd78] sm:$0xff]
  %v455 = vld [vmem:[%s1 + $0xd80] sm:$0xff]
  %v456 = vld [vmem:[%s1 + $0xd88] sm:$0xff]
  %v457 = vld [vmem:[%s1 + $0xd90] sm:$0xff]
  %v458 = vld [vmem:[%s1 + $0xd98] sm:$0xff]
  %v459 = vld [vmem:[%s1 + $0xda0] sm:$0xff]
  %v460 = vld [vmem:[%s1 + $0xda8] sm:$0xff]
  %v461 = vld [vmem:[%s1 + $0xdb0] sm:$0xff]
  %v462 = vld [vmem:[%s1 + $0xdb8] sm:$0xff]
  %v463 = vld [vmem:[%s1 + $0xdc0] sm:$0xff]
  %v464 = vld [vmem:[%s1 + $0xdc8] sm:$0xff]
  %v465 = vld [vmem:[%s1 + $0xdd0] sm:$0xff]
  %v466 = vld [vmem:[%s1 + $0xdd8] sm:$0xff]
  %v467 = vld [vmem:[%s1 + $0xde0] sm:$0xff]
  %v468 = vld [vmem:[%s1 + $0xde8] sm:$0xff]
  %v469 = vld [vmem:[%s1 + $0xdf0] sm:$0xff]
  %v470 = vld [vmem:[%s1 + $0xdf8] sm:$0xff]
  %v471 = vld [vmem:[%s1 + $0xe00] sm:$0xff]
  %v472 = vld [vmem:[%s1 + $0xe08] sm:$0xff]
  %v473 = vld [vmem:[%s1 + $0xe10] sm:$0xff]
  %v474 = vld [vmem:[%s1 + $0xe18] sm:$0xff]
  %v475 = vld [vmem:[%s1 + $0xe20] sm:$0xff]
  %v476 = vld [vmem:[%s1 + $0xe28] sm:$0xff]
  %v477 = vld [vmem:[%s1 + $0xe30] sm:$0xff]
  %v478 = vld [vmem:[%s1 + $0xe38] sm:$0xff]
  %v479 = vld [vmem:[%s1 + $0xe40] sm:$0xff]
  %v480 = vld [vmem:[%s1 + $0xe48] sm:$0xff]
  %v481 = vld [vmem:[%s1 + $0xe50] sm:$0xff]
  %v482 = vld [vmem:[%s1 + $0xe58] sm:$0xff]
  %v483 = vld [vmem:[%s1 + $0xe60] sm:$0xff]
  %v484 = vld [vmem:[%s1 + $0xe68] sm:$0xff]
  %v485 = vld [vmem:[%s1 + $0xe70] sm:$0xff]
  %v486 = vld [vmem:[%s1 + $0xe78] sm:$0xff]
  %v487 = vld [vmem:[%s1 + $0xe80] sm:$0xff]
  %v488 = vld [vmem:[%s1 + $0xe88] sm:$0xff]
  %v489 = vld [vmem:[%s1 + $0xe90] sm:$0xff]
  %v490 = vld [vmem:[%s1 + $0xe98] sm:$0xff]
  %v491 = vld [vmem:[%s1 + $0xea0] sm:$0xff]
  %v492 = vld [vmem:[%s1 + $0xea8] sm:$0xff]
  %v493 = vld [vmem:[%s1 + $0xeb0] sm:$0xff]
  %v494 = vld [vmem:[%s1 + $0xeb8] sm:$0xff]
  %v495 = vld [vmem:[%s1 + $0xec0] sm:$0xff]
  %v496 = vld [vmem:[%s1 + $0xec8] sm:$0xff]
  %v497 = vld [vmem:[%s1 + $0xed0] sm:$0xff]
  %v498 = vld [vmem:[%s1 + $0xed8] sm:$0xff]
  %v499 = vld [vmem:[%s1 + $0xee0] sm:$0xff]
  %v500 = vld [vmem:[%s1 + $0xee8] sm:$0xff]
  %v501 = vld [vmem:[%s1 + $0xef0] sm:$0xff]
  %v502 = vld [vmem:[%s1 + $0xef8] sm:$0xff]
  %v503 = vld [vmem:[%s1 + $0xf00] sm:$0xff]
  %v504 = vld [vmem:[%s1 + $0xf08] sm:$0xff]
  %v505 = vld [vmem:[%s1 + $0xf10] sm:$0xff]
  %v506 = vld [vmem:[%s1 + $0xf18] sm:$0xff]
  %v507 = vld [vmem:[%s1 + $0xf20] sm:$0xff]
  %v508 = vld [vmem:[%s1 + $0xf28] sm:$0xff]
  %v509 = vld [vmem:[%s1 + $0xf30] sm:$0xff]
  %v510 = vld [vmem:[%s1 + $0xf38] sm:$0xff]
  %v511 = vld [vmem:[%s1 + $0xf40] sm:$0xff]
  %v512 = vld [vmem:[%s1 + $0xf48] sm:$0xff]
  %v513 = vld [vmem:[%s1 + $0xf50] sm:$0xff]
  %v514 = vld [vmem:[%s1 + $0xf58] sm:$0xff]
  %v515 = vld [vmem:[%s1 + $0xf60] sm:$0xff]
  %v516 = vld [vmem:[%s1 + $0xf68] sm:$0xff]
  %v517 = vld [vmem:[%s1 + $0xf70] sm:$0xff]
  %v518 = vld [vmem:[%s1 + $0xf78] sm:$0xff]
  %v519 = vld [vmem:[%s1 + $0xf80] sm:$0xff]
  %v520 = vld [vmem:[%s1 + $0xf88] sm:$0xff]
  %v521 = vld [vmem:[%s1 + $0xf90] sm:$0xff]
  %v522 = vld [vmem:[%s1 + $0xf98] sm:$0xff]
  %v523 = vld [vmem:[%s1 + $0xfa0] sm:$0xff]
  %v524 = vld [vmem:[%s1 + $0xfa8] sm:$0xff]
  %v525 = vld [vmem:[%s1 + $0xfb0] sm:$0xff]
  %v526 = vld [vmem:[%s1 + $0xfb8] sm:$0xff]
  %v527 = vld [vmem:[%s1 + $0xfc0] sm:$0xff]
  %v528 = vld [vmem:[%s1 + $0xfc8] sm:$0xff]
  %v529 = vld [vmem:[%s1 + $0xfd0] sm:$0xff]
  %v530 = vld [vmem:[%s1 + $0xfd8] sm:$0xff]
  %v531 = vld [vmem:[%s1 + $0xfe0] sm:$0xff]
  %v532 = vld [vmem:[%s1 + $0xfe8] sm:$0xff]
  %v533 = vld [vmem:[%s1 + $0xff0] sm:$0xff]
  %v534 = vld [vmem:[%s1 + $0xff8] sm:$0xff]
  %v537 = vlaneseq
  %v538 = vshrl.u32 %v537, 7
  %v539 = vsub.s32 0, %v538
  %v540 = vrot.slane %v21, %v539
  %v541 = vlaneseq
  %v542 = vshrl.u32 %v541, 7
  %v543 = vsub.s32 1, %v542
  %v544 = vrot.slane %v21, %v543
  %v545 = vlaneseq
  %v546 = vshrl.u32 %v545, 7
  %v547 = vsub.s32 2, %v546
  %v548 = vrot.slane %v21, %v547
  %v549 = vlaneseq
  %v550 = vshrl.u32 %v549, 7
  %v551 = vsub.s32 3, %v550
  %v552 = vrot.slane %v21, %v551
  %v553 = vlaneseq
  %v554 = vshrl.u32 %v553, 7
  %v555 = vsub.s32 4, %v554
  %v556 = vrot.slane %v21, %v555
  %v557 = vlaneseq
  %v558 = vshrl.u32 %v557, 7
  %v559 = vsub.s32 5, %v558
  %v560 = vrot.slane %v21, %v559
  %v561 = vlaneseq
  %v562 = vshrl.u32 %v561, 7
  %v563 = vsub.s32 6, %v562
  %v564 = vrot.slane %v21, %v563
  %v565 = vlaneseq
  %v566 = vshrl.u32 %v565, 7
  %v567 = vsub.s32 7, %v566
  %v568 = vrot.slane %v21, %v567
  %v569 = vlaneseq
  %v570 = vshrl.u32 %v569, 7
  %v571 = vsub.s32 0, %v570
  %v572 = vrot.slane %v22, %v571
  %v573 = vlaneseq
  %v574 = vshrl.u32 %v573, 7
  %v575 = vsub.s32 1, %v574
  %v576 = vrot.slane %v22, %v575
  %v577 = vlaneseq
  %v578 = vshrl.u32 %v577, 7
  %v579 = vsub.s32 2, %v578
  %v580 = vrot.slane %v22, %v579
  %v581 = vlaneseq
  %v582 = vshrl.u32 %v581, 7
  %v583 = vsub.s32 3, %v582
  %v584 = vrot.slane %v22, %v583
  %v585 = vlaneseq
  %v586 = vshrl.u32 %v585, 7
  %v587 = vsub.s32 4, %v586
  %v588 = vrot.slane %v22, %v587
  %v589 = vlaneseq
  %v590 = vshrl.u32 %v589, 7
  %v591 = vsub.s32 5, %v590
  %v592 = vrot.slane %v22, %v591
  %v593 = vlaneseq
  %v594 = vshrl.u32 %v593, 7
  %v595 = vsub.s32 6, %v594
  %v596 = vrot.slane %v22, %v595
  %v597 = vlaneseq
  %v598 = vshrl.u32 %v597, 7
  %v599 = vsub.s32 7, %v598
  %v600 = vrot.slane %v22, %v599
  %v617 = vmul.f32 %v540, %v23
  %v618 = vmul.f32 %v544, %v24
  %v619 = vmul.f32 %v548, %v25
  %v620 = vmul.f32 %v552, %v26
  %v621 = vmul.f32 %v556, %v27
  %v622 = vmul.f32 %v560, %v28
  %v623 = vmul.f32 %v564, %v29
  %v624 = vmul.f32 %v568, %v30
  %v625 = vmul.f32 %v572, %v31
  %v626 = vmul.f32 %v576, %v32
  %v627 = vmul.f32 %v580, %v33
  %v628 = vmul.f32 %v584, %v34
  %v629 = vmul.f32 %v588, %v35
  %v630 = vmul.f32 %v592, %v36
  %v631 = vmul.f32 %v596, %v37
  %v632 = vmul.f32 %v600, %v38
  %v633 = vmul.f32 %v540, %v39
  %v634 = vmul.f32 %v544, %v40
  %v635 = vmul.f32 %v548, %v41
  %v636 = vmul.f32 %v552, %v42
  %v637 = vmul.f32 %v556, %v43
  %v638 = vmul.f32 %v560, %v44
  %v639 = vmul.f32 %v564, %v45
  %v640 = vmul.f32 %v568, %v46
  %v641 = vmul.f32 %v572, %v47
  %v642 = vmul.f32 %v576, %v48
  %v643 = vmul.f32 %v580, %v49
  %v644 = vmul.f32 %v584, %v50
  %v645 = vmul.f32 %v588, %v51
  %v646 = vmul.f32 %v592, %v52
  %v647 = vmul.f32 %v596, %v53
  %v648 = vmul.f32 %v600, %v54
  %v649 = vmul.f32 %v540, %v55
  %v650 = vmul.f32 %v544, %v56
  %v651 = vmul.f32 %v548, %v57
  %v652 = vmul.f32 %v552, %v58
  %v653 = vmul.f32 %v556, %v59
  %v654 = vmul.f32 %v560, %v60
  %v655 = vmul.f32 %v564, %v61
  %v656 = vmul.f32 %v568, %v62
  %v657 = vmul.f32 %v572, %v63
  %v658 = vmul.f32 %v576, %v64
  %v659 = vmul.f32 %v580, %v65
  %v660 = vmul.f32 %v584, %v66
  %v661 = vmul.f32 %v588, %v67
  %v662 = vmul.f32 %v592, %v68
  %v663 = vmul.f32 %v596, %v69
  %v664 = vmul.f32 %v600, %v70
  %v665 = vmul.f32 %v540, %v71
  %v666 = vmul.f32 %v544, %v72
  %v667 = vmul.f32 %v548, %v73
  %v668 = vmul.f32 %v552, %v74
  %v669 = vmul.f32 %v556, %v75
  %v670 = vmul.f32 %v560, %v76
  %v671 = vmul.f32 %v564, %v77
  %v672 = vmul.f32 %v568, %v78
  %v673 = vmul.f32 %v572, %v79
  %v674 = vmul.f32 %v576, %v80
  %v675 = vmul.f32 %v580, %v81
  %v676 = vmul.f32 %v584, %v82
  %v677 = vmul.f32 %v588, %v83
  %v678 = vmul.f32 %v592, %v84
  %v679 = vmul.f32 %v596, %v85
  %v680 = vmul.f32 %v600, %v86
  %v681 = vmul.f32 %v540, %v87
  %v682 = vmul.f32 %v544, %v88
  %v683 = vmul.f32 %v548, %v89
  %v684 = vmul.f32 %v552, %v90
  %v685 = vmul.f32 %v556, %v91
  %v686 = vmul.f32 %v560, %v92
  %v687 = vmul.f32 %v564, %v93
  %v688 = vmul.f32 %v568, %v94
  %v689 = vmul.f32 %v572, %v95
  %v690 = vmul.f32 %v576, %v96
  %v691 = vmul.f32 %v580, %v97
  %v692 = vmul.f32 %v584, %v98
  %v693 = vmul.f32 %v588, %v99
  %v694 = vmul.f32 %v592, %v100
  %v695 = vmul.f32 %v596, %v101
  %v696 = vmul.f32 %v600, %v102
  %v697 = vmul.f32 %v540, %v103
  %v698 = vmul.f32 %v544, %v104
  %v699 = vmul.f32 %v548, %v105
  %v700 = vmul.f32 %v552, %v106
  %v701 = vmul.f32 %v556, %v107
  %v702 = vmul.f32 %v560, %v108
  %v703 = vmul.f32 %v564, %v109
  %v704 = vmul.f32 %v568, %v110
  %v705 = vmul.f32 %v572, %v111
  %v706 = vmul.f32 %v576, %v112
  %v707 = vmul.f32 %v580, %v113
  %v708 = vmul.f32 %v584, %v114
  %v709 = vmul.f32 %v588, %v115
  %v710 = vmul.f32 %v592, %v116
  %v711 = vmul.f32 %v596, %v117
  %v712 = vmul.f32 %v600, %v118
  %v713 = vmul.f32 %v540, %v119
  %v714 = vmul.f32 %v544, %v120
  %v715 = vmul.f32 %v548, %v121
  %v716 = vmul.f32 %v552, %v122
  %v717 = vmul.f32 %v556, %v123
  %v718 = vmul.f32 %v560, %v124
  %v719 = vmul.f32 %v564, %v125
  %v720 = vmul.f32 %v568, %v126
  %v721 = vmul.f32 %v572, %v127
  %v722 = vmul.f32 %v576, %v128
  %v723 = vmul.f32 %v580, %v129
  %v724 = vmul.f32 %v584, %v130
  %v725 = vmul.f32 %v588, %v131
  %v726 = vmul.f32 %v592, %v132
  %v727 = vmul.f32 %v596, %v133
  %v728 = vmul.f32 %v600, %v134
  %v729 = vmul.f32 %v540, %v135
  %v730 = vmul.f32 %v544, %v136
  %v731 = vmul.f32 %v548, %v137
  %v732 = vmul.f32 %v552, %v138
  %v733 = vmul.f32 %v556, %v139
  %v734 = vmul.f32 %v560, %v140
  %v735 = vmul.f32 %v564, %v141
  %v736 = vmul.f32 %v568, %v142
  %v737 = vmul.f32 %v572, %v143
  %v738 = vmul.f32 %v576, %v144
  %v739 = vmul.f32 %v580, %v145
  %v740 = vmul.f32 %v584, %v146
  %v741 = vmul.f32 %v588, %v147
  %v742 = vmul.f32 %v592, %v148
  %v743 = vmul.f32 %v596, %v149
  %v744 = vmul.f32 %v600, %v150
  %v745 = vmul.f32 %v540, %v151
  %v746 = vmul.f32 %v544, %v152
  %v747 = vmul.f32 %v548, %v153
  %v748 = vmul.f32 %v552, %v154
  %v749 = vmul.f32 %v556, %v155
  %v750 = vmul.f32 %v560, %v156
  %v751 = vmul.f32 %v564, %v157
  %v752 = vmul.f32 %v568, %v158
  %v753 = vmul.f32 %v572, %v159
  %v754 = vmul.f32 %v576, %v160
  %v755 = vmul.f32 %v580, %v161
  %v756 = vmul.f32 %v584, %v162
  %v757 = vmul.f32 %v588, %v163
  %v758 = vmul.f32 %v592, %v164
  %v759 = vmul.f32 %v596, %v165
  %v760 = vmul.f32 %v600, %v166
  %v761 = vmul.f32 %v540, %v167
  %v762 = vmul.f32 %v544, %v168
  %v763 = vmul.f32 %v548, %v169
  %v764 = vmul.f32 %v552, %v170
  %v765 = vmul.f32 %v556, %v171
  %v766 = vmul.f32 %v560, %v172
  %v767 = vmul.f32 %v564, %v173
  %v768 = vmul.f32 %v568, %v174
  %v769 = vmul.f32 %v572, %v175
  %v770 = vmul.f32 %v576, %v176
  %v771 = vmul.f32 %v580, %v177
  %v772 = vmul.f32 %v584, %v178
  %v773 = vmul.f32 %v588, %v179
  %v774 = vmul.f32 %v592, %v180
  %v775 = vmul.f32 %v596, %v181
  %v776 = vmul.f32 %v600, %v182
  %v777 = vmul.f32 %v540, %v183
  %v778 = vmul.f32 %v544, %v184
  %v779 = vmul.f32 %v548, %v185
  %v780 = vmul.f32 %v552, %v186
  %v781 = vmul.f32 %v556, %v187
  %v782 = vmul.f32 %v560, %v188
  %v783 = vmul.f32 %v564, %v189
  %v784 = vmul.f32 %v568, %v190
  %v785 = vmul.f32 %v572, %v191
  %v786 = vmul.f32 %v576, %v192
  %v787 = vmul.f32 %v580, %v193
  %v788 = vmul.f32 %v584, %v194
  %v789 = vmul.f32 %v588, %v195
  %v790 = vmul.f32 %v592, %v196
  %v791 = vmul.f32 %v596, %v197
  %v792 = vmul.f32 %v600, %v198
  %v793 = vmul.f32 %v540, %v199
  %v794 = vmul.f32 %v544, %v200
  %v795 = vmul.f32 %v548, %v201
  %v796 = vmul.f32 %v552, %v202
  %v797 = vmul.f32 %v556, %v203
  %v798 = vmul.f32 %v560, %v204
  %v799 = vmul.f32 %v564, %v205
  %v800 = vmul.f32 %v568, %v206
  %v801 = vmul.f32 %v572, %v207
  %v802 = vmul.f32 %v576, %v208
  %v803 = vmul.f32 %v580, %v209
  %v804 = vmul.f32 %v584, %v210
  %v805 = vmul.f32 %v588, %v211
  %v806 = vmul.f32 %v592, %v212
  %v807 = vmul.f32 %v596, %v213
  %v808 = vmul.f32 %v600, %v214
  %v809 = vmul.f32 %v540, %v215
  %v810 = vmul.f32 %v544, %v216
  %v811 = vmul.f32 %v548, %v217
  %v812 = vmul.f32 %v552, %v218
  %v813 = vmul.f32 %v556, %v219
  %v814 = vmul.f32 %v560, %v220
  %v815 = vmul.f32 %v564, %v221
  %v816 = vmul.f32 %v568, %v222
  %v817 = vmul.f32 %v572, %v223
  %v818 = vmul.f32 %v576, %v224
  %v819 = vmul.f32 %v580, %v225
  %v820 = vmul.f32 %v584, %v226
  %v821 = vmul.f32 %v588, %v227
  %v822 = vmul.f32 %v592, %v228
  %v823 = vmul.f32 %v596, %v229
  %v824 = vmul.f32 %v600, %v230
  %v825 = vmul.f32 %v540, %v231
  %v826 = vmul.f32 %v544, %v232
  %v827 = vmul.f32 %v548, %v233
  %v828 = vmul.f32 %v552, %v234
  %v829 = vmul.f32 %v556, %v235
  %v830 = vmul.f32 %v560, %v236
  %v831 = vmul.f32 %v564, %v237
  %v832 = vmul.f32 %v568, %v238
  %v833 = vmul.f32 %v572, %v239
  %v834 = vmul.f32 %v576, %v240
  %v835 = vmul.f32 %v580, %v241
  %v836 = vmul.f32 %v584, %v242
  %v837 = vmul.f32 %v588, %v243
  %v838 = vmul.f32 %v592, %v244
  %v839 = vmul.f32 %v596, %v245
  %v840 = vmul.f32 %v600, %v246
  %v841 = vmul.f32 %v540, %v247
  %v842 = vmul.f32 %v544, %v248
  %v843 = vmul.f32 %v548, %v249
  %v844 = vmul.f32 %v552, %v250
  %v845 = vmul.f32 %v556, %v251
  %v846 = vmul.f32 %v560, %v252
  %v847 = vmul.f32 %v564, %v253
  %v848 = vmul.f32 %v568, %v254
  %v849 = vmul.f32 %v572, %v255
  %v850 = vmul.f32 %v576, %v256
  %v851 = vmul.f32 %v580, %v257
  %v852 = vmul.f32 %v584, %v258
  %v853 = vmul.f32 %v588, %v259
  %v854 = vmul.f32 %v592, %v260
  %v855 = vmul.f32 %v596, %v261
  %v856 = vmul.f32 %v600, %v262
  %v857 = vmul.f32 %v540, %v263
  %v858 = vmul.f32 %v544, %v264
  %v859 = vmul.f32 %v548, %v265
  %v860 = vmul.f32 %v552, %v266
  %v861 = vmul.f32 %v556, %v267
  %v862 = vmul.f32 %v560, %v268
  %v863 = vmul.f32 %v564, %v269
  %v864 = vmul.f32 %v568, %v270
  %v865 = vmul.f32 %v572, %v271
  %v866 = vmul.f32 %v576, %v272
  %v867 = vmul.f32 %v580, %v273
  %v868 = vmul.f32 %v584, %v274
  %v869 = vmul.f32 %v588, %v275
  %v870 = vmul.f32 %v592, %v276
  %v871 = vmul.f32 %v596, %v277
  %v872 = vmul.f32 %v600, %v278
  %v873 = vmul.f32 %v540, %v279
  %v874 = vmul.f32 %v544, %v280
  %v875 = vmul.f32 %v548, %v281
  %v876 = vmul.f32 %v552, %v282
  %v877 = vmul.f32 %v556, %v283
  %v878 = vmul.f32 %v560, %v284
  %v879 = vmul.f32 %v564, %v285
  %v880 = vmul.f32 %v568, %v286
  %v881 = vmul.f32 %v572, %v287
  %v882 = vmul.f32 %v576, %v288
  %v883 = vmul.f32 %v580, %v289
  %v884 = vmul.f32 %v584, %v290
  %v885 = vmul.f32 %v588, %v291
  %v886 = vmul.f32 %v592, %v292
  %v887 = vmul.f32 %v596, %v293
  %v888 = vmul.f32 %v600, %v294
  %v889 = vmul.f32 %v540, %v295
  %v890 = vmul.f32 %v544, %v296
  %v891 = vmul.f32 %v548, %v297
  %v892 = vmul.f32 %v552, %v298
  %v893 = vmul.f32 %v556, %v299
  %v894 = vmul.f32 %v560, %v300
  %v895 = vmul.f32 %v564, %v301
  %v896 = vmul.f32 %v568, %v302
  %v897 = vmul.f32 %v572, %v303
  %v898 = vmul.f32 %v576, %v304
  %v899 = vmul.f32 %v580, %v305
  %v900 = vmul.f32 %v584, %v306
  %v901 = vmul.f32 %v588, %v307
  %v902 = vmul.f32 %v592, %v308
  %v903 = vmul.f32 %v596, %v309
  %v904 = vmul.f32 %v600, %v310
  %v905 = vmul.f32 %v540, %v311
  %v906 = vmul.f32 %v544, %v312
  %v907 = vmul.f32 %v548, %v313
  %v908 = vmul.f32 %v552, %v314
  %v909 = vmul.f32 %v556, %v315
  %v910 = vmul.f32 %v560, %v316
  %v911 = vmul.f32 %v564, %v317
  %v912 = vmul.f32 %v568, %v318
  %v913 = vmul.f32 %v572, %v319
  %v914 = vmul.f32 %v576, %v320
  %v915 = vmul.f32 %v580, %v321
  %v916 = vmul.f32 %v584, %v322
  %v917 = vmul.f32 %v588, %v323
  %v918 = vmul.f32 %v592, %v324
  %v919 = vmul.f32 %v596, %v325
  %v920 = vmul.f32 %v600, %v326
  %v921 = vmul.f32 %v540, %v327
  %v922 = vmul.f32 %v544, %v328
  %v923 = vmul.f32 %v548, %v329
  %v924 = vmul.f32 %v552, %v330
  %v925 = vmul.f32 %v556, %v331
  %v926 = vmul.f32 %v560, %v332
  %v927 = vmul.f32 %v564, %v333
  %v928 = vmul.f32 %v568, %v334
  %v929 = vmul.f32 %v572, %v335
  %v930 = vmul.f32 %v576, %v336
  %v931 = vmul.f32 %v580, %v337
  %v932 = vmul.f32 %v584, %v338
  %v933 = vmul.f32 %v588, %v339
  %v934 = vmul.f32 %v592, %v340
  %v935 = vmul.f32 %v596, %v341
  %v936 = vmul.f32 %v600, %v342
  %v937 = vmul.f32 %v540, %v343
  %v938 = vmul.f32 %v544, %v344
  %v939 = vmul.f32 %v548, %v345
  %v940 = vmul.f32 %v552, %v346
  %v941 = vmul.f32 %v556, %v347
  %v942 = vmul.f32 %v560, %v348
  %v943 = vmul.f32 %v564, %v349
  %v944 = vmul.f32 %v568, %v350
  %v945 = vmul.f32 %v572, %v351
  %v946 = vmul.f32 %v576, %v352
  %v947 = vmul.f32 %v580, %v353
  %v948 = vmul.f32 %v584, %v354
  %v949 = vmul.f32 %v588, %v355
  %v950 = vmul.f32 %v592, %v356
  %v951 = vmul.f32 %v596, %v357
  %v952 = vmul.f32 %v600, %v358
  %v953 = vmul.f32 %v540, %v359
  %v954 = vmul.f32 %v544, %v360
  %v955 = vmul.f32 %v548, %v361
  %v956 = vmul.f32 %v552, %v362
  %v957 = vmul.f32 %v556, %v363
  %v958 = vmul.f32 %v560, %v364
  %v959 = vmul.f32 %v564, %v365
  %v960 = vmul.f32 %v568, %v366
  %v961 = vmul.f32 %v572, %v367
  %v962 = vmul.f32 %v576, %v368
  %v963 = vmul.f32 %v580, %v369
  %v964 = vmul.f32 %v584, %v370
  %v965 = vmul.f32 %v588, %v371
  %v966 = vmul.f32 %v592, %v372
  %v967 = vmul.f32 %v596, %v373
  %v968 = vmul.f32 %v600, %v374
  %v969 = vmul.f32 %v540, %v375
  %v970 = vmul.f32 %v544, %v376
  %v971 = vmul.f32 %v548, %v377
  %v972 = vmul.f32 %v552, %v378
  %v973 = vmul.f32 %v556, %v379
  %v974 = vmul.f32 %v560, %v380
  %v975 = vmul.f32 %v564, %v381
  %v976 = vmul.f32 %v568, %v382
  %v977 = vmul.f32 %v572, %v383
  %v978 = vmul.f32 %v576, %v384
  %v979 = vmul.f32 %v580, %v385
  %v980 = vmul.f32 %v584, %v386
  %v981 = vmul.f32 %v588, %v387
  %v982 = vmul.f32 %v592, %v388
  %v983 = vmul.f32 %v596, %v389
  %v984 = vmul.f32 %v600, %v390
  %v985 = vmul.f32 %v540, %v391
  %v986 = vmul.f32 %v544, %v392
  %v987 = vmul.f32 %v548, %v393
  %v988 = vmul.f32 %v552, %v394
  %v989 = vmul.f32 %v556, %v395
  %v990 = vmul.f32 %v560, %v396
  %v991 = vmul.f32 %v564, %v397
  %v992 = vmul.f32 %v568, %v398
  %v993 = vmul.f32 %v572, %v399
  %v994 = vmul.f32 %v576, %v400
  %v995 = vmul.f32 %v580, %v401
  %v996 = vmul.f32 %v584, %v402
  %v997 = vmul.f32 %v588, %v403
  %v998 = vmul.f32 %v592, %v404
  %v999 = vmul.f32 %v596, %v405
  %v1000 = vmul.f32 %v600, %v406
  %v1001 = vmul.f32 %v540, %v407
  %v1002 = vmul.f32 %v544, %v408
  %v1003 = vmul.f32 %v548, %v409
  %v1004 = vmul.f32 %v552, %v410
  %v1005 = vmul.f32 %v556, %v411
  %v1006 = vmul.f32 %v560, %v412
  %v1007 = vmul.f32 %v564, %v413
  %v1008 = vmul.f32 %v568, %v414
  %v1009 = vmul.f32 %v572, %v415
  %v1010 = vmul.f32 %v576, %v416
  %v1011 = vmul.f32 %v580, %v417
  %v1012 = vmul.f32 %v584, %v418
  %v1013 = vmul.f32 %v588, %v419
  %v1014 = vmul.f32 %v592, %v420
  %v1015 = vmul.f32 %v596, %v421
  %v1016 = vmul.f32 %v600, %v422
  %v1017 = vmul.f32 %v540, %v423
  %v1018 = vmul.f32 %v544, %v424
  %v1019 = vmul.f32 %v548, %v425
  %v1020 = vmul.f32 %v552, %v426
  %v1021 = vmul.f32 %v556, %v427
  %v1022 = vmul.f32 %v560, %v428
  %v1023 = vmul.f32 %v564, %v429
  %v1024 = vmul.f32 %v568, %v430
  %v1025 = vmul.f32 %v572, %v431
  %v1026 = vmul.f32 %v576, %v432
  %v1027 = vmul.f32 %v580, %v433
  %v1028 = vmul.f32 %v584, %v434
  %v1029 = vmul.f32 %v588, %v435
  %v1030 = vmul.f32 %v592, %v436
  %v1031 = vmul.f32 %v596, %v437
  %v1032 = vmul.f32 %v600, %v438
  %v1033 = vmul.f32 %v540, %v439
  %v1034 = vmul.f32 %v544, %v440
  %v1035 = vmul.f32 %v548, %v441
  %v1036 = vmul.f32 %v552, %v442
  %v1037 = vmul.f32 %v556, %v443
  %v1038 = vmul.f32 %v560, %v444
  %v1039 = vmul.f32 %v564, %v445
  %v1040 = vmul.f32 %v568, %v446
  %v1041 = vmul.f32 %v572, %v447
  %v1042 = vmul.f32 %v576, %v448
  %v1043 = vmul.f32 %v580, %v449
  %v1044 = vmul.f32 %v584, %v450
  %v1045 = vmul.f32 %v588, %v451
  %v1046 = vmul.f32 %v592, %v452
  %v1047 = vmul.f32 %v596, %v453
  %v1048 = vmul.f32 %v600, %v454
  %v1049 = vmul.f32 %v540, %v455
  %v1050 = vmul.f32 %v544, %v456
  %v1051 = vmul.f32 %v548, %v457
  %v1052 = vmul.f32 %v552, %v458
  %v1053 = vmul.f32 %v556, %v459
  %v1054 = vmul.f32 %v560, %v460
  %v1055 = vmul.f32 %v564, %v461
  %v1056 = vmul.f32 %v568, %v462
  %v1057 = vmul.f32 %v572, %v463
  %v1058 = vmul.f32 %v576, %v464
  %v1059 = vmul.f32 %v580, %v465
  %v1060 = vmul.f32 %v584, %v466
  %v1061 = vmul.f32 %v588, %v467
  %v1062 = vmul.f32 %v592, %v468
  %v1063 = vmul.f32 %v596, %v469
  %v1064 = vmul.f32 %v600, %v470
  %v1065 = vmul.f32 %v540, %v471
  %v1066 = vmul.f32 %v544, %v472
  %v1067 = vmul.f32 %v548, %v473
  %v1068 = vmul.f32 %v552, %v474
  %v1069 = vmul.f32 %v556, %v475
  %v1070 = vmul.f32 %v560, %v476
  %v1071 = vmul.f32 %v564, %v477
  %v1072 = vmul.f32 %v568, %v478
  %v1073 = vmul.f32 %v572, %v479
  %v1074 = vmul.f32 %v576, %v480
  %v1075 = vmul.f32 %v580, %v481
  %v1076 = vmul.f32 %v584, %v482
  %v1077 = vmul.f32 %v588, %v483
  %v1078 = vmul.f32 %v592, %v484
  %v1079 = vmul.f32 %v596, %v485
  %v1080 = vmul.f32 %v600, %v486
  %v1081 = vmul.f32 %v540, %v487
  %v1082 = vmul.f32 %v544, %v488
  %v1083 = vmul.f32 %v548, %v489
  %v1084 = vmul.f32 %v552, %v490
  %v1085 = vmul.f32 %v556, %v491
  %v1086 = vmul.f32 %v560, %v492
  %v1087 = vmul.f32 %v564, %v493
  %v1088 = vmul.f32 %v568, %v494
  %v1089 = vmul.f32 %v572, %v495
  %v1090 = vmul.f32 %v576, %v496
  %v1091 = vmul.f32 %v580, %v497
  %v1092 = vmul.f32 %v584, %v498
  %v1093 = vmul.f32 %v588, %v499
  %v1094 = vmul.f32 %v592, %v500
  %v1095 = vmul.f32 %v596, %v501
  %v1096 = vmul.f32 %v600, %v502
  %v1097 = vmul.f32 %v540, %v503
  %v1098 = vmul.f32 %v544, %v504
  %v1099 = vmul.f32 %v548, %v505
  %v1100 = vmul.f32 %v552, %v506
  %v1101 = vmul.f32 %v556, %v507
  %v1102 = vmul.f32 %v560, %v508
  %v1103 = vmul.f32 %v564, %v509
  %v1104 = vmul.f32 %v568, %v510
  %v1105 = vmul.f32 %v572, %v511
  %v1106 = vmul.f32 %v576, %v512
  %v1107 = vmul.f32 %v580, %v513
  %v1108 = vmul.f32 %v584, %v514
  %v1109 = vmul.f32 %v588, %v515
  %v1110 = vmul.f32 %v592, %v516
  %v1111 = vmul.f32 %v596, %v517
  %v1112 = vmul.f32 %v600, %v518
  %v1113 = vmul.f32 %v540, %v519
  %v1114 = vmul.f32 %v544, %v520
  %v1115 = vmul.f32 %v548, %v521
  %v1116 = vmul.f32 %v552, %v522
  %v1117 = vmul.f32 %v556, %v523
  %v1118 = vmul.f32 %v560, %v524
  %v1119 = vmul.f32 %v564, %v525
  %v1120 = vmul.f32 %v568, %v526
  %v1121 = vmul.f32 %v572, %v527
  %v1122 = vmul.f32 %v576, %v528
  %v1123 = vmul.f32 %v580, %v529
  %v1124 = vmul.f32 %v584, %v530
  %v1125 = vmul.f32 %v588, %v531
  %v1126 = vmul.f32 %v592, %v532
  %v1127 = vmul.f32 %v596, %v533
  %v1128 = vmul.f32 %v600, %v534
  %v1129 = vld [vmem:[%s2] sm:$0xff]
  %v1130 = vld [vmem:[%s2 + $0x8] sm:$0xff]
  %v1131 = vld [vmem:[%s2 + $0x10] sm:$0xff]
  %v1132 = vld [vmem:[%s2 + $0x18] sm:$0xff]
  %v1133 = vld [vmem:[%s2 + $0x20] sm:$0xff]
  %v1134 = vld [vmem:[%s2 + $0x28] sm:$0xff]
  %v1135 = vld [vmem:[%s2 + $0x30] sm:$0xff]
  %v1136 = vld [vmem:[%s2 + $0x38] sm:$0xff]
  %v1137 = vld [vmem:[%s2 + $0x40] sm:$0xff]
  %v1138 = vld [vmem:[%s2 + $0x48] sm:$0xff]
  %v1139 = vld [vmem:[%s2 + $0x50] sm:$0xff]
  %v1140 = vld [vmem:[%s2 + $0x58] sm:$0xff]
  %v1141 = vld [vmem:[%s2 + $0x60] sm:$0xff]
  %v1142 = vld [vmem:[%s2 + $0x68] sm:$0xff]
  %v1143 = vld [vmem:[%s2 + $0x70] sm:$0xff]
  %v1144 = vld [vmem:[%s2 + $0x78] sm:$0xff]
  %v1145 = vld [vmem:[%s2 + $0x80] sm:$0xff]
  %v1146 = vld [vmem:[%s2 + $0x88] sm:$0xff]
  %v1147 = vld [vmem:[%s2 + $0x90] sm:$0xff]
  %v1148 = vld [vmem:[%s2 + $0x98] sm:$0xff]
  %v1149 = vld [vmem:[%s2 + $0xa0] sm:$0xff]
  %v1150 = vld [vmem:[%s2 + $0xa8] sm:$0xff]
  %v1151 = vld [vmem:[%s2 + $0xb0] sm:$0xff]
  %v1152 = vld [vmem:[%s2 + $0xb8] sm:$0xff]
  %v1153 = vld [vmem:[%s2 + $0xc0] sm:$0xff]
  %v1154 = vld [vmem:[%s2 + $0xc8] sm:$0xff]
  %v1155 = vld [vmem:[%s2 + $0xd0] sm:$0xff]
  %v1156 = vld [vmem:[%s2 + $0xd8] sm:$0xff]
  %v1157 = vld [vmem:[%s2 + $0xe0] sm:$0xff]
  %v1158 = vld [vmem:[%s2 + $0xe8] sm:$0xff]
  %v1159 = vld [vmem:[%s2 + $0xf0] sm:$0xff]
  %v1160 = vld [vmem:[%s2 + $0xf8] sm:$0xff]
  %v1161 = vld [vmem:[%s2 + $0x100] sm:$0xff]
  %v1162 = vld [vmem:[%s2 + $0x108] sm:$0xff]
  %v1163 = vld [vmem:[%s2 + $0x110] sm:$0xff]
  %v1164 = vld [vmem:[%s2 + $0x118] sm:$0xff]
  %v1165 = vld [vmem:[%s2 + $0x120] sm:$0xff]
  %v1166 = vld [vmem:[%s2 + $0x128] sm:$0xff]
  %v1167 = vld [vmem:[%s2 + $0x130] sm:$0xff]
  %v1168 = vld [vmem:[%s2 + $0x138] sm:$0xff]
  %v1169 = vld [vmem:[%s2 + $0x140] sm:$0xff]
  %v1170 = vld [vmem:[%s2 + $0x148] sm:$0xff]
  %v1171 = vld [vmem:[%s2 + $0x150] sm:$0xff]
  %v1172 = vld [vmem:[%s2 + $0x158] sm:$0xff]
  %v1173 = vld [vmem:[%s2 + $0x160] sm:$0xff]
  %v1174 = vld [vmem:[%s2 + $0x168] sm:$0xff]
  %v1175 = vld [vmem:[%s2 + $0x170] sm:$0xff]
  %v1176 = vld [vmem:[%s2 + $0x178] sm:$0xff]
  %v1177 = vld [vmem:[%s2 + $0x180] sm:$0xff]
  %v1178 = vld [vmem:[%s2 + $0x188] sm:$0xff]
  %v1179 = vld [vmem:[%s2 + $0x190] sm:$0xff]
  %v1180 = vld [vmem:[%s2 + $0x198] sm:$0xff]
  %v1181 = vld [vmem:[%s2 + $0x1a0] sm:$0xff]
  %v1182 = vld [vmem:[%s2 + $0x1a8] sm:$0xff]
  %v1183 = vld [vmem:[%s2 + $0x1b0] sm:$0xff]
  %v1184 = vld [vmem:[%s2 + $0x1b8] sm:$0xff]
  %v1185 = vld [vmem:[%s2 + $0x1c0] sm:$0xff]
  %v1186 = vld [vmem:[%s2 + $0x1c8] sm:$0xff]
  %v1187 = vld [vmem:[%s2 + $0x1d0] sm:$0xff]
  %v1188 = vld [vmem:[%s2 + $0x1d8] sm:$0xff]
  %v1189 = vld [vmem:[%s2 + $0x1e0] sm:$0xff]
  %v1190 = vld [vmem:[%s2 + $0x1e8] sm:$0xff]
  %v1191 = vld [vmem:[%s2 + $0x1f0] sm:$0xff]
  %v1192 = vld [vmem:[%s2 + $0x1f8] sm:$0xff]
  %v1193 = vld [vmem:[%s2 + $0x200] sm:$0xff]
  %v1194 = vld [vmem:[%s2 + $0x208] sm:$0xff]
  %v1195 = vld [vmem:[%s2 + $0x210] sm:$0xff]
  %v1196 = vld [vmem:[%s2 + $0x218] sm:$0xff]
  %v1197 = vld [vmem:[%s2 + $0x220] sm:$0xff]
  %v1198 = vld [vmem:[%s2 + $0x228] sm:$0xff]
  %v1199 = vld [vmem:[%s2 + $0x230] sm:$0xff]
  %v1200 = vld [vmem:[%s2 + $0x238] sm:$0xff]
  %v1201 = vld [vmem:[%s2 + $0x240] sm:$0xff]
  %v1202 = vld [vmem:[%s2 + $0x248] sm:$0xff]
  %v1203 = vld [vmem:[%s2 + $0x250] sm:$0xff]
  %v1204 = vld [vmem:[%s2 + $0x258] sm:$0xff]
  %v1205 = vld [vmem:[%s2 + $0x260] sm:$0xff]
  %v1206 = vld [vmem:[%s2 + $0x268] sm:$0xff]
  %v1207 = vld [vmem:[%s2 + $0x270] sm:$0xff]
  %v1208 = vld [vmem:[%s2 + $0x278] sm:$0xff]
  %v1209 = vld [vmem:[%s2 + $0x280] sm:$0xff]
  %v1210 = vld [vmem:[%s2 + $0x288] sm:$0xff]
  %v1211 = vld [vmem:[%s2 + $0x290] sm:$0xff]
  %v1212 = vld [vmem:[%s2 + $0x298] sm:$0xff]
  %v1213 = vld [vmem:[%s2 + $0x2a0] sm:$0xff]
  %v1214 = vld [vmem:[%s2 + $0x2a8] sm:$0xff]
  %v1215 = vld [vmem:[%s2 + $0x2b0] sm:$0xff]
  %v1216 = vld [vmem:[%s2 + $0x2b8] sm:$0xff]
  %v1217 = vld [vmem:[%s2 + $0x2c0] sm:$0xff]
  %v1218 = vld [vmem:[%s2 + $0x2c8] sm:$0xff]
  %v1219 = vld [vmem:[%s2 + $0x2d0] sm:$0xff]
  %v1220 = vld [vmem:[%s2 + $0x2d8] sm:$0xff]
  %v1221 = vld [vmem:[%s2 + $0x2e0] sm:$0xff]
  %v1222 = vld [vmem:[%s2 + $0x2e8] sm:$0xff]
  %v1223 = vld [vmem:[%s2 + $0x2f0] sm:$0xff]
  %v1224 = vld [vmem:[%s2 + $0x2f8] sm:$0xff]
  %v1225 = vld [vmem:[%s2 + $0x300] sm:$0xff]
  %v1226 = vld [vmem:[%s2 + $0x308] sm:$0xff]
  %v1227 = vld [vmem:[%s2 + $0x310] sm:$0xff]
  %v1228 = vld [vmem:[%s2 + $0x318] sm:$0xff]
  %v1229 = vld [vmem:[%s2 + $0x320] sm:$0xff]
  %v1230 = vld [vmem:[%s2 + $0x328] sm:$0xff]
  %v1231 = vld [vmem:[%s2 + $0x330] sm:$0xff]
  %v1232 = vld [vmem:[%s2 + $0x338] sm:$0xff]
  %v1233 = vld [vmem:[%s2 + $0x340] sm:$0xff]
  %v1234 = vld [vmem:[%s2 + $0x348] sm:$0xff]
  %v1235 = vld [vmem:[%s2 + $0x350] sm:$0xff]
  %v1236 = vld [vmem:[%s2 + $0x358] sm:$0xff]
  %v1237 = vld [vmem:[%s2 + $0x360] sm:$0xff]
  %v1238 = vld [vmem:[%s2 + $0x368] sm:$0xff]
  %v1239 = vld [vmem:[%s2 + $0x370] sm:$0xff]
  %v1240 = vld [vmem:[%s2 + $0x378] sm:$0xff]
  %v1241 = vld [vmem:[%s2 + $0x380] sm:$0xff]
  %v1242 = vld [vmem:[%s2 + $0x388] sm:$0xff]
  %v1243 = vld [vmem:[%s2 + $0x390] sm:$0xff]
  %v1244 = vld [vmem:[%s2 + $0x398] sm:$0xff]
  %v1245 = vld [vmem:[%s2 + $0x3a0] sm:$0xff]
  %v1246 = vld [vmem:[%s2 + $0x3a8] sm:$0xff]
  %v1247 = vld [vmem:[%s2 + $0x3b0] sm:$0xff]
  %v1248 = vld [vmem:[%s2 + $0x3b8] sm:$0xff]
  %v1249 = vld [vmem:[%s2 + $0x3c0] sm:$0xff]
  %v1250 = vld [vmem:[%s2 + $0x3c8] sm:$0xff]
  %v1251 = vld [vmem:[%s2 + $0x3d0] sm:$0xff]
  %v1252 = vld [vmem:[%s2 + $0x3d8] sm:$0xff]
  %v1253 = vld [vmem:[%s2 + $0x3e0] sm:$0xff]
  %v1254 = vld [vmem:[%s2 + $0x3e8] sm:$0xff]
  %v1255 = vld [vmem:[%s2 + $0x3f0] sm:$0xff]
  %v1256 = vld [vmem:[%s2 + $0x3f8] sm:$0xff]
  %v1257 = vld [vmem:[%s2 + $0x400] sm:$0xff]
  %v1258 = vld [vmem:[%s2 + $0x408] sm:$0xff]
  %v1259 = vld [vmem:[%s2 + $0x410] sm:$0xff]
  %v1260 = vld [vmem:[%s2 + $0x418] sm:$0xff]
  %v1261 = vld [vmem:[%s2 + $0x420] sm:$0xff]
  %v1262 = vld [vmem:[%s2 + $0x428] sm:$0xff]
  %v1263 = vld [vmem:[%s2 + $0x430] sm:$0xff]
  %v1264 = vld [vmem:[%s2 + $0x438] sm:$0xff]
  %v1265 = vld [vmem:[%s2 + $0x440] sm:$0xff]
  %v1266 = vld [vmem:[%s2 + $0x448] sm:$0xff]
  %v1267 = vld [vmem:[%s2 + $0x450] sm:$0xff]
  %v1268 = vld [vmem:[%s2 + $0x458] sm:$0xff]
  %v1269 = vld [vmem:[%s2 + $0x460] sm:$0xff]
  %v1270 = vld [vmem:[%s2 + $0x468] sm:$0xff]
  %v1271 = vld [vmem:[%s2 + $0x470] sm:$0xff]
  %v1272 = vld [vmem:[%s2 + $0x478] sm:$0xff]
  %v1273 = vld [vmem:[%s2 + $0x480] sm:$0xff]
  %v1274 = vld [vmem:[%s2 + $0x488] sm:$0xff]
  %v1275 = vld [vmem:[%s2 + $0x490] sm:$0xff]
  %v1276 = vld [vmem:[%s2 + $0x498] sm:$0xff]
  %v1277 = vld [vmem:[%s2 + $0x4a0] sm:$0xff]
  %v1278 = vld [vmem:[%s2 + $0x4a8] sm:$0xff]
  %v1279 = vld [vmem:[%s2 + $0x4b0] sm:$0xff]
  %v1280 = vld [vmem:[%s2 + $0x4b8] sm:$0xff]
  %v1281 = vld [vmem:[%s2 + $0x4c0] sm:$0xff]
  %v1282 = vld [vmem:[%s2 + $0x4c8] sm:$0xff]
  %v1283 = vld [vmem:[%s2 + $0x4d0] sm:$0xff]
  %v1284 = vld [vmem:[%s2 + $0x4d8] sm:$0xff]
  %v1285 = vld [vmem:[%s2 + $0x4e0] sm:$0xff]
  %v1286 = vld [vmem:[%s2 + $0x4e8] sm:$0xff]
  %v1287 = vld [vmem:[%s2 + $0x4f0] sm:$0xff]
  %v1288 = vld [vmem:[%s2 + $0x4f8] sm:$0xff]
  %v1289 = vld [vmem:[%s2 + $0x500] sm:$0xff]
  %v1290 = vld [vmem:[%s2 + $0x508] sm:$0xff]
  %v1291 = vld [vmem:[%s2 + $0x510] sm:$0xff]
  %v1292 = vld [vmem:[%s2 + $0x518] sm:$0xff]
  %v1293 = vld [vmem:[%s2 + $0x520] sm:$0xff]
  %v1294 = vld [vmem:[%s2 + $0x528] sm:$0xff]
  %v1295 = vld [vmem:[%s2 + $0x530] sm:$0xff]
  %v1296 = vld [vmem:[%s2 + $0x538] sm:$0xff]
  %v1297 = vld [vmem:[%s2 + $0x540] sm:$0xff]
  %v1298 = vld [vmem:[%s2 + $0x548] sm:$0xff]
  %v1299 = vld [vmem:[%s2 + $0x550] sm:$0xff]
  %v1300 = vld [vmem:[%s2 + $0x558] sm:$0xff]
  %v1301 = vld [vmem:[%s2 + $0x560] sm:$0xff]
  %v1302 = vld [vmem:[%s2 + $0x568] sm:$0xff]
  %v1303 = vld [vmem:[%s2 + $0x570] sm:$0xff]
  %v1304 = vld [vmem:[%s2 + $0x578] sm:$0xff]
  %v1305 = vld [vmem:[%s2 + $0x580] sm:$0xff]
  %v1306 = vld [vmem:[%s2 + $0x588] sm:$0xff]
  %v1307 = vld [vmem:[%s2 + $0x590] sm:$0xff]
  %v1308 = vld [vmem:[%s2 + $0x598] sm:$0xff]
  %v1309 = vld [vmem:[%s2 + $0x5a0] sm:$0xff]
  %v1310 = vld [vmem:[%s2 + $0x5a8] sm:$0xff]
  %v1311 = vld [vmem:[%s2 + $0x5b0] sm:$0xff]
  %v1312 = vld [vmem:[%s2 + $0x5b8] sm:$0xff]
  %v1313 = vld [vmem:[%s2 + $0x5c0] sm:$0xff]
  %v1314 = vld [vmem:[%s2 + $0x5c8] sm:$0xff]
  %v1315 = vld [vmem:[%s2 + $0x5d0] sm:$0xff]
  %v1316 = vld [vmem:[%s2 + $0x5d8] sm:$0xff]
  %v1317 = vld [vmem:[%s2 + $0x5e0] sm:$0xff]
  %v1318 = vld [vmem:[%s2 + $0x5e8] sm:$0xff]
  %v1319 = vld [vmem:[%s2 + $0x5f0] sm:$0xff]
  %v1320 = vld [vmem:[%s2 + $0x5f8] sm:$0xff]
  %v1321 = vld [vmem:[%s2 + $0x600] sm:$0xff]
  %v1322 = vld [vmem:[%s2 + $0x608] sm:$0xff]
  %v1323 = vld [vmem:[%s2 + $0x610] sm:$0xff]
  %v1324 = vld [vmem:[%s2 + $0x618] sm:$0xff]
  %v1325 = vld [vmem:[%s2 + $0x620] sm:$0xff]
  %v1326 = vld [vmem:[%s2 + $0x628] sm:$0xff]
  %v1327 = vld [vmem:[%s2 + $0x630] sm:$0xff]
  %v1328 = vld [vmem:[%s2 + $0x638] sm:$0xff]
  %v1329 = vld [vmem:[%s2 + $0x640] sm:$0xff]
  %v1330 = vld [vmem:[%s2 + $0x648] sm:$0xff]
  %v1331 = vld [vmem:[%s2 + $0x650] sm:$0xff]
  %v1332 = vld [vmem:[%s2 + $0x658] sm:$0xff]
  %v1333 = vld [vmem:[%s2 + $0x660] sm:$0xff]
  %v1334 = vld [vmem:[%s2 + $0x668] sm:$0xff]
  %v1335 = vld [vmem:[%s2 + $0x670] sm:$0xff]
  %v1336 = vld [vmem:[%s2 + $0x678] sm:$0xff]
  %v1337 = vld [vmem:[%s2 + $0x680] sm:$0xff]
  %v1338 = vld [vmem:[%s2 + $0x688] sm:$0xff]
  %v1339 = vld [vmem:[%s2 + $0x690] sm:$0xff]
  %v1340 = vld [vmem:[%s2 + $0x698] sm:$0xff]
  %v1341 = vld [vmem:[%s2 + $0x6a0] sm:$0xff]
  %v1342 = vld [vmem:[%s2 + $0x6a8] sm:$0xff]
  %v1343 = vld [vmem:[%s2 + $0x6b0] sm:$0xff]
  %v1344 = vld [vmem:[%s2 + $0x6b8] sm:$0xff]
  %v1345 = vld [vmem:[%s2 + $0x6c0] sm:$0xff]
  %v1346 = vld [vmem:[%s2 + $0x6c8] sm:$0xff]
  %v1347 = vld [vmem:[%s2 + $0x6d0] sm:$0xff]
  %v1348 = vld [vmem:[%s2 + $0x6d8] sm:$0xff]
  %v1349 = vld [vmem:[%s2 + $0x6e0] sm:$0xff]
  %v1350 = vld [vmem:[%s2 + $0x6e8] sm:$0xff]
  %v1351 = vld [vmem:[%s2 + $0x6f0] sm:$0xff]
  %v1352 = vld [vmem:[%s2 + $0x6f8] sm:$0xff]
  %v1353 = vld [vmem:[%s2 + $0x700] sm:$0xff]
  %v1354 = vld [vmem:[%s2 + $0x708] sm:$0xff]
  %v1355 = vld [vmem:[%s2 + $0x710] sm:$0xff]
  %v1356 = vld [vmem:[%s2 + $0x718] sm:$0xff]
  %v1357 = vld [vmem:[%s2 + $0x720] sm:$0xff]
  %v1358 = vld [vmem:[%s2 + $0x728] sm:$0xff]
  %v1359 = vld [vmem:[%s2 + $0x730] sm:$0xff]
  %v1360 = vld [vmem:[%s2 + $0x738] sm:$0xff]
  %v1361 = vld [vmem:[%s2 + $0x740] sm:$0xff]
  %v1362 = vld [vmem:[%s2 + $0x748] sm:$0xff]
  %v1363 = vld [vmem:[%s2 + $0x750] sm:$0xff]
  %v1364 = vld [vmem:[%s2 + $0x758] sm:$0xff]
  %v1365 = vld [vmem:[%s2 + $0x760] sm:$0xff]
  %v1366 = vld [vmem:[%s2 + $0x768] sm:$0xff]
  %v1367 = vld [vmem:[%s2 + $0x770] sm:$0xff]
  %v1368 = vld [vmem:[%s2 + $0x778] sm:$0xff]
  %v1369 = vld [vmem:[%s2 + $0x780] sm:$0xff]
  %v1370 = vld [vmem:[%s2 + $0x788] sm:$0xff]
  %v1371 = vld [vmem:[%s2 + $0x790] sm:$0xff]
  %v1372 = vld [vmem:[%s2 + $0x798] sm:$0xff]
  %v1373 = vld [vmem:[%s2 + $0x7a0] sm:$0xff]
  %v1374 = vld [vmem:[%s2 + $0x7a8] sm:$0xff]
  %v1375 = vld [vmem:[%s2 + $0x7b0] sm:$0xff]
  %v1376 = vld [vmem:[%s2 + $0x7b8] sm:$0xff]
  %v1377 = vld [vmem:[%s2 + $0x7c0] sm:$0xff]
  %v1378 = vld [vmem:[%s2 + $0x7c8] sm:$0xff]
  %v1379 = vld [vmem:[%s2 + $0x7d0] sm:$0xff]
  %v1380 = vld [vmem:[%s2 + $0x7d8] sm:$0xff]
  %v1381 = vld [vmem:[%s2 + $0x7e0] sm:$0xff]
  %v1382 = vld [vmem:[%s2 + $0x7e8] sm:$0xff]
  %v1383 = vld [vmem:[%s2 + $0x7f0] sm:$0xff]
  %v1384 = vld [vmem:[%s2 + $0x7f8] sm:$0xff]
  %v1385 = vld [vmem:[%s2 + $0x800] sm:$0xff]
  %v1386 = vld [vmem:[%s2 + $0x808] sm:$0xff]
  %v1387 = vld [vmem:[%s2 + $0x810] sm:$0xff]
  %v1388 = vld [vmem:[%s2 + $0x818] sm:$0xff]
  %v1389 = vld [vmem:[%s2 + $0x820] sm:$0xff]
  %v1390 = vld [vmem:[%s2 + $0x828] sm:$0xff]
  %v1391 = vld [vmem:[%s2 + $0x830] sm:$0xff]
  %v1392 = vld [vmem:[%s2 + $0x838] sm:$0xff]
  %v1393 = vld [vmem:[%s2 + $0x840] sm:$0xff]
  %v1394 = vld [vmem:[%s2 + $0x848] sm:$0xff]
  %v1395 = vld [vmem:[%s2 + $0x850] sm:$0xff]
  %v1396 = vld [vmem:[%s2 + $0x858] sm:$0xff]
  %v1397 = vld [vmem:[%s2 + $0x860] sm:$0xff]
  %v1398 = vld [vmem:[%s2 + $0x868] sm:$0xff]
  %v1399 = vld [vmem:[%s2 + $0x870] sm:$0xff]
  %v1400 = vld [vmem:[%s2 + $0x878] sm:$0xff]
  %v1401 = vld [vmem:[%s2 + $0x880] sm:$0xff]
  %v1402 = vld [vmem:[%s2 + $0x888] sm:$0xff]
  %v1403 = vld [vmem:[%s2 + $0x890] sm:$0xff]
  %v1404 = vld [vmem:[%s2 + $0x898] sm:$0xff]
  %v1405 = vld [vmem:[%s2 + $0x8a0] sm:$0xff]
  %v1406 = vld [vmem:[%s2 + $0x8a8] sm:$0xff]
  %v1407 = vld [vmem:[%s2 + $0x8b0] sm:$0xff]
  %v1408 = vld [vmem:[%s2 + $0x8b8] sm:$0xff]
  %v1409 = vld [vmem:[%s2 + $0x8c0] sm:$0xff]
  %v1410 = vld [vmem:[%s2 + $0x8c8] sm:$0xff]
  %v1411 = vld [vmem:[%s2 + $0x8d0] sm:$0xff]
  %v1412 = vld [vmem:[%s2 + $0x8d8] sm:$0xff]
  %v1413 = vld [vmem:[%s2 + $0x8e0] sm:$0xff]
  %v1414 = vld [vmem:[%s2 + $0x8e8] sm:$0xff]
  %v1415 = vld [vmem:[%s2 + $0x8f0] sm:$0xff]
  %v1416 = vld [vmem:[%s2 + $0x8f8] sm:$0xff]
  %v1417 = vld [vmem:[%s2 + $0x900] sm:$0xff]
  %v1418 = vld [vmem:[%s2 + $0x908] sm:$0xff]
  %v1419 = vld [vmem:[%s2 + $0x910] sm:$0xff]
  %v1420 = vld [vmem:[%s2 + $0x918] sm:$0xff]
  %v1421 = vld [vmem:[%s2 + $0x920] sm:$0xff]
  %v1422 = vld [vmem:[%s2 + $0x928] sm:$0xff]
  %v1423 = vld [vmem:[%s2 + $0x930] sm:$0xff]
  %v1424 = vld [vmem:[%s2 + $0x938] sm:$0xff]
  %v1425 = vld [vmem:[%s2 + $0x940] sm:$0xff]
  %v1426 = vld [vmem:[%s2 + $0x948] sm:$0xff]
  %v1427 = vld [vmem:[%s2 + $0x950] sm:$0xff]
  %v1428 = vld [vmem:[%s2 + $0x958] sm:$0xff]
  %v1429 = vld [vmem:[%s2 + $0x960] sm:$0xff]
  %v1430 = vld [vmem:[%s2 + $0x968] sm:$0xff]
  %v1431 = vld [vmem:[%s2 + $0x970] sm:$0xff]
  %v1432 = vld [vmem:[%s2 + $0x978] sm:$0xff]
  %v1433 = vld [vmem:[%s2 + $0x980] sm:$0xff]
  %v1434 = vld [vmem:[%s2 + $0x988] sm:$0xff]
  %v1435 = vld [vmem:[%s2 + $0x990] sm:$0xff]
  %v1436 = vld [vmem:[%s2 + $0x998] sm:$0xff]
  %v1437 = vld [vmem:[%s2 + $0x9a0] sm:$0xff]
  %v1438 = vld [vmem:[%s2 + $0x9a8] sm:$0xff]
  %v1439 = vld [vmem:[%s2 + $0x9b0] sm:$0xff]
  %v1440 = vld [vmem:[%s2 + $0x9b8] sm:$0xff]
  %v1441 = vld [vmem:[%s2 + $0x9c0] sm:$0xff]
  %v1442 = vld [vmem:[%s2 + $0x9c8] sm:$0xff]
  %v1443 = vld [vmem:[%s2 + $0x9d0] sm:$0xff]
  %v1444 = vld [vmem:[%s2 + $0x9d8] sm:$0xff]
  %v1445 = vld [vmem:[%s2 + $0x9e0] sm:$0xff]
  %v1446 = vld [vmem:[%s2 + $0x9e8] sm:$0xff]
  %v1447 = vld [vmem:[%s2 + $0x9f0] sm:$0xff]
  %v1448 = vld [vmem:[%s2 + $0x9f8] sm:$0xff]
  %v1449 = vld [vmem:[%s2 + $0xa00] sm:$0xff]
  %v1450 = vld [vmem:[%s2 + $0xa08] sm:$0xff]
  %v1451 = vld [vmem:[%s2 + $0xa10] sm:$0xff]
  %v1452 = vld [vmem:[%s2 + $0xa18] sm:$0xff]
  %v1453 = vld [vmem:[%s2 + $0xa20] sm:$0xff]
  %v1454 = vld [vmem:[%s2 + $0xa28] sm:$0xff]
  %v1455 = vld [vmem:[%s2 + $0xa30] sm:$0xff]
  %v1456 = vld [vmem:[%s2 + $0xa38] sm:$0xff]
  %v1457 = vld [vmem:[%s2 + $0xa40] sm:$0xff]
  %v1458 = vld [vmem:[%s2 + $0xa48] sm:$0xff]
  %v1459 = vld [vmem:[%s2 + $0xa50] sm:$0xff]
  %v1460 = vld [vmem:[%s2 + $0xa58] sm:$0xff]
  %v1461 = vld [vmem:[%s2 + $0xa60] sm:$0xff]
  %v1462 = vld [vmem:[%s2 + $0xa68] sm:$0xff]
  %v1463 = vld [vmem:[%s2 + $0xa70] sm:$0xff]
  %v1464 = vld [vmem:[%s2 + $0xa78] sm:$0xff]
  %v1465 = vld [vmem:[%s2 + $0xa80] sm:$0xff]
  %v1466 = vld [vmem:[%s2 + $0xa88] sm:$0xff]
  %v1467 = vld [vmem:[%s2 + $0xa90] sm:$0xff]
  %v1468 = vld [vmem:[%s2 + $0xa98] sm:$0xff]
  %v1469 = vld [vmem:[%s2 + $0xaa0] sm:$0xff]
  %v1470 = vld [vmem:[%s2 + $0xaa8] sm:$0xff]
  %v1471 = vld [vmem:[%s2 + $0xab0] sm:$0xff]
  %v1472 = vld [vmem:[%s2 + $0xab8] sm:$0xff]
  %v1473 = vld [vmem:[%s2 + $0xac0] sm:$0xff]
  %v1474 = vld [vmem:[%s2 + $0xac8] sm:$0xff]
  %v1475 = vld [vmem:[%s2 + $0xad0] sm:$0xff]
  %v1476 = vld [vmem:[%s2 + $0xad8] sm:$0xff]
  %v1477 = vld [vmem:[%s2 + $0xae0] sm:$0xff]
  %v1478 = vld [vmem:[%s2 + $0xae8] sm:$0xff]
  %v1479 = vld [vmem:[%s2 + $0xaf0] sm:$0xff]
  %v1480 = vld [vmem:[%s2 + $0xaf8] sm:$0xff]
  %v1481 = vld [vmem:[%s2 + $0xb00] sm:$0xff]
  %v1482 = vld [vmem:[%s2 + $0xb08] sm:$0xff]
  %v1483 = vld [vmem:[%s2 + $0xb10] sm:$0xff]
  %v1484 = vld [vmem:[%s2 + $0xb18] sm:$0xff]
  %v1485 = vld [vmem:[%s2 + $0xb20] sm:$0xff]
  %v1486 = vld [vmem:[%s2 + $0xb28] sm:$0xff]
  %v1487 = vld [vmem:[%s2 + $0xb30] sm:$0xff]
  %v1488 = vld [vmem:[%s2 + $0xb38] sm:$0xff]
  %v1489 = vld [vmem:[%s2 + $0xb40] sm:$0xff]
  %v1490 = vld [vmem:[%s2 + $0xb48] sm:$0xff]
  %v1491 = vld [vmem:[%s2 + $0xb50] sm:$0xff]
  %v1492 = vld [vmem:[%s2 + $0xb58] sm:$0xff]
  %v1493 = vld [vmem:[%s2 + $0xb60] sm:$0xff]
  %v1494 = vld [vmem:[%s2 + $0xb68] sm:$0xff]
  %v1495 = vld [vmem:[%s2 + $0xb70] sm:$0xff]
  %v1496 = vld [vmem:[%s2 + $0xb78] sm:$0xff]
  %v1497 = vld [vmem:[%s2 + $0xb80] sm:$0xff]
  %v1498 = vld [vmem:[%s2 + $0xb88] sm:$0xff]
  %v1499 = vld [vmem:[%s2 + $0xb90] sm:$0xff]
  %v1500 = vld [vmem:[%s2 + $0xb98] sm:$0xff]
  %v1501 = vld [vmem:[%s2 + $0xba0] sm:$0xff]
  %v1502 = vld [vmem:[%s2 + $0xba8] sm:$0xff]
  %v1503 = vld [vmem:[%s2 + $0xbb0] sm:$0xff]
  %v1504 = vld [vmem:[%s2 + $0xbb8] sm:$0xff]
  %v1505 = vld [vmem:[%s2 + $0xbc0] sm:$0xff]
  %v1506 = vld [vmem:[%s2 + $0xbc8] sm:$0xff]
  %v1507 = vld [vmem:[%s2 + $0xbd0] sm:$0xff]
  %v1508 = vld [vmem:[%s2 + $0xbd8] sm:$0xff]
  %v1509 = vld [vmem:[%s2 + $0xbe0] sm:$0xff]
  %v1510 = vld [vmem:[%s2 + $0xbe8] sm:$0xff]
  %v1511 = vld [vmem:[%s2 + $0xbf0] sm:$0xff]
  %v1512 = vld [vmem:[%s2 + $0xbf8] sm:$0xff]
  %v1513 = vld [vmem:[%s2 + $0xc00] sm:$0xff]
  %v1514 = vld [vmem:[%s2 + $0xc08] sm:$0xff]
  %v1515 = vld [vmem:[%s2 + $0xc10] sm:$0xff]
  %v1516 = vld [vmem:[%s2 + $0xc18] sm:$0xff]
  %v1517 = vld [vmem:[%s2 + $0xc20] sm:$0xff]
  %v1518 = vld [vmem:[%s2 + $0xc28] sm:$0xff]
  %v1519 = vld [vmem:[%s2 + $0xc30] sm:$0xff]
  %v1520 = vld [vmem:[%s2 + $0xc38] sm:$0xff]
  %v1521 = vld [vmem:[%s2 + $0xc40] sm:$0xff]
  %v1522 = vld [vmem:[%s2 + $0xc48] sm:$0xff]
  %v1523 = vld [vmem:[%s2 + $0xc50] sm:$0xff]
  %v1524 = vld [vmem:[%s2 + $0xc58] sm:$0xff]
  %v1525 = vld [vmem:[%s2 + $0xc60] sm:$0xff]
  %v1526 = vld [vmem:[%s2 + $0xc68] sm:$0xff]
  %v1527 = vld [vmem:[%s2 + $0xc70] sm:$0xff]
  %v1528 = vld [vmem:[%s2 + $0xc78] sm:$0xff]
  %v1529 = vld [vmem:[%s2 + $0xc80] sm:$0xff]
  %v1530 = vld [vmem:[%s2 + $0xc88] sm:$0xff]
  %v1531 = vld [vmem:[%s2 + $0xc90] sm:$0xff]
  %v1532 = vld [vmem:[%s2 + $0xc98] sm:$0xff]
  %v1533 = vld [vmem:[%s2 + $0xca0] sm:$0xff]
  %v1534 = vld [vmem:[%s2 + $0xca8] sm:$0xff]
  %v1535 = vld [vmem:[%s2 + $0xcb0] sm:$0xff]
  %v1536 = vld [vmem:[%s2 + $0xcb8] sm:$0xff]
  %v1537 = vld [vmem:[%s2 + $0xcc0] sm:$0xff]
  %v1538 = vld [vmem:[%s2 + $0xcc8] sm:$0xff]
  %v1539 = vld [vmem:[%s2 + $0xcd0] sm:$0xff]
  %v1540 = vld [vmem:[%s2 + $0xcd8] sm:$0xff]
  %v1541 = vld [vmem:[%s2 + $0xce0] sm:$0xff]
  %v1542 = vld [vmem:[%s2 + $0xce8] sm:$0xff]
  %v1543 = vld [vmem:[%s2 + $0xcf0] sm:$0xff]
  %v1544 = vld [vmem:[%s2 + $0xcf8] sm:$0xff]
  %v1545 = vld [vmem:[%s2 + $0xd00] sm:$0xff]
  %v1546 = vld [vmem:[%s2 + $0xd08] sm:$0xff]
  %v1547 = vld [vmem:[%s2 + $0xd10] sm:$0xff]
  %v1548 = vld [vmem:[%s2 + $0xd18] sm:$0xff]
  %v1549 = vld [vmem:[%s2 + $0xd20] sm:$0xff]
  %v1550 = vld [vmem:[%s2 + $0xd28] sm:$0xff]
  %v1551 = vld [vmem:[%s2 + $0xd30] sm:$0xff]
  %v1552 = vld [vmem:[%s2 + $0xd38] sm:$0xff]
  %v1553 = vld [vmem:[%s2 + $0xd40] sm:$0xff]
  %v1554 = vld [vmem:[%s2 + $0xd48] sm:$0xff]
  %v1555 = vld [vmem:[%s2 + $0xd50] sm:$0xff]
  %v1556 = vld [vmem:[%s2 + $0xd58] sm:$0xff]
  %v1557 = vld [vmem:[%s2 + $0xd60] sm:$0xff]
  %v1558 = vld [vmem:[%s2 + $0xd68] sm:$0xff]
  %v1559 = vld [vmem:[%s2 + $0xd70] sm:$0xff]
  %v1560 = vld [vmem:[%s2 + $0xd78] sm:$0xff]
  %v1561 = vld [vmem:[%s2 + $0xd80] sm:$0xff]
  %v1562 = vld [vmem:[%s2 + $0xd88] sm:$0xff]
  %v1563 = vld [vmem:[%s2 + $0xd90] sm:$0xff]
  %v1564 = vld [vmem:[%s2 + $0xd98] sm:$0xff]
  %v1565 = vld [vmem:[%s2 + $0xda0] sm:$0xff]
  %v1566 = vld [vmem:[%s2 + $0xda8] sm:$0xff]
  %v1567 = vld [vmem:[%s2 + $0xdb0] sm:$0xff]
  %v1568 = vld [vmem:[%s2 + $0xdb8] sm:$0xff]
  %v1569 = vld [vmem:[%s2 + $0xdc0] sm:$0xff]
  %v1570 = vld [vmem:[%s2 + $0xdc8] sm:$0xff]
  %v1571 = vld [vmem:[%s2 + $0xdd0] sm:$0xff]
  %v1572 = vld [vmem:[%s2 + $0xdd8] sm:$0xff]
  %v1573 = vld [vmem:[%s2 + $0xde0] sm:$0xff]
  %v1574 = vld [vmem:[%s2 + $0xde8] sm:$0xff]
  %v1575 = vld [vmem:[%s2 + $0xdf0] sm:$0xff]
  %v1576 = vld [vmem:[%s2 + $0xdf8] sm:$0xff]
  %v1577 = vld [vmem:[%s2 + $0xe00] sm:$0xff]
  %v1578 = vld [vmem:[%s2 + $0xe08] sm:$0xff]
  %v1579 = vld [vmem:[%s2 + $0xe10] sm:$0xff]
  %v1580 = vld [vmem:[%s2 + $0xe18] sm:$0xff]
  %v1581 = vld [vmem:[%s2 + $0xe20] sm:$0xff]
  %v1582 = vld [vmem:[%s2 + $0xe28] sm:$0xff]
  %v1583 = vld [vmem:[%s2 + $0xe30] sm:$0xff]
  %v1584 = vld [vmem:[%s2 + $0xe38] sm:$0xff]
  %v1585 = vld [vmem:[%s2 + $0xe40] sm:$0xff]
  %v1586 = vld [vmem:[%s2 + $0xe48] sm:$0xff]
  %v1587 = vld [vmem:[%s2 + $0xe50] sm:$0xff]
  %v1588 = vld [vmem:[%s2 + $0xe58] sm:$0xff]
  %v1589 = vld [vmem:[%s2 + $0xe60] sm:$0xff]
  %v1590 = vld [vmem:[%s2 + $0xe68] sm:$0xff]
  %v1591 = vld [vmem:[%s2 + $0xe70] sm:$0xff]
  %v1592 = vld [vmem:[%s2 + $0xe78] sm:$0xff]
  %v1593 = vld [vmem:[%s2 + $0xe80] sm:$0xff]
  %v1594 = vld [vmem:[%s2 + $0xe88] sm:$0xff]
  %v1595 = vld [vmem:[%s2 + $0xe90] sm:$0xff]
  %v1596 = vld [vmem:[%s2 + $0xe98] sm:$0xff]
  %v1597 = vld [vmem:[%s2 + $0xea0] sm:$0xff]
  %v1598 = vld [vmem:[%s2 + $0xea8] sm:$0xff]
  %v1599 = vld [vmem:[%s2 + $0xeb0] sm:$0xff]
  %v1600 = vld [vmem:[%s2 + $0xeb8] sm:$0xff]
  %v1601 = vld [vmem:[%s2 + $0xec0] sm:$0xff]
  %v1602 = vld [vmem:[%s2 + $0xec8] sm:$0xff]
  %v1603 = vld [vmem:[%s2 + $0xed0] sm:$0xff]
  %v1604 = vld [vmem:[%s2 + $0xed8] sm:$0xff]
  %v1605 = vld [vmem:[%s2 + $0xee0] sm:$0xff]
  %v1606 = vld [vmem:[%s2 + $0xee8] sm:$0xff]
  %v1607 = vld [vmem:[%s2 + $0xef0] sm:$0xff]
  %v1608 = vld [vmem:[%s2 + $0xef8] sm:$0xff]
  %v1609 = vld [vmem:[%s2 + $0xf00] sm:$0xff]
  %v1610 = vld [vmem:[%s2 + $0xf08] sm:$0xff]
  %v1611 = vld [vmem:[%s2 + $0xf10] sm:$0xff]
  %v1612 = vld [vmem:[%s2 + $0xf18] sm:$0xff]
  %v1613 = vld [vmem:[%s2 + $0xf20] sm:$0xff]
  %v1614 = vld [vmem:[%s2 + $0xf28] sm:$0xff]
  %v1615 = vld [vmem:[%s2 + $0xf30] sm:$0xff]
  %v1616 = vld [vmem:[%s2 + $0xf38] sm:$0xff]
  %v1617 = vld [vmem:[%s2 + $0xf40] sm:$0xff]
  %v1618 = vld [vmem:[%s2 + $0xf48] sm:$0xff]
  %v1619 = vld [vmem:[%s2 + $0xf50] sm:$0xff]
  %v1620 = vld [vmem:[%s2 + $0xf58] sm:$0xff]
  %v1621 = vld [vmem:[%s2 + $0xf60] sm:$0xff]
  %v1622 = vld [vmem:[%s2 + $0xf68] sm:$0xff]
  %v1623 = vld [vmem:[%s2 + $0xf70] sm:$0xff]
  %v1624 = vld [vmem:[%s2 + $0xf78] sm:$0xff]
  %v1625 = vld [vmem:[%s2 + $0xf80] sm:$0xff]
  %v1626 = vld [vmem:[%s2 + $0xf88] sm:$0xff]
  %v1627 = vld [vmem:[%s2 + $0xf90] sm:$0xff]
  %v1628 = vld [vmem:[%s2 + $0xf98] sm:$0xff]
  %v1629 = vld [vmem:[%s2 + $0xfa0] sm:$0xff]
  %v1630 = vld [vmem:[%s2 + $0xfa8] sm:$0xff]
  %v1631 = vld [vmem:[%s2 + $0xfb0] sm:$0xff]
  %v1632 = vld [vmem:[%s2 + $0xfb8] sm:$0xff]
  %v1633 = vld [vmem:[%s2 + $0xfc0] sm:$0xff]
  %v1634 = vld [vmem:[%s2 + $0xfc8] sm:$0xff]
  %v1635 = vld [vmem:[%s2 + $0xfd0] sm:$0xff]
  %v1636 = vld [vmem:[%s2 + $0xfd8] sm:$0xff]
  %v1637 = vld [vmem:[%s2 + $0xfe0] sm:$0xff]
  %v1638 = vld [vmem:[%s2 + $0xfe8] sm:$0xff]
  %v1639 = vld [vmem:[%s2 + $0xff0] sm:$0xff]
  %v1640 = vld [vmem:[%s2 + $0xff8] sm:$0xff]
  %v1641 = vadd.f32 %v617, %v1129
  %v1642 = vadd.f32 %v618, %v1130
  %v1643 = vadd.f32 %v619, %v1131
  %v1644 = vadd.f32 %v620, %v1132
  %v1645 = vadd.f32 %v621, %v1133
  %v1646 = vadd.f32 %v622, %v1134
  %v1647 = vadd.f32 %v623, %v1135
  %v1648 = vadd.f32 %v624, %v1136
  %v1649 = vadd.f32 %v625, %v1137
  %v1650 = vadd.f32 %v626, %v1138
  %v1651 = vadd.f32 %v627, %v1139
  %v1652 = vadd.f32 %v628, %v1140
  %v1653 = vadd.f32 %v629, %v1141
  %v1654 = vadd.f32 %v630, %v1142
  %v1655 = vadd.f32 %v631, %v1143
  %v1656 = vadd.f32 %v632, %v1144
  %v1657 = vadd.f32 %v633, %v1145
  %v1658 = vadd.f32 %v634, %v1146
  %v1659 = vadd.f32 %v635, %v1147
  %v1660 = vadd.f32 %v636, %v1148
  %v1661 = vadd.f32 %v637, %v1149
  %v1662 = vadd.f32 %v638, %v1150
  %v1663 = vadd.f32 %v639, %v1151
  %v1664 = vadd.f32 %v640, %v1152
  %v1665 = vadd.f32 %v641, %v1153
  %v1666 = vadd.f32 %v642, %v1154
  %v1667 = vadd.f32 %v643, %v1155
  %v1668 = vadd.f32 %v644, %v1156
  %v1669 = vadd.f32 %v645, %v1157
  %v1670 = vadd.f32 %v646, %v1158
  %v1671 = vadd.f32 %v647, %v1159
  %v1672 = vadd.f32 %v648, %v1160
  %v1673 = vadd.f32 %v649, %v1161
  %v1674 = vadd.f32 %v650, %v1162
  %v1675 = vadd.f32 %v651, %v1163
  %v1676 = vadd.f32 %v652, %v1164
  %v1677 = vadd.f32 %v653, %v1165
  %v1678 = vadd.f32 %v654, %v1166
  %v1679 = vadd.f32 %v655, %v1167
  %v1680 = vadd.f32 %v656, %v1168
  %v1681 = vadd.f32 %v657, %v1169
  %v1682 = vadd.f32 %v658, %v1170
  %v1683 = vadd.f32 %v659, %v1171
  %v1684 = vadd.f32 %v660, %v1172
  %v1685 = vadd.f32 %v661, %v1173
  %v1686 = vadd.f32 %v662, %v1174
  %v1687 = vadd.f32 %v663, %v1175
  %v1688 = vadd.f32 %v664, %v1176
  %v1689 = vadd.f32 %v665, %v1177
  %v1690 = vadd.f32 %v666, %v1178
  %v1691 = vadd.f32 %v667, %v1179
  %v1692 = vadd.f32 %v668, %v1180
  %v1693 = vadd.f32 %v669, %v1181
  %v1694 = vadd.f32 %v670, %v1182
  %v1695 = vadd.f32 %v671, %v1183
  %v1696 = vadd.f32 %v672, %v1184
  %v1697 = vadd.f32 %v673, %v1185
  %v1698 = vadd.f32 %v674, %v1186
  %v1699 = vadd.f32 %v675, %v1187
  %v1700 = vadd.f32 %v676, %v1188
  %v1701 = vadd.f32 %v677, %v1189
  %v1702 = vadd.f32 %v678, %v1190
  %v1703 = vadd.f32 %v679, %v1191
  %v1704 = vadd.f32 %v680, %v1192
  %v1705 = vadd.f32 %v681, %v1193
  %v1706 = vadd.f32 %v682, %v1194
  %v1707 = vadd.f32 %v683, %v1195
  %v1708 = vadd.f32 %v684, %v1196
  %v1709 = vadd.f32 %v685, %v1197
  %v1710 = vadd.f32 %v686, %v1198
  %v1711 = vadd.f32 %v687, %v1199
  %v1712 = vadd.f32 %v688, %v1200
  %v1713 = vadd.f32 %v689, %v1201
  %v1714 = vadd.f32 %v690, %v1202
  %v1715 = vadd.f32 %v691, %v1203
  %v1716 = vadd.f32 %v692, %v1204
  %v1717 = vadd.f32 %v693, %v1205
  %v1718 = vadd.f32 %v694, %v1206
  %v1719 = vadd.f32 %v695, %v1207
  %v1720 = vadd.f32 %v696, %v1208
  %v1721 = vadd.f32 %v697, %v1209
  %v1722 = vadd.f32 %v698, %v1210
  %v1723 = vadd.f32 %v699, %v1211
  %v1724 = vadd.f32 %v700, %v1212
  %v1725 = vadd.f32 %v701, %v1213
  %v1726 = vadd.f32 %v702, %v1214
  %v1727 = vadd.f32 %v703, %v1215
  %v1728 = vadd.f32 %v704, %v1216
  %v1729 = vadd.f32 %v705, %v1217
  %v1730 = vadd.f32 %v706, %v1218
  %v1731 = vadd.f32 %v707, %v1219
  %v1732 = vadd.f32 %v708, %v1220
  %v1733 = vadd.f32 %v709, %v1221
  %v1734 = vadd.f32 %v710, %v1222
  %v1735 = vadd.f32 %v711, %v1223
  %v1736 = vadd.f32 %v712, %v1224
  %v1737 = vadd.f32 %v713, %v1225
  %v1738 = vadd.f32 %v714, %v1226
  %v1739 = vadd.f32 %v715, %v1227
  %v1740 = vadd.f32 %v716, %v1228
  %v1741 = vadd.f32 %v717, %v1229
  %v1742 = vadd.f32 %v718, %v1230
  %v1743 = vadd.f32 %v719, %v1231
  %v1744 = vadd.f32 %v720, %v1232
  %v1745 = vadd.f32 %v721, %v1233
  %v1746 = vadd.f32 %v722, %v1234
  %v1747 = vadd.f32 %v723, %v1235
  %v1748 = vadd.f32 %v724, %v1236
  %v1749 = vadd.f32 %v725, %v1237
  %v1750 = vadd.f32 %v726, %v1238
  %v1751 = vadd.f32 %v727, %v1239
  %v1752 = vadd.f32 %v728, %v1240
  %v1753 = vadd.f32 %v729, %v1241
  %v1754 = vadd.f32 %v730, %v1242
  %v1755 = vadd.f32 %v731, %v1243
  %v1756 = vadd.f32 %v732, %v1244
  %v1757 = vadd.f32 %v733, %v1245
  %v1758 = vadd.f32 %v734, %v1246
  %v1759 = vadd.f32 %v735, %v1247
  %v1760 = vadd.f32 %v736, %v1248
  %v1761 = vadd.f32 %v737, %v1249
  %v1762 = vadd.f32 %v738, %v1250
  %v1763 = vadd.f32 %v739, %v1251
  %v1764 = vadd.f32 %v740, %v1252
  %v1765 = vadd.f32 %v741, %v1253
  %v1766 = vadd.f32 %v742, %v1254
  %v1767 = vadd.f32 %v743, %v1255
  %v1768 = vadd.f32 %v744, %v1256
  %v1769 = vadd.f32 %v745, %v1257
  %v1770 = vadd.f32 %v746, %v1258
  %v1771 = vadd.f32 %v747, %v1259
  %v1772 = vadd.f32 %v748, %v1260
  %v1773 = vadd.f32 %v749, %v1261
  %v1774 = vadd.f32 %v750, %v1262
  %v1775 = vadd.f32 %v751, %v1263
  %v1776 = vadd.f32 %v752, %v1264
  %v1777 = vadd.f32 %v753, %v1265
  %v1778 = vadd.f32 %v754, %v1266
  %v1779 = vadd.f32 %v755, %v1267
  %v1780 = vadd.f32 %v756, %v1268
  %v1781 = vadd.f32 %v757, %v1269
  %v1782 = vadd.f32 %v758, %v1270
  %v1783 = vadd.f32 %v759, %v1271
  %v1784 = vadd.f32 %v760, %v1272
  %v1785 = vadd.f32 %v761, %v1273
  %v1786 = vadd.f32 %v762, %v1274
  %v1787 = vadd.f32 %v763, %v1275
  %v1788 = vadd.f32 %v764, %v1276
  %v1789 = vadd.f32 %v765, %v1277
  %v1790 = vadd.f32 %v766, %v1278
  %v1791 = vadd.f32 %v767, %v1279
  %v1792 = vadd.f32 %v768, %v1280
  %v1793 = vadd.f32 %v769, %v1281
  %v1794 = vadd.f32 %v770, %v1282
  %v1795 = vadd.f32 %v771, %v1283
  %v1796 = vadd.f32 %v772, %v1284
  %v1797 = vadd.f32 %v773, %v1285
  %v1798 = vadd.f32 %v774, %v1286
  %v1799 = vadd.f32 %v775, %v1287
  %v1800 = vadd.f32 %v776, %v1288
  %v1801 = vadd.f32 %v777, %v1289
  %v1802 = vadd.f32 %v778, %v1290
  %v1803 = vadd.f32 %v779, %v1291
  %v1804 = vadd.f32 %v780, %v1292
  %v1805 = vadd.f32 %v781, %v1293
  %v1806 = vadd.f32 %v782, %v1294
  %v1807 = vadd.f32 %v783, %v1295
  %v1808 = vadd.f32 %v784, %v1296
  %v1809 = vadd.f32 %v785, %v1297
  %v1810 = vadd.f32 %v786, %v1298
  %v1811 = vadd.f32 %v787, %v1299
  %v1812 = vadd.f32 %v788, %v1300
  %v1813 = vadd.f32 %v789, %v1301
  %v1814 = vadd.f32 %v790, %v1302
  %v1815 = vadd.f32 %v791, %v1303
  %v1816 = vadd.f32 %v792, %v1304
  %v1817 = vadd.f32 %v793, %v1305
  %v1818 = vadd.f32 %v794, %v1306
  %v1819 = vadd.f32 %v795, %v1307
  %v1820 = vadd.f32 %v796, %v1308
  %v1821 = vadd.f32 %v797, %v1309
  %v1822 = vadd.f32 %v798, %v1310
  %v1823 = vadd.f32 %v799, %v1311
  %v1824 = vadd.f32 %v800, %v1312
  %v1825 = vadd.f32 %v801, %v1313
  %v1826 = vadd.f32 %v802, %v1314
  %v1827 = vadd.f32 %v803, %v1315
  %v1828 = vadd.f32 %v804, %v1316
  %v1829 = vadd.f32 %v805, %v1317
  %v1830 = vadd.f32 %v806, %v1318
  %v1831 = vadd.f32 %v807, %v1319
  %v1832 = vadd.f32 %v808, %v1320
  %v1833 = vadd.f32 %v809, %v1321
  %v1834 = vadd.f32 %v810, %v1322
  %v1835 = vadd.f32 %v811, %v1323
  %v1836 = vadd.f32 %v812, %v1324
  %v1837 = vadd.f32 %v813, %v1325
  %v1838 = vadd.f32 %v814, %v1326
  %v1839 = vadd.f32 %v815, %v1327
  %v1840 = vadd.f32 %v816, %v1328
  %v1841 = vadd.f32 %v817, %v1329
  %v1842 = vadd.f32 %v818, %v1330
  %v1843 = vadd.f32 %v819, %v1331
  %v1844 = vadd.f32 %v820, %v1332
  %v1845 = vadd.f32 %v821, %v1333
  %v1846 = vadd.f32 %v822, %v1334
  %v1847 = vadd.f32 %v823, %v1335
  %v1848 = vadd.f32 %v824, %v1336
  %v1849 = vadd.f32 %v825, %v1337
  %v1850 = vadd.f32 %v826, %v1338
  %v1851 = vadd.f32 %v827, %v1339
  %v1852 = vadd.f32 %v828, %v1340
  %v1853 = vadd.f32 %v829, %v1341
  %v1854 = vadd.f32 %v830, %v1342
  %v1855 = vadd.f32 %v831, %v1343
  %v1856 = vadd.f32 %v832, %v1344
  %v1857 = vadd.f32 %v833, %v1345
  %v1858 = vadd.f32 %v834, %v1346
  %v1859 = vadd.f32 %v835, %v1347
  %v1860 = vadd.f32 %v836, %v1348
  %v1861 = vadd.f32 %v837, %v1349
  %v1862 = vadd.f32 %v838, %v1350
  %v1863 = vadd.f32 %v839, %v1351
  %v1864 = vadd.f32 %v840, %v1352
  %v1865 = vadd.f32 %v841, %v1353
  %v1866 = vadd.f32 %v842, %v1354
  %v1867 = vadd.f32 %v843, %v1355
  %v1868 = vadd.f32 %v844, %v1356
  %v1869 = vadd.f32 %v845, %v1357
  %v1870 = vadd.f32 %v846, %v1358
  %v1871 = vadd.f32 %v847, %v1359
  %v1872 = vadd.f32 %v848, %v1360
  %v1873 = vadd.f32 %v849, %v1361
  %v1874 = vadd.f32 %v850, %v1362
  %v1875 = vadd.f32 %v851, %v1363
  %v1876 = vadd.f32 %v852, %v1364
  %v1877 = vadd.f32 %v853, %v1365
  %v1878 = vadd.f32 %v854, %v1366
  %v1879 = vadd.f32 %v855, %v1367
  %v1880 = vadd.f32 %v856, %v1368
  %v1881 = vadd.f32 %v857, %v1369
  %v1882 = vadd.f32 %v858, %v1370
  %v1883 = vadd.f32 %v859, %v1371
  %v1884 = vadd.f32 %v860, %v1372
  %v1885 = vadd.f32 %v861, %v1373
  %v1886 = vadd.f32 %v862, %v1374
  %v1887 = vadd.f32 %v863, %v1375
  %v1888 = vadd.f32 %v864, %v1376
  %v1889 = vadd.f32 %v865, %v1377
  %v1890 = vadd.f32 %v866, %v1378
  %v1891 = vadd.f32 %v867, %v1379
  %v1892 = vadd.f32 %v868, %v1380
  %v1893 = vadd.f32 %v869, %v1381
  %v1894 = vadd.f32 %v870, %v1382
  %v1895 = vadd.f32 %v871, %v1383
  %v1896 = vadd.f32 %v872, %v1384
  %v1897 = vadd.f32 %v873, %v1385
  %v1898 = vadd.f32 %v874, %v1386
  %v1899 = vadd.f32 %v875, %v1387
  %v1900 = vadd.f32 %v876, %v1388
  %v1901 = vadd.f32 %v877, %v1389
  %v1902 = vadd.f32 %v878, %v1390
  %v1903 = vadd.f32 %v879, %v1391
  %v1904 = vadd.f32 %v880, %v1392
  %v1905 = vadd.f32 %v881, %v1393
  %v1906 = vadd.f32 %v882, %v1394
  %v1907 = vadd.f32 %v883, %v1395
  %v1908 = vadd.f32 %v884, %v1396
  %v1909 = vadd.f32 %v885, %v1397
  %v1910 = vadd.f32 %v886, %v1398
  %v1911 = vadd.f32 %v887, %v1399
  %v1912 = vadd.f32 %v888, %v1400
  %v1913 = vadd.f32 %v889, %v1401
  %v1914 = vadd.f32 %v890, %v1402
  %v1915 = vadd.f32 %v891, %v1403
  %v1916 = vadd.f32 %v892, %v1404
  %v1917 = vadd.f32 %v893, %v1405
  %v1918 = vadd.f32 %v894, %v1406
  %v1919 = vadd.f32 %v895, %v1407
  %v1920 = vadd.f32 %v896, %v1408
  %v1921 = vadd.f32 %v897, %v1409
  %v1922 = vadd.f32 %v898, %v1410
  %v1923 = vadd.f32 %v899, %v1411
  %v1924 = vadd.f32 %v900, %v1412
  %v1925 = vadd.f32 %v901, %v1413
  %v1926 = vadd.f32 %v902, %v1414
  %v1927 = vadd.f32 %v903, %v1415
  %v1928 = vadd.f32 %v904, %v1416
  %v1929 = vadd.f32 %v905, %v1417
  %v1930 = vadd.f32 %v906, %v1418
  %v1931 = vadd.f32 %v907, %v1419
  %v1932 = vadd.f32 %v908, %v1420
  %v1933 = vadd.f32 %v909, %v1421
  %v1934 = vadd.f32 %v910, %v1422
  %v1935 = vadd.f32 %v911, %v1423
  %v1936 = vadd.f32 %v912, %v1424
  %v1937 = vadd.f32 %v913, %v1425
  %v1938 = vadd.f32 %v914, %v1426
  %v1939 = vadd.f32 %v915, %v1427
  %v1940 = vadd.f32 %v916, %v1428
  %v1941 = vadd.f32 %v917, %v1429
  %v1942 = vadd.f32 %v918, %v1430
  %v1943 = vadd.f32 %v919, %v1431
  %v1944 = vadd.f32 %v920, %v1432
  %v1945 = vadd.f32 %v921, %v1433
  %v1946 = vadd.f32 %v922, %v1434
  %v1947 = vadd.f32 %v923, %v1435
  %v1948 = vadd.f32 %v924, %v1436
  %v1949 = vadd.f32 %v925, %v1437
  %v1950 = vadd.f32 %v926, %v1438
  %v1951 = vadd.f32 %v927, %v1439
  %v1952 = vadd.f32 %v928, %v1440
  %v1953 = vadd.f32 %v929, %v1441
  %v1954 = vadd.f32 %v930, %v1442
  %v1955 = vadd.f32 %v931, %v1443
  %v1956 = vadd.f32 %v932, %v1444
  %v1957 = vadd.f32 %v933, %v1445
  %v1958 = vadd.f32 %v934, %v1446
  %v1959 = vadd.f32 %v935, %v1447
  %v1960 = vadd.f32 %v936, %v1448
  %v1961 = vadd.f32 %v937, %v1449
  %v1962 = vadd.f32 %v938, %v1450
  %v1963 = vadd.f32 %v939, %v1451
  %v1964 = vadd.f32 %v940, %v1452
  %v1965 = vadd.f32 %v941, %v1453
  %v1966 = vadd.f32 %v942, %v1454
  %v1967 = vadd.f32 %v943, %v1455
  %v1968 = vadd.f32 %v944, %v1456
  %v1969 = vadd.f32 %v945, %v1457
  %v1970 = vadd.f32 %v946, %v1458
  %v1971 = vadd.f32 %v947, %v1459
  %v1972 = vadd.f32 %v948, %v1460
  %v1973 = vadd.f32 %v949, %v1461
  %v1974 = vadd.f32 %v950, %v1462
  %v1975 = vadd.f32 %v951, %v1463
  %v1976 = vadd.f32 %v952, %v1464
  %v1977 = vadd.f32 %v953, %v1465
  %v1978 = vadd.f32 %v954, %v1466
  %v1979 = vadd.f32 %v955, %v1467
  %v1980 = vadd.f32 %v956, %v1468
  %v1981 = vadd.f32 %v957, %v1469
  %v1982 = vadd.f32 %v958, %v1470
  %v1983 = vadd.f32 %v959, %v1471
  %v1984 = vadd.f32 %v960, %v1472
  %v1985 = vadd.f32 %v961, %v1473
  %v1986 = vadd.f32 %v962, %v1474
  %v1987 = vadd.f32 %v963, %v1475
  %v1988 = vadd.f32 %v964, %v1476
  %v1989 = vadd.f32 %v965, %v1477
  %v1990 = vadd.f32 %v966, %v1478
  %v1991 = vadd.f32 %v967, %v1479
  %v1992 = vadd.f32 %v968, %v1480
  %v1993 = vadd.f32 %v969, %v1481
  %v1994 = vadd.f32 %v970, %v1482
  %v1995 = vadd.f32 %v971, %v1483
  %v1996 = vadd.f32 %v972, %v1484
  %v1997 = vadd.f32 %v973, %v1485
  %v1998 = vadd.f32 %v974, %v1486
  %v1999 = vadd.f32 %v975, %v1487
  %v2000 = vadd.f32 %v976, %v1488
  %v2001 = vadd.f32 %v977, %v1489
  %v2002 = vadd.f32 %v978, %v1490
  %v2003 = vadd.f32 %v979, %v1491
  %v2004 = vadd.f32 %v980, %v1492
  %v2005 = vadd.f32 %v981, %v1493
  %v2006 = vadd.f32 %v982, %v1494
  %v2007 = vadd.f32 %v983, %v1495
  %v2008 = vadd.f32 %v984, %v1496
  %v2009 = vadd.f32 %v985, %v1497
  %v2010 = vadd.f32 %v986, %v1498
  %v2011 = vadd.f32 %v987, %v1499
  %v2012 = vadd.f32 %v988, %v1500
  %v2013 = vadd.f32 %v989, %v1501
  %v2014 = vadd.f32 %v990, %v1502
  %v2015 = vadd.f32 %v991, %v1503
  %v2016 = vadd.f32 %v992, %v1504
  %v2017 = vadd.f32 %v993, %v1505
  %v2018 = vadd.f32 %v994, %v1506
  %v2019 = vadd.f32 %v995, %v1507
  %v2020 = vadd.f32 %v996, %v1508
  %v2021 = vadd.f32 %v997, %v1509
  %v2022 = vadd.f32 %v998, %v1510
  %v2023 = vadd.f32 %v999, %v1511
  %v2024 = vadd.f32 %v1000, %v1512
  %v2025 = vadd.f32 %v1001, %v1513
  %v2026 = vadd.f32 %v1002, %v1514
  %v2027 = vadd.f32 %v1003, %v1515
  %v2028 = vadd.f32 %v1004, %v1516
  %v2029 = vadd.f32 %v1005, %v1517
  %v2030 = vadd.f32 %v1006, %v1518
  %v2031 = vadd.f32 %v1007, %v1519
  %v2032 = vadd.f32 %v1008, %v1520
  %v2033 = vadd.f32 %v1009, %v1521
  %v2034 = vadd.f32 %v1010, %v1522
  %v2035 = vadd.f32 %v1011, %v1523
  %v2036 = vadd.f32 %v1012, %v1524
  %v2037 = vadd.f32 %v1013, %v1525
  %v2038 = vadd.f32 %v1014, %v1526
  %v2039 = vadd.f32 %v1015, %v1527
  %v2040 = vadd.f32 %v1016, %v1528
  %v2041 = vadd.f32 %v1017, %v1529
  %v2042 = vadd.f32 %v1018, %v1530
  %v2043 = vadd.f32 %v1019, %v1531
  %v2044 = vadd.f32 %v1020, %v1532
  %v2045 = vadd.f32 %v1021, %v1533
  %v2046 = vadd.f32 %v1022, %v1534
  %v2047 = vadd.f32 %v1023, %v1535
  %v2048 = vadd.f32 %v1024, %v1536
  %v2049 = vadd.f32 %v1025, %v1537
  %v2050 = vadd.f32 %v1026, %v1538
  %v2051 = vadd.f32 %v1027, %v1539
  %v2052 = vadd.f32 %v1028, %v1540
  %v2053 = vadd.f32 %v1029, %v1541
  %v2054 = vadd.f32 %v1030, %v1542
  %v2055 = vadd.f32 %v1031, %v1543
  %v2056 = vadd.f32 %v1032, %v1544
  %v2057 = vadd.f32 %v1033, %v1545
  %v2058 = vadd.f32 %v1034, %v1546
  %v2059 = vadd.f32 %v1035, %v1547
  %v2060 = vadd.f32 %v1036, %v1548
  %v2061 = vadd.f32 %v1037, %v1549
  %v2062 = vadd.f32 %v1038, %v1550
  %v2063 = vadd.f32 %v1039, %v1551
  %v2064 = vadd.f32 %v1040, %v1552
  %v2065 = vadd.f32 %v1041, %v1553
  %v2066 = vadd.f32 %v1042, %v1554
  %v2067 = vadd.f32 %v1043, %v1555
  %v2068 = vadd.f32 %v1044, %v1556
  %v2069 = vadd.f32 %v1045, %v1557
  %v2070 = vadd.f32 %v1046, %v1558
  %v2071 = vadd.f32 %v1047, %v1559
  %v2072 = vadd.f32 %v1048, %v1560
  %v2073 = vadd.f32 %v1049, %v1561
  %v2074 = vadd.f32 %v1050, %v1562
  %v2075 = vadd.f32 %v1051, %v1563
  %v2076 = vadd.f32 %v1052, %v1564
  %v2077 = vadd.f32 %v1053, %v1565
  %v2078 = vadd.f32 %v1054, %v1566
  %v2079 = vadd.f32 %v1055, %v1567
  %v2080 = vadd.f32 %v1056, %v1568
  %v2081 = vadd.f32 %v1057, %v1569
  %v2082 = vadd.f32 %v1058, %v1570
  %v2083 = vadd.f32 %v1059, %v1571
  %v2084 = vadd.f32 %v1060, %v1572
  %v2085 = vadd.f32 %v1061, %v1573
  %v2086 = vadd.f32 %v1062, %v1574
  %v2087 = vadd.f32 %v1063, %v1575
  %v2088 = vadd.f32 %v1064, %v1576
  %v2089 = vadd.f32 %v1065, %v1577
  %v2090 = vadd.f32 %v1066, %v1578
  %v2091 = vadd.f32 %v1067, %v1579
  %v2092 = vadd.f32 %v1068, %v1580
  %v2093 = vadd.f32 %v1069, %v1581
  %v2094 = vadd.f32 %v1070, %v1582
  %v2095 = vadd.f32 %v1071, %v1583
  %v2096 = vadd.f32 %v1072, %v1584
  %v2097 = vadd.f32 %v1073, %v1585
  %v2098 = vadd.f32 %v1074, %v1586
  %v2099 = vadd.f32 %v1075, %v1587
  %v2100 = vadd.f32 %v1076, %v1588
  %v2101 = vadd.f32 %v1077, %v1589
  %v2102 = vadd.f32 %v1078, %v1590
  %v2103 = vadd.f32 %v1079, %v1591
  %v2104 = vadd.f32 %v1080, %v1592
  %v2105 = vadd.f32 %v1081, %v1593
  %v2106 = vadd.f32 %v1082, %v1594
  %v2107 = vadd.f32 %v1083, %v1595
  %v2108 = vadd.f32 %v1084, %v1596
  %v2109 = vadd.f32 %v1085, %v1597
  %v2110 = vadd.f32 %v1086, %v1598
  %v2111 = vadd.f32 %v1087, %v1599
  %v2112 = vadd.f32 %v1088, %v1600
  %v2113 = vadd.f32 %v1089, %v1601
  %v2114 = vadd.f32 %v1090, %v1602
  %v2115 = vadd.f32 %v1091, %v1603
  %v2116 = vadd.f32 %v1092, %v1604
  %v2117 = vadd.f32 %v1093, %v1605
  %v2118 = vadd.f32 %v1094, %v1606
  %v2119 = vadd.f32 %v1095, %v1607
  %v2120 = vadd.f32 %v1096, %v1608
  %v2121 = vadd.f32 %v1097, %v1609
  %v2122 = vadd.f32 %v1098, %v1610
  %v2123 = vadd.f32 %v1099, %v1611
  %v2124 = vadd.f32 %v1100, %v1612
  %v2125 = vadd.f32 %v1101, %v1613
  %v2126 = vadd.f32 %v1102, %v1614
  %v2127 = vadd.f32 %v1103, %v1615
  %v2128 = vadd.f32 %v1104, %v1616
  %v2129 = vadd.f32 %v1105, %v1617
  %v2130 = vadd.f32 %v1106, %v1618
  %v2131 = vadd.f32 %v1107, %v1619
  %v2132 = vadd.f32 %v1108, %v1620
  %v2133 = vadd.f32 %v1109, %v1621
  %v2134 = vadd.f32 %v1110, %v1622
  %v2135 = vadd.f32 %v1111, %v1623
  %v2136 = vadd.f32 %v1112, %v1624
  %v2137 = vadd.f32 %v1113, %v1625
  %v2138 = vadd.f32 %v1114, %v1626
  %v2139 = vadd.f32 %v1115, %v1627
  %v2140 = vadd.f32 %v1116, %v1628
  %v2141 = vadd.f32 %v1117, %v1629
  %v2142 = vadd.f32 %v1118, %v1630
  %v2143 = vadd.f32 %v1119, %v1631
  %v2144 = vadd.f32 %v1120, %v1632
  %v2145 = vadd.f32 %v1121, %v1633
  %v2146 = vadd.f32 %v1122, %v1634
  %v2147 = vadd.f32 %v1123, %v1635
  %v2148 = vadd.f32 %v1124, %v1636
  %v2149 = vadd.f32 %v1125, %v1637
  %v2150 = vadd.f32 %v1126, %v1638
  %v2151 = vadd.f32 %v1127, %v1639
  %v2152 = vadd.f32 %v1128, %v1640
  %v2153 = vmax.f32 %v1641, 0.0
  %v2154 = vmax.f32 %v1642, 0.0
  %v2155 = vmax.f32 %v1643, 0.0
  %v2156 = vmax.f32 %v1644, 0.0
  %v2157 = vmax.f32 %v1645, 0.0
  %v2158 = vmax.f32 %v1646, 0.0
  %v2159 = vmax.f32 %v1647, 0.0
  %v2160 = vmax.f32 %v1648, 0.0
  %v2161 = vmax.f32 %v1649, 0.0
  %v2162 = vmax.f32 %v1650, 0.0
  %v2163 = vmax.f32 %v1651, 0.0
  %v2164 = vmax.f32 %v1652, 0.0
  %v2165 = vmax.f32 %v1653, 0.0
  %v2166 = vmax.f32 %v1654, 0.0
  %v2167 = vmax.f32 %v1655, 0.0
  %v2168 = vmax.f32 %v1656, 0.0
  %v2169 = vmax.f32 %v1657, 0.0
  %v2170 = vmax.f32 %v1658, 0.0
  %v2171 = vmax.f32 %v1659, 0.0
  %v2172 = vmax.f32 %v1660, 0.0
  %v2173 = vmax.f32 %v1661, 0.0
  %v2174 = vmax.f32 %v1662, 0.0
  %v2175 = vmax.f32 %v1663, 0.0
  %v2176 = vmax.f32 %v1664, 0.0
  %v2177 = vmax.f32 %v1665, 0.0
  %v2178 = vmax.f32 %v1666, 0.0
  %v2179 = vmax.f32 %v1667, 0.0
  %v2180 = vmax.f32 %v1668, 0.0
  %v2181 = vmax.f32 %v1669, 0.0
  %v2182 = vmax.f32 %v1670, 0.0
  %v2183 = vmax.f32 %v1671, 0.0
  %v2184 = vmax.f32 %v1672, 0.0
  %v2185 = vmax.f32 %v1673, 0.0
  %v2186 = vmax.f32 %v1674, 0.0
  %v2187 = vmax.f32 %v1675, 0.0
  %v2188 = vmax.f32 %v1676, 0.0
  %v2189 = vmax.f32 %v1677, 0.0
  %v2190 = vmax.f32 %v1678, 0.0
  %v2191 = vmax.f32 %v1679, 0.0
  %v2192 = vmax.f32 %v1680, 0.0
  %v2193 = vmax.f32 %v1681, 0.0
  %v2194 = vmax.f32 %v1682, 0.0
  %v2195 = vmax.f32 %v1683, 0.0
  %v2196 = vmax.f32 %v1684, 0.0
  %v2197 = vmax.f32 %v1685, 0.0
  %v2198 = vmax.f32 %v1686, 0.0
  %v2199 = vmax.f32 %v1687, 0.0
  %v2200 = vmax.f32 %v1688, 0.0
  %v2201 = vmax.f32 %v1689, 0.0
  %v2202 = vmax.f32 %v1690, 0.0
  %v2203 = vmax.f32 %v1691, 0.0
  %v2204 = vmax.f32 %v1692, 0.0
  %v2205 = vmax.f32 %v1693, 0.0
  %v2206 = vmax.f32 %v1694, 0.0
  %v2207 = vmax.f32 %v1695, 0.0
  %v2208 = vmax.f32 %v1696, 0.0
  %v2209 = vmax.f32 %v1697, 0.0
  %v2210 = vmax.f32 %v1698, 0.0
  %v2211 = vmax.f32 %v1699, 0.0
  %v2212 = vmax.f32 %v1700, 0.0
  %v2213 = vmax.f32 %v1701, 0.0
  %v2214 = vmax.f32 %v1702, 0.0
  %v2215 = vmax.f32 %v1703, 0.0
  %v2216 = vmax.f32 %v1704, 0.0
  %v2217 = vmax.f32 %v1705, 0.0
  %v2218 = vmax.f32 %v1706, 0.0
  %v2219 = vmax.f32 %v1707, 0.0
  %v2220 = vmax.f32 %v1708, 0.0
  %v2221 = vmax.f32 %v1709, 0.0
  %v2222 = vmax.f32 %v1710, 0.0
  %v2223 = vmax.f32 %v1711, 0.0
  %v2224 = vmax.f32 %v1712, 0.0
  %v2225 = vmax.f32 %v1713, 0.0
  %v2226 = vmax.f32 %v1714, 0.0
  %v2227 = vmax.f32 %v1715, 0.0
  %v2228 = vmax.f32 %v1716, 0.0
  %v2229 = vmax.f32 %v1717, 0.0
  %v2230 = vmax.f32 %v1718, 0.0
  %v2231 = vmax.f32 %v1719, 0.0
  %v2232 = vmax.f32 %v1720, 0.0
  %v2233 = vmax.f32 %v1721, 0.0
  %v2234 = vmax.f32 %v1722, 0.0
  %v2235 = vmax.f32 %v1723, 0.0
  %v2236 = vmax.f32 %v1724, 0.0
  %v2237 = vmax.f32 %v1725, 0.0
  %v2238 = vmax.f32 %v1726, 0.0
  %v2239 = vmax.f32 %v1727, 0.0
  %v2240 = vmax.f32 %v1728, 0.0
  %v2241 = vmax.f32 %v1729, 0.0
  %v2242 = vmax.f32 %v1730, 0.0
  %v2243 = vmax.f32 %v1731, 0.0
  %v2244 = vmax.f32 %v1732, 0.0
  %v2245 = vmax.f32 %v1733, 0.0
  %v2246 = vmax.f32 %v1734, 0.0
  %v2247 = vmax.f32 %v1735, 0.0
  %v2248 = vmax.f32 %v1736, 0.0
  %v2249 = vmax.f32 %v1737, 0.0
  %v2250 = vmax.f32 %v1738, 0.0
  %v2251 = vmax.f32 %v1739, 0.0
  %v2252 = vmax.f32 %v1740, 0.0
  %v2253 = vmax.f32 %v1741, 0.0
  %v2254 = vmax.f32 %v1742, 0.0
  %v2255 = vmax.f32 %v1743, 0.0
  %v2256 = vmax.f32 %v1744, 0.0
  %v2257 = vmax.f32 %v1745, 0.0
  %v2258 = vmax.f32 %v1746, 0.0
  %v2259 = vmax.f32 %v1747, 0.0
  %v2260 = vmax.f32 %v1748, 0.0
  %v2261 = vmax.f32 %v1749, 0.0
  %v2262 = vmax.f32 %v1750, 0.0
  %v2263 = vmax.f32 %v1751, 0.0
  %v2264 = vmax.f32 %v1752, 0.0
  %v2265 = vmax.f32 %v1753, 0.0
  %v2266 = vmax.f32 %v1754, 0.0
  %v2267 = vmax.f32 %v1755, 0.0
  %v2268 = vmax.f32 %v1756, 0.0
  %v2269 = vmax.f32 %v1757, 0.0
  %v2270 = vmax.f32 %v1758, 0.0
  %v2271 = vmax.f32 %v1759, 0.0
  %v2272 = vmax.f32 %v1760, 0.0
  %v2273 = vmax.f32 %v1761, 0.0
  %v2274 = vmax.f32 %v1762, 0.0
  %v2275 = vmax.f32 %v1763, 0.0
  %v2276 = vmax.f32 %v1764, 0.0
  %v2277 = vmax.f32 %v1765, 0.0
  %v2278 = vmax.f32 %v1766, 0.0
  %v2279 = vmax.f32 %v1767, 0.0
  %v2280 = vmax.f32 %v1768, 0.0
  %v2281 = vmax.f32 %v1769, 0.0
  %v2282 = vmax.f32 %v1770, 0.0
  %v2283 = vmax.f32 %v1771, 0.0
  %v2284 = vmax.f32 %v1772, 0.0
  %v2285 = vmax.f32 %v1773, 0.0
  %v2286 = vmax.f32 %v1774, 0.0
  %v2287 = vmax.f32 %v1775, 0.0
  %v2288 = vmax.f32 %v1776, 0.0
  %v2289 = vmax.f32 %v1777, 0.0
  %v2290 = vmax.f32 %v1778, 0.0
  %v2291 = vmax.f32 %v1779, 0.0
  %v2292 = vmax.f32 %v1780, 0.0
  %v2293 = vmax.f32 %v1781, 0.0
  %v2294 = vmax.f32 %v1782, 0.0
  %v2295 = vmax.f32 %v1783, 0.0
  %v2296 = vmax.f32 %v1784, 0.0
  %v2297 = vmax.f32 %v1785, 0.0
  %v2298 = vmax.f32 %v1786, 0.0
  %v2299 = vmax.f32 %v1787, 0.0
  %v2300 = vmax.f32 %v1788, 0.0
  %v2301 = vmax.f32 %v1789, 0.0
  %v2302 = vmax.f32 %v1790, 0.0
  %v2303 = vmax.f32 %v1791, 0.0
  %v2304 = vmax.f32 %v1792, 0.0
  %v2305 = vmax.f32 %v1793, 0.0
  %v2306 = vmax.f32 %v1794, 0.0
  %v2307 = vmax.f32 %v1795, 0.0
  %v2308 = vmax.f32 %v1796, 0.0
  %v2309 = vmax.f32 %v1797, 0.0
  %v2310 = vmax.f32 %v1798, 0.0
  %v2311 = vmax.f32 %v1799, 0.0
  %v2312 = vmax.f32 %v1800, 0.0
  %v2313 = vmax.f32 %v1801, 0.0
  %v2314 = vmax.f32 %v1802, 0.0
  %v2315 = vmax.f32 %v1803, 0.0
  %v2316 = vmax.f32 %v1804, 0.0
  %v2317 = vmax.f32 %v1805, 0.0
  %v2318 = vmax.f32 %v1806, 0.0
  %v2319 = vmax.f32 %v1807, 0.0
  %v2320 = vmax.f32 %v1808, 0.0
  %v2321 = vmax.f32 %v1809, 0.0
  %v2322 = vmax.f32 %v1810, 0.0
  %v2323 = vmax.f32 %v1811, 0.0
  %v2324 = vmax.f32 %v1812, 0.0
  %v2325 = vmax.f32 %v1813, 0.0
  %v2326 = vmax.f32 %v1814, 0.0
  %v2327 = vmax.f32 %v1815, 0.0
  %v2328 = vmax.f32 %v1816, 0.0
  %v2329 = vmax.f32 %v1817, 0.0
  %v2330 = vmax.f32 %v1818, 0.0
  %v2331 = vmax.f32 %v1819, 0.0
  %v2332 = vmax.f32 %v1820, 0.0
  %v2333 = vmax.f32 %v1821, 0.0
  %v2334 = vmax.f32 %v1822, 0.0
  %v2335 = vmax.f32 %v1823, 0.0
  %v2336 = vmax.f32 %v1824, 0.0
  %v2337 = vmax.f32 %v1825, 0.0
  %v2338 = vmax.f32 %v1826, 0.0
  %v2339 = vmax.f32 %v1827, 0.0
  %v2340 = vmax.f32 %v1828, 0.0
  %v2341 = vmax.f32 %v1829, 0.0
  %v2342 = vmax.f32 %v1830, 0.0
  %v2343 = vmax.f32 %v1831, 0.0
  %v2344 = vmax.f32 %v1832, 0.0
  %v2345 = vmax.f32 %v1833, 0.0
  %v2346 = vmax.f32 %v1834, 0.0
  %v2347 = vmax.f32 %v1835, 0.0
  %v2348 = vmax.f32 %v1836, 0.0
  %v2349 = vmax.f32 %v1837, 0.0
  %v2350 = vmax.f32 %v1838, 0.0
  %v2351 = vmax.f32 %v1839, 0.0
  %v2352 = vmax.f32 %v1840, 0.0
  %v2353 = vmax.f32 %v1841, 0.0
  %v2354 = vmax.f32 %v1842, 0.0
  %v2355 = vmax.f32 %v1843, 0.0
  %v2356 = vmax.f32 %v1844, 0.0
  %v2357 = vmax.f32 %v1845, 0.0
  %v2358 = vmax.f32 %v1846, 0.0
  %v2359 = vmax.f32 %v1847, 0.0
  %v2360 = vmax.f32 %v1848, 0.0
  %v2361 = vmax.f32 %v1849, 0.0
  %v2362 = vmax.f32 %v1850, 0.0
  %v2363 = vmax.f32 %v1851, 0.0
  %v2364 = vmax.f32 %v1852, 0.0
  %v2365 = vmax.f32 %v1853, 0.0
  %v2366 = vmax.f32 %v1854, 0.0
  %v2367 = vmax.f32 %v1855, 0.0
  %v2368 = vmax.f32 %v1856, 0.0
  %v2369 = vmax.f32 %v1857, 0.0
  %v2370 = vmax.f32 %v1858, 0.0
  %v2371 = vmax.f32 %v1859, 0.0
  %v2372 = vmax.f32 %v1860, 0.0
  %v2373 = vmax.f32 %v1861, 0.0
  %v2374 = vmax.f32 %v1862, 0.0
  %v2375 = vmax.f32 %v1863, 0.0
  %v2376 = vmax.f32 %v1864, 0.0
  %v2377 = vmax.f32 %v1865, 0.0
  %v2378 = vmax.f32 %v1866, 0.0
  %v2379 = vmax.f32 %v1867, 0.0
  %v2380 = vmax.f32 %v1868, 0.0
  %v2381 = vmax.f32 %v1869, 0.0
  %v2382 = vmax.f32 %v1870, 0.0
  %v2383 = vmax.f32 %v1871, 0.0
  %v2384 = vmax.f32 %v1872, 0.0
  %v2385 = vmax.f32 %v1873, 0.0
  %v2386 = vmax.f32 %v1874, 0.0
  %v2387 = vmax.f32 %v1875, 0.0
  %v2388 = vmax.f32 %v1876, 0.0
  %v2389 = vmax.f32 %v1877, 0.0
  %v2390 = vmax.f32 %v1878, 0.0
  %v2391 = vmax.f32 %v1879, 0.0
  %v2392 = vmax.f32 %v1880, 0.0
  %v2393 = vmax.f32 %v1881, 0.0
  %v2394 = vmax.f32 %v1882, 0.0
  %v2395 = vmax.f32 %v1883, 0.0
  %v2396 = vmax.f32 %v1884, 0.0
  %v2397 = vmax.f32 %v1885, 0.0
  %v2398 = vmax.f32 %v1886, 0.0
  %v2399 = vmax.f32 %v1887, 0.0
  %v2400 = vmax.f32 %v1888, 0.0
  %v2401 = vmax.f32 %v1889, 0.0
  %v2402 = vmax.f32 %v1890, 0.0
  %v2403 = vmax.f32 %v1891, 0.0
  %v2404 = vmax.f32 %v1892, 0.0
  %v2405 = vmax.f32 %v1893, 0.0
  %v2406 = vmax.f32 %v1894, 0.0
  %v2407 = vmax.f32 %v1895, 0.0
  %v2408 = vmax.f32 %v1896, 0.0
  %v2409 = vmax.f32 %v1897, 0.0
  %v2410 = vmax.f32 %v1898, 0.0
  %v2411 = vmax.f32 %v1899, 0.0
  %v2412 = vmax.f32 %v1900, 0.0
  %v2413 = vmax.f32 %v1901, 0.0
  %v2414 = vmax.f32 %v1902, 0.0
  %v2415 = vmax.f32 %v1903, 0.0
  %v2416 = vmax.f32 %v1904, 0.0
  %v2417 = vmax.f32 %v1905, 0.0
  %v2418 = vmax.f32 %v1906, 0.0
  %v2419 = vmax.f32 %v1907, 0.0
  %v2420 = vmax.f32 %v1908, 0.0
  %v2421 = vmax.f32 %v1909, 0.0
  %v2422 = vmax.f32 %v1910, 0.0
  %v2423 = vmax.f32 %v1911, 0.0
  %v2424 = vmax.f32 %v1912, 0.0
  %v2425 = vmax.f32 %v1913, 0.0
  %v2426 = vmax.f32 %v1914, 0.0
  %v2427 = vmax.f32 %v1915, 0.0
  %v2428 = vmax.f32 %v1916, 0.0
  %v2429 = vmax.f32 %v1917, 0.0
  %v2430 = vmax.f32 %v1918, 0.0
  %v2431 = vmax.f32 %v1919, 0.0
  %v2432 = vmax.f32 %v1920, 0.0
  %v2433 = vmax.f32 %v1921, 0.0
  %v2434 = vmax.f32 %v1922, 0.0
  %v2435 = vmax.f32 %v1923, 0.0
  %v2436 = vmax.f32 %v1924, 0.0
  %v2437 = vmax.f32 %v1925, 0.0
  %v2438 = vmax.f32 %v1926, 0.0
  %v2439 = vmax.f32 %v1927, 0.0
  %v2440 = vmax.f32 %v1928, 0.0
  %v2441 = vmax.f32 %v1929, 0.0
  %v2442 = vmax.f32 %v1930, 0.0
  %v2443 = vmax.f32 %v1931, 0.0
  %v2444 = vmax.f32 %v1932, 0.0
  %v2445 = vmax.f32 %v1933, 0.0
  %v2446 = vmax.f32 %v1934, 0.0
  %v2447 = vmax.f32 %v1935, 0.0
  %v2448 = vmax.f32 %v1936, 0.0
  %v2449 = vmax.f32 %v1937, 0.0
  %v2450 = vmax.f32 %v1938, 0.0
  %v2451 = vmax.f32 %v1939, 0.0
  %v2452 = vmax.f32 %v1940, 0.0
  %v2453 = vmax.f32 %v1941, 0.0
  %v2454 = vmax.f32 %v1942, 0.0
  %v2455 = vmax.f32 %v1943, 0.0
  %v2456 = vmax.f32 %v1944, 0.0
  %v2457 = vmax.f32 %v1945, 0.0
  %v2458 = vmax.f32 %v1946, 0.0
  %v2459 = vmax.f32 %v1947, 0.0
  %v2460 = vmax.f32 %v1948, 0.0
  %v2461 = vmax.f32 %v1949, 0.0
  %v2462 = vmax.f32 %v1950, 0.0
  %v2463 = vmax.f32 %v1951, 0.0
  %v2464 = vmax.f32 %v1952, 0.0
  %v2465 = vmax.f32 %v1953, 0.0
  %v2466 = vmax.f32 %v1954, 0.0
  %v2467 = vmax.f32 %v1955, 0.0
  %v2468 = vmax.f32 %v1956, 0.0
  %v2469 = vmax.f32 %v1957, 0.0
  %v2470 = vmax.f32 %v1958, 0.0
  %v2471 = vmax.f32 %v1959, 0.0
  %v2472 = vmax.f32 %v1960, 0.0
  %v2473 = vmax.f32 %v1961, 0.0
  %v2474 = vmax.f32 %v1962, 0.0
  %v2475 = vmax.f32 %v1963, 0.0
  %v2476 = vmax.f32 %v1964, 0.0
  %v2477 = vmax.f32 %v1965, 0.0
  %v2478 = vmax.f32 %v1966, 0.0
  %v2479 = vmax.f32 %v1967, 0.0
  %v2480 = vmax.f32 %v1968, 0.0
  %v2481 = vmax.f32 %v1969, 0.0
  %v2482 = vmax.f32 %v1970, 0.0
  %v2483 = vmax.f32 %v1971, 0.0
  %v2484 = vmax.f32 %v1972, 0.0
  %v2485 = vmax.f32 %v1973, 0.0
  %v2486 = vmax.f32 %v1974, 0.0
  %v2487 = vmax.f32 %v1975, 0.0
  %v2488 = vmax.f32 %v1976, 0.0
  %v2489 = vmax.f32 %v1977, 0.0
  %v2490 = vmax.f32 %v1978, 0.0
  %v2491 = vmax.f32 %v1979, 0.0
  %v2492 = vmax.f32 %v1980, 0.0
  %v2493 = vmax.f32 %v1981, 0.0
  %v2494 = vmax.f32 %v1982, 0.0
  %v2495 = vmax.f32 %v1983, 0.0
  %v2496 = vmax.f32 %v1984, 0.0
  %v2497 = vmax.f32 %v1985, 0.0
  %v2498 = vmax.f32 %v1986, 0.0
  %v2499 = vmax.f32 %v1987, 0.0
  %v2500 = vmax.f32 %v1988, 0.0
  %v2501 = vmax.f32 %v1989, 0.0
  %v2502 = vmax.f32 %v1990, 0.0
  %v2503 = vmax.f32 %v1991, 0.0
  %v2504 = vmax.f32 %v1992, 0.0
  %v2505 = vmax.f32 %v1993, 0.0
  %v2506 = vmax.f32 %v1994, 0.0
  %v2507 = vmax.f32 %v1995, 0.0
  %v2508 = vmax.f32 %v1996, 0.0
  %v2509 = vmax.f32 %v1997, 0.0
  %v2510 = vmax.f32 %v1998, 0.0
  %v2511 = vmax.f32 %v1999, 0.0
  %v2512 = vmax.f32 %v2000, 0.0
  %v2513 = vmax.f32 %v2001, 0.0
  %v2514 = vmax.f32 %v2002, 0.0
  %v2515 = vmax.f32 %v2003, 0.0
  %v2516 = vmax.f32 %v2004, 0.0
  %v2517 = vmax.f32 %v2005, 0.0
  %v2518 = vmax.f32 %v2006, 0.0
  %v2519 = vmax.f32 %v2007, 0.0
  %v2520 = vmax.f32 %v2008, 0.0
  %v2521 = vmax.f32 %v2009, 0.0
  %v2522 = vmax.f32 %v2010, 0.0
  %v2523 = vmax.f32 %v2011, 0.0
  %v2524 = vmax.f32 %v2012, 0.0
  %v2525 = vmax.f32 %v2013, 0.0
  %v2526 = vmax.f32 %v2014, 0.0
  %v2527 = vmax.f32 %v2015, 0.0
  %v2528 = vmax.f32 %v2016, 0.0
  %v2529 = vmax.f32 %v2017, 0.0
  %v2530 = vmax.f32 %v2018, 0.0
  %v2531 = vmax.f32 %v2019, 0.0
  %v2532 = vmax.f32 %v2020, 0.0
  %v2533 = vmax.f32 %v2021, 0.0
  %v2534 = vmax.f32 %v2022, 0.0
  %v2535 = vmax.f32 %v2023, 0.0
  %v2536 = vmax.f32 %v2024, 0.0
  %v2537 = vmax.f32 %v2025, 0.0
  %v2538 = vmax.f32 %v2026, 0.0
  %v2539 = vmax.f32 %v2027, 0.0
  %v2540 = vmax.f32 %v2028, 0.0
  %v2541 = vmax.f32 %v2029, 0.0
  %v2542 = vmax.f32 %v2030, 0.0
  %v2543 = vmax.f32 %v2031, 0.0
  %v2544 = vmax.f32 %v2032, 0.0
  %v2545 = vmax.f32 %v2033, 0.0
  %v2546 = vmax.f32 %v2034, 0.0
  %v2547 = vmax.f32 %v2035, 0.0
  %v2548 = vmax.f32 %v2036, 0.0
  %v2549 = vmax.f32 %v2037, 0.0
  %v2550 = vmax.f32 %v2038, 0.0
  %v2551 = vmax.f32 %v2039, 0.0
  %v2552 = vmax.f32 %v2040, 0.0
  %v2553 = vmax.f32 %v2041, 0.0
  %v2554 = vmax.f32 %v2042, 0.0
  %v2555 = vmax.f32 %v2043, 0.0
  %v2556 = vmax.f32 %v2044, 0.0
  %v2557 = vmax.f32 %v2045, 0.0
  %v2558 = vmax.f32 %v2046, 0.0
  %v2559 = vmax.f32 %v2047, 0.0
  %v2560 = vmax.f32 %v2048, 0.0
  %v2561 = vmax.f32 %v2049, 0.0
  %v2562 = vmax.f32 %v2050, 0.0
  %v2563 = vmax.f32 %v2051, 0.0
  %v2564 = vmax.f32 %v2052, 0.0
  %v2565 = vmax.f32 %v2053, 0.0
  %v2566 = vmax.f32 %v2054, 0.0
  %v2567 = vmax.f32 %v2055, 0.0
  %v2568 = vmax.f32 %v2056, 0.0
  %v2569 = vmax.f32 %v2057, 0.0
  %v2570 = vmax.f32 %v2058, 0.0
  %v2571 = vmax.f32 %v2059, 0.0
  %v2572 = vmax.f32 %v2060, 0.0
  %v2573 = vmax.f32 %v2061, 0.0
  %v2574 = vmax.f32 %v2062, 0.0
  %v2575 = vmax.f32 %v2063, 0.0
  %v2576 = vmax.f32 %v2064, 0.0
  %v2577 = vmax.f32 %v2065, 0.0
  %v2578 = vmax.f32 %v2066, 0.0
  %v2579 = vmax.f32 %v2067, 0.0
  %v2580 = vmax.f32 %v2068, 0.0
  %v2581 = vmax.f32 %v2069, 0.0
  %v2582 = vmax.f32 %v2070, 0.0
  %v2583 = vmax.f32 %v2071, 0.0
  %v2584 = vmax.f32 %v2072, 0.0
  %v2585 = vmax.f32 %v2073, 0.0
  %v2586 = vmax.f32 %v2074, 0.0
  %v2587 = vmax.f32 %v2075, 0.0
  %v2588 = vmax.f32 %v2076, 0.0
  %v2589 = vmax.f32 %v2077, 0.0
  %v2590 = vmax.f32 %v2078, 0.0
  %v2591 = vmax.f32 %v2079, 0.0
  %v2592 = vmax.f32 %v2080, 0.0
  %v2593 = vmax.f32 %v2081, 0.0
  %v2594 = vmax.f32 %v2082, 0.0
  %v2595 = vmax.f32 %v2083, 0.0
  %v2596 = vmax.f32 %v2084, 0.0
  %v2597 = vmax.f32 %v2085, 0.0
  %v2598 = vmax.f32 %v2086, 0.0
  %v2599 = vmax.f32 %v2087, 0.0
  %v2600 = vmax.f32 %v2088, 0.0
  %v2601 = vmax.f32 %v2089, 0.0
  %v2602 = vmax.f32 %v2090, 0.0
  %v2603 = vmax.f32 %v2091, 0.0
  %v2604 = vmax.f32 %v2092, 0.0
  %v2605 = vmax.f32 %v2093, 0.0
  %v2606 = vmax.f32 %v2094, 0.0
  %v2607 = vmax.f32 %v2095, 0.0
  %v2608 = vmax.f32 %v2096, 0.0
  %v2609 = vmax.f32 %v2097, 0.0
  %v2610 = vmax.f32 %v2098, 0.0
  %v2611 = vmax.f32 %v2099, 0.0
  %v2612 = vmax.f32 %v2100, 0.0
  %v2613 = vmax.f32 %v2101, 0.0
  %v2614 = vmax.f32 %v2102, 0.0
  %v2615 = vmax.f32 %v2103, 0.0
  %v2616 = vmax.f32 %v2104, 0.0
  %v2617 = vmax.f32 %v2105, 0.0
  %v2618 = vmax.f32 %v2106, 0.0
  %v2619 = vmax.f32 %v2107, 0.0
  %v2620 = vmax.f32 %v2108, 0.0
  %v2621 = vmax.f32 %v2109, 0.0
  %v2622 = vmax.f32 %v2110, 0.0
  %v2623 = vmax.f32 %v2111, 0.0
  %v2624 = vmax.f32 %v2112, 0.0
  %v2625 = vmax.f32 %v2113, 0.0
  %v2626 = vmax.f32 %v2114, 0.0
  %v2627 = vmax.f32 %v2115, 0.0
  %v2628 = vmax.f32 %v2116, 0.0
  %v2629 = vmax.f32 %v2117, 0.0
  %v2630 = vmax.f32 %v2118, 0.0
  %v2631 = vmax.f32 %v2119, 0.0
  %v2632 = vmax.f32 %v2120, 0.0
  %v2633 = vmax.f32 %v2121, 0.0
  %v2634 = vmax.f32 %v2122, 0.0
  %v2635 = vmax.f32 %v2123, 0.0
  %v2636 = vmax.f32 %v2124, 0.0
  %v2637 = vmax.f32 %v2125, 0.0
  %v2638 = vmax.f32 %v2126, 0.0
  %v2639 = vmax.f32 %v2127, 0.0
  %v2640 = vmax.f32 %v2128, 0.0
  %v2641 = vmax.f32 %v2129, 0.0
  %v2642 = vmax.f32 %v2130, 0.0
  %v2643 = vmax.f32 %v2131, 0.0
  %v2644 = vmax.f32 %v2132, 0.0
  %v2645 = vmax.f32 %v2133, 0.0
  %v2646 = vmax.f32 %v2134, 0.0
  %v2647 = vmax.f32 %v2135, 0.0
  %v2648 = vmax.f32 %v2136, 0.0
  %v2649 = vmax.f32 %v2137, 0.0
  %v2650 = vmax.f32 %v2138, 0.0
  %v2651 = vmax.f32 %v2139, 0.0
  %v2652 = vmax.f32 %v2140, 0.0
  %v2653 = vmax.f32 %v2141, 0.0
  %v2654 = vmax.f32 %v2142, 0.0
  %v2655 = vmax.f32 %v2143, 0.0
  %v2656 = vmax.f32 %v2144, 0.0
  %v2657 = vmax.f32 %v2145, 0.0
  %v2658 = vmax.f32 %v2146, 0.0
  %v2659 = vmax.f32 %v2147, 0.0
  %v2660 = vmax.f32 %v2148, 0.0
  %v2661 = vmax.f32 %v2149, 0.0
  %v2662 = vmax.f32 %v2150, 0.0
  %v2663 = vmax.f32 %v2151, 0.0
  %v2664 = vmax.f32 %v2152, 0.0
  %v2665 = vld [vmem:[%s3] sm:$0xff]
  %v2666 = vld [vmem:[%s3 + $0x8] sm:$0xff]
  %v2667 = vld [vmem:[%s3 + $0x10] sm:$0xff]
  %v2668 = vld [vmem:[%s3 + $0x18] sm:$0xff]
  %v2669 = vld [vmem:[%s3 + $0x20] sm:$0xff]
  %v2670 = vld [vmem:[%s3 + $0x28] sm:$0xff]
  %v2671 = vld [vmem:[%s3 + $0x30] sm:$0xff]
  %v2672 = vld [vmem:[%s3 + $0x38] sm:$0xff]
  %v2673 = vld [vmem:[%s3 + $0x40] sm:$0xff]
  %v2674 = vld [vmem:[%s3 + $0x48] sm:$0xff]
  %v2675 = vld [vmem:[%s3 + $0x50] sm:$0xff]
  %v2676 = vld [vmem:[%s3 + $0x58] sm:$0xff]
  %v2677 = vld [vmem:[%s3 + $0x60] sm:$0xff]
  %v2678 = vld [vmem:[%s3 + $0x68] sm:$0xff]
  %v2679 = vld [vmem:[%s3 + $0x70] sm:$0xff]
  %v2680 = vld [vmem:[%s3 + $0x78] sm:$0xff]
  %v2681 = vld [vmem:[%s3 + $0x80] sm:$0xff]
  %v2682 = vld [vmem:[%s3 + $0x88] sm:$0xff]
  %v2683 = vld [vmem:[%s3 + $0x90] sm:$0xff]
  %v2684 = vld [vmem:[%s3 + $0x98] sm:$0xff]
  %v2685 = vld [vmem:[%s3 + $0xa0] sm:$0xff]
  %v2686 = vld [vmem:[%s3 + $0xa8] sm:$0xff]
  %v2687 = vld [vmem:[%s3 + $0xb0] sm:$0xff]
  %v2688 = vld [vmem:[%s3 + $0xb8] sm:$0xff]
  %v2689 = vld [vmem:[%s3 + $0xc0] sm:$0xff]
  %v2690 = vld [vmem:[%s3 + $0xc8] sm:$0xff]
  %v2691 = vld [vmem:[%s3 + $0xd0] sm:$0xff]
  %v2692 = vld [vmem:[%s3 + $0xd8] sm:$0xff]
  %v2693 = vld [vmem:[%s3 + $0xe0] sm:$0xff]
  %v2694 = vld [vmem:[%s3 + $0xe8] sm:$0xff]
  %v2695 = vld [vmem:[%s3 + $0xf0] sm:$0xff]
  %v2696 = vld [vmem:[%s3 + $0xf8] sm:$0xff]
  %v2697 = vld [vmem:[%s3 + $0x100] sm:$0xff]
  %v2698 = vld [vmem:[%s3 + $0x108] sm:$0xff]
  %v2699 = vld [vmem:[%s3 + $0x110] sm:$0xff]
  %v2700 = vld [vmem:[%s3 + $0x118] sm:$0xff]
  %v2701 = vld [vmem:[%s3 + $0x120] sm:$0xff]
  %v2702 = vld [vmem:[%s3 + $0x128] sm:$0xff]
  %v2703 = vld [vmem:[%s3 + $0x130] sm:$0xff]
  %v2704 = vld [vmem:[%s3 + $0x138] sm:$0xff]
  %v2705 = vld [vmem:[%s3 + $0x140] sm:$0xff]
  %v2706 = vld [vmem:[%s3 + $0x148] sm:$0xff]
  %v2707 = vld [vmem:[%s3 + $0x150] sm:$0xff]
  %v2708 = vld [vmem:[%s3 + $0x158] sm:$0xff]
  %v2709 = vld [vmem:[%s3 + $0x160] sm:$0xff]
  %v2710 = vld [vmem:[%s3 + $0x168] sm:$0xff]
  %v2711 = vld [vmem:[%s3 + $0x170] sm:$0xff]
  %v2712 = vld [vmem:[%s3 + $0x178] sm:$0xff]
  %v2713 = vld [vmem:[%s3 + $0x180] sm:$0xff]
  %v2714 = vld [vmem:[%s3 + $0x188] sm:$0xff]
  %v2715 = vld [vmem:[%s3 + $0x190] sm:$0xff]
  %v2716 = vld [vmem:[%s3 + $0x198] sm:$0xff]
  %v2717 = vld [vmem:[%s3 + $0x1a0] sm:$0xff]
  %v2718 = vld [vmem:[%s3 + $0x1a8] sm:$0xff]
  %v2719 = vld [vmem:[%s3 + $0x1b0] sm:$0xff]
  %v2720 = vld [vmem:[%s3 + $0x1b8] sm:$0xff]
  %v2721 = vld [vmem:[%s3 + $0x1c0] sm:$0xff]
  %v2722 = vld [vmem:[%s3 + $0x1c8] sm:$0xff]
  %v2723 = vld [vmem:[%s3 + $0x1d0] sm:$0xff]
  %v2724 = vld [vmem:[%s3 + $0x1d8] sm:$0xff]
  %v2725 = vld [vmem:[%s3 + $0x1e0] sm:$0xff]
  %v2726 = vld [vmem:[%s3 + $0x1e8] sm:$0xff]
  %v2727 = vld [vmem:[%s3 + $0x1f0] sm:$0xff]
  %v2728 = vld [vmem:[%s3 + $0x1f8] sm:$0xff]
  %v2729 = vld [vmem:[%s3 + $0x200] sm:$0xff]
  %v2730 = vld [vmem:[%s3 + $0x208] sm:$0xff]
  %v2731 = vld [vmem:[%s3 + $0x210] sm:$0xff]
  %v2732 = vld [vmem:[%s3 + $0x218] sm:$0xff]
  %v2733 = vld [vmem:[%s3 + $0x220] sm:$0xff]
  %v2734 = vld [vmem:[%s3 + $0x228] sm:$0xff]
  %v2735 = vld [vmem:[%s3 + $0x230] sm:$0xff]
  %v2736 = vld [vmem:[%s3 + $0x238] sm:$0xff]
  %v2737 = vld [vmem:[%s3 + $0x240] sm:$0xff]
  %v2738 = vld [vmem:[%s3 + $0x248] sm:$0xff]
  %v2739 = vld [vmem:[%s3 + $0x250] sm:$0xff]
  %v2740 = vld [vmem:[%s3 + $0x258] sm:$0xff]
  %v2741 = vld [vmem:[%s3 + $0x260] sm:$0xff]
  %v2742 = vld [vmem:[%s3 + $0x268] sm:$0xff]
  %v2743 = vld [vmem:[%s3 + $0x270] sm:$0xff]
  %v2744 = vld [vmem:[%s3 + $0x278] sm:$0xff]
  %v2745 = vld [vmem:[%s3 + $0x280] sm:$0xff]
  %v2746 = vld [vmem:[%s3 + $0x288] sm:$0xff]
  %v2747 = vld [vmem:[%s3 + $0x290] sm:$0xff]
  %v2748 = vld [vmem:[%s3 + $0x298] sm:$0xff]
  %v2749 = vld [vmem:[%s3 + $0x2a0] sm:$0xff]
  %v2750 = vld [vmem:[%s3 + $0x2a8] sm:$0xff]
  %v2751 = vld [vmem:[%s3 + $0x2b0] sm:$0xff]
  %v2752 = vld [vmem:[%s3 + $0x2b8] sm:$0xff]
  %v2753 = vld [vmem:[%s3 + $0x2c0] sm:$0xff]
  %v2754 = vld [vmem:[%s3 + $0x2c8] sm:$0xff]
  %v2755 = vld [vmem:[%s3 + $0x2d0] sm:$0xff]
  %v2756 = vld [vmem:[%s3 + $0x2d8] sm:$0xff]
  %v2757 = vld [vmem:[%s3 + $0x2e0] sm:$0xff]
  %v2758 = vld [vmem:[%s3 + $0x2e8] sm:$0xff]
  %v2759 = vld [vmem:[%s3 + $0x2f0] sm:$0xff]
  %v2760 = vld [vmem:[%s3 + $0x2f8] sm:$0xff]
  %v2761 = vld [vmem:[%s3 + $0x300] sm:$0xff]
  %v2762 = vld [vmem:[%s3 + $0x308] sm:$0xff]
  %v2763 = vld [vmem:[%s3 + $0x310] sm:$0xff]
  %v2764 = vld [vmem:[%s3 + $0x318] sm:$0xff]
  %v2765 = vld [vmem:[%s3 + $0x320] sm:$0xff]
  %v2766 = vld [vmem:[%s3 + $0x328] sm:$0xff]
  %v2767 = vld [vmem:[%s3 + $0x330] sm:$0xff]
  %v2768 = vld [vmem:[%s3 + $0x338] sm:$0xff]
  %v2769 = vld [vmem:[%s3 + $0x340] sm:$0xff]
  %v2770 = vld [vmem:[%s3 + $0x348] sm:$0xff]
  %v2771 = vld [vmem:[%s3 + $0x350] sm:$0xff]
  %v2772 = vld [vmem:[%s3 + $0x358] sm:$0xff]
  %v2773 = vld [vmem:[%s3 + $0x360] sm:$0xff]
  %v2774 = vld [vmem:[%s3 + $0x368] sm:$0xff]
  %v2775 = vld [vmem:[%s3 + $0x370] sm:$0xff]
  %v2776 = vld [vmem:[%s3 + $0x378] sm:$0xff]
  %v2777 = vld [vmem:[%s3 + $0x380] sm:$0xff]
  %v2778 = vld [vmem:[%s3 + $0x388] sm:$0xff]
  %v2779 = vld [vmem:[%s3 + $0x390] sm:$0xff]
  %v2780 = vld [vmem:[%s3 + $0x398] sm:$0xff]
  %v2781 = vld [vmem:[%s3 + $0x3a0] sm:$0xff]
  %v2782 = vld [vmem:[%s3 + $0x3a8] sm:$0xff]
  %v2783 = vld [vmem:[%s3 + $0x3b0] sm:$0xff]
  %v2784 = vld [vmem:[%s3 + $0x3b8] sm:$0xff]
  %v2785 = vld [vmem:[%s3 + $0x3c0] sm:$0xff]
  %v2786 = vld [vmem:[%s3 + $0x3c8] sm:$0xff]
  %v2787 = vld [vmem:[%s3 + $0x3d0] sm:$0xff]
  %v2788 = vld [vmem:[%s3 + $0x3d8] sm:$0xff]
  %v2789 = vld [vmem:[%s3 + $0x3e0] sm:$0xff]
  %v2790 = vld [vmem:[%s3 + $0x3e8] sm:$0xff]
  %v2791 = vld [vmem:[%s3 + $0x3f0] sm:$0xff]
  %v2792 = vld [vmem:[%s3 + $0x3f8] sm:$0xff]
  %v2793 = vld [vmem:[%s3 + $0x400] sm:$0xff]
  %v2794 = vld [vmem:[%s3 + $0x408] sm:$0xff]
  %v2795 = vld [vmem:[%s3 + $0x410] sm:$0xff]
  %v2796 = vld [vmem:[%s3 + $0x418] sm:$0xff]
  %v2797 = vld [vmem:[%s3 + $0x420] sm:$0xff]
  %v2798 = vld [vmem:[%s3 + $0x428] sm:$0xff]
  %v2799 = vld [vmem:[%s3 + $0x430] sm:$0xff]
  %v2800 = vld [vmem:[%s3 + $0x438] sm:$0xff]
  %v2801 = vld [vmem:[%s3 + $0x440] sm:$0xff]
  %v2802 = vld [vmem:[%s3 + $0x448] sm:$0xff]
  %v2803 = vld [vmem:[%s3 + $0x450] sm:$0xff]
  %v2804 = vld [vmem:[%s3 + $0x458] sm:$0xff]
  %v2805 = vld [vmem:[%s3 + $0x460] sm:$0xff]
  %v2806 = vld [vmem:[%s3 + $0x468] sm:$0xff]
  %v2807 = vld [vmem:[%s3 + $0x470] sm:$0xff]
  %v2808 = vld [vmem:[%s3 + $0x478] sm:$0xff]
  %v2809 = vld [vmem:[%s3 + $0x480] sm:$0xff]
  %v2810 = vld [vmem:[%s3 + $0x488] sm:$0xff]
  %v2811 = vld [vmem:[%s3 + $0x490] sm:$0xff]
  %v2812 = vld [vmem:[%s3 + $0x498] sm:$0xff]
  %v2813 = vld [vmem:[%s3 + $0x4a0] sm:$0xff]
  %v2814 = vld [vmem:[%s3 + $0x4a8] sm:$0xff]
  %v2815 = vld [vmem:[%s3 + $0x4b0] sm:$0xff]
  %v2816 = vld [vmem:[%s3 + $0x4b8] sm:$0xff]
  %v2817 = vld [vmem:[%s3 + $0x4c0] sm:$0xff]
  %v2818 = vld [vmem:[%s3 + $0x4c8] sm:$0xff]
  %v2819 = vld [vmem:[%s3 + $0x4d0] sm:$0xff]
  %v2820 = vld [vmem:[%s3 + $0x4d8] sm:$0xff]
  %v2821 = vld [vmem:[%s3 + $0x4e0] sm:$0xff]
  %v2822 = vld [vmem:[%s3 + $0x4e8] sm:$0xff]
  %v2823 = vld [vmem:[%s3 + $0x4f0] sm:$0xff]
  %v2824 = vld [vmem:[%s3 + $0x4f8] sm:$0xff]
  %v2825 = vld [vmem:[%s3 + $0x500] sm:$0xff]
  %v2826 = vld [vmem:[%s3 + $0x508] sm:$0xff]
  %v2827 = vld [vmem:[%s3 + $0x510] sm:$0xff]
  %v2828 = vld [vmem:[%s3 + $0x518] sm:$0xff]
  %v2829 = vld [vmem:[%s3 + $0x520] sm:$0xff]
  %v2830 = vld [vmem:[%s3 + $0x528] sm:$0xff]
  %v2831 = vld [vmem:[%s3 + $0x530] sm:$0xff]
  %v2832 = vld [vmem:[%s3 + $0x538] sm:$0xff]
  %v2833 = vld [vmem:[%s3 + $0x540] sm:$0xff]
  %v2834 = vld [vmem:[%s3 + $0x548] sm:$0xff]
  %v2835 = vld [vmem:[%s3 + $0x550] sm:$0xff]
  %v2836 = vld [vmem:[%s3 + $0x558] sm:$0xff]
  %v2837 = vld [vmem:[%s3 + $0x560] sm:$0xff]
  %v2838 = vld [vmem:[%s3 + $0x568] sm:$0xff]
  %v2839 = vld [vmem:[%s3 + $0x570] sm:$0xff]
  %v2840 = vld [vmem:[%s3 + $0x578] sm:$0xff]
  %v2841 = vld [vmem:[%s3 + $0x580] sm:$0xff]
  %v2842 = vld [vmem:[%s3 + $0x588] sm:$0xff]
  %v2843 = vld [vmem:[%s3 + $0x590] sm:$0xff]
  %v2844 = vld [vmem:[%s3 + $0x598] sm:$0xff]
  %v2845 = vld [vmem:[%s3 + $0x5a0] sm:$0xff]
  %v2846 = vld [vmem:[%s3 + $0x5a8] sm:$0xff]
  %v2847 = vld [vmem:[%s3 + $0x5b0] sm:$0xff]
  %v2848 = vld [vmem:[%s3 + $0x5b8] sm:$0xff]
  %v2849 = vld [vmem:[%s3 + $0x5c0] sm:$0xff]
  %v2850 = vld [vmem:[%s3 + $0x5c8] sm:$0xff]
  %v2851 = vld [vmem:[%s3 + $0x5d0] sm:$0xff]
  %v2852 = vld [vmem:[%s3 + $0x5d8] sm:$0xff]
  %v2853 = vld [vmem:[%s3 + $0x5e0] sm:$0xff]
  %v2854 = vld [vmem:[%s3 + $0x5e8] sm:$0xff]
  %v2855 = vld [vmem:[%s3 + $0x5f0] sm:$0xff]
  %v2856 = vld [vmem:[%s3 + $0x5f8] sm:$0xff]
  %v2857 = vld [vmem:[%s3 + $0x600] sm:$0xff]
  %v2858 = vld [vmem:[%s3 + $0x608] sm:$0xff]
  %v2859 = vld [vmem:[%s3 + $0x610] sm:$0xff]
  %v2860 = vld [vmem:[%s3 + $0x618] sm:$0xff]
  %v2861 = vld [vmem:[%s3 + $0x620] sm:$0xff]
  %v2862 = vld [vmem:[%s3 + $0x628] sm:$0xff]
  %v2863 = vld [vmem:[%s3 + $0x630] sm:$0xff]
  %v2864 = vld [vmem:[%s3 + $0x638] sm:$0xff]
  %v2865 = vld [vmem:[%s3 + $0x640] sm:$0xff]
  %v2866 = vld [vmem:[%s3 + $0x648] sm:$0xff]
  %v2867 = vld [vmem:[%s3 + $0x650] sm:$0xff]
  %v2868 = vld [vmem:[%s3 + $0x658] sm:$0xff]
  %v2869 = vld [vmem:[%s3 + $0x660] sm:$0xff]
  %v2870 = vld [vmem:[%s3 + $0x668] sm:$0xff]
  %v2871 = vld [vmem:[%s3 + $0x670] sm:$0xff]
  %v2872 = vld [vmem:[%s3 + $0x678] sm:$0xff]
  %v2873 = vld [vmem:[%s3 + $0x680] sm:$0xff]
  %v2874 = vld [vmem:[%s3 + $0x688] sm:$0xff]
  %v2875 = vld [vmem:[%s3 + $0x690] sm:$0xff]
  %v2876 = vld [vmem:[%s3 + $0x698] sm:$0xff]
  %v2877 = vld [vmem:[%s3 + $0x6a0] sm:$0xff]
  %v2878 = vld [vmem:[%s3 + $0x6a8] sm:$0xff]
  %v2879 = vld [vmem:[%s3 + $0x6b0] sm:$0xff]
  %v2880 = vld [vmem:[%s3 + $0x6b8] sm:$0xff]
  %v2881 = vld [vmem:[%s3 + $0x6c0] sm:$0xff]
  %v2882 = vld [vmem:[%s3 + $0x6c8] sm:$0xff]
  %v2883 = vld [vmem:[%s3 + $0x6d0] sm:$0xff]
  %v2884 = vld [vmem:[%s3 + $0x6d8] sm:$0xff]
  %v2885 = vld [vmem:[%s3 + $0x6e0] sm:$0xff]
  %v2886 = vld [vmem:[%s3 + $0x6e8] sm:$0xff]
  %v2887 = vld [vmem:[%s3 + $0x6f0] sm:$0xff]
  %v2888 = vld [vmem:[%s3 + $0x6f8] sm:$0xff]
  %v2889 = vld [vmem:[%s3 + $0x700] sm:$0xff]
  %v2890 = vld [vmem:[%s3 + $0x708] sm:$0xff]
  %v2891 = vld [vmem:[%s3 + $0x710] sm:$0xff]
  %v2892 = vld [vmem:[%s3 + $0x718] sm:$0xff]
  %v2893 = vld [vmem:[%s3 + $0x720] sm:$0xff]
  %v2894 = vld [vmem:[%s3 + $0x728] sm:$0xff]
  %v2895 = vld [vmem:[%s3 + $0x730] sm:$0xff]
  %v2896 = vld [vmem:[%s3 + $0x738] sm:$0xff]
  %v2897 = vld [vmem:[%s3 + $0x740] sm:$0xff]
  %v2898 = vld [vmem:[%s3 + $0x748] sm:$0xff]
  %v2899 = vld [vmem:[%s3 + $0x750] sm:$0xff]
  %v2900 = vld [vmem:[%s3 + $0x758] sm:$0xff]
  %v2901 = vld [vmem:[%s3 + $0x760] sm:$0xff]
  %v2902 = vld [vmem:[%s3 + $0x768] sm:$0xff]
  %v2903 = vld [vmem:[%s3 + $0x770] sm:$0xff]
  %v2904 = vld [vmem:[%s3 + $0x778] sm:$0xff]
  %v2905 = vld [vmem:[%s3 + $0x780] sm:$0xff]
  %v2906 = vld [vmem:[%s3 + $0x788] sm:$0xff]
  %v2907 = vld [vmem:[%s3 + $0x790] sm:$0xff]
  %v2908 = vld [vmem:[%s3 + $0x798] sm:$0xff]
  %v2909 = vld [vmem:[%s3 + $0x7a0] sm:$0xff]
  %v2910 = vld [vmem:[%s3 + $0x7a8] sm:$0xff]
  %v2911 = vld [vmem:[%s3 + $0x7b0] sm:$0xff]
  %v2912 = vld [vmem:[%s3 + $0x7b8] sm:$0xff]
  %v2913 = vld [vmem:[%s3 + $0x7c0] sm:$0xff]
  %v2914 = vld [vmem:[%s3 + $0x7c8] sm:$0xff]
  %v2915 = vld [vmem:[%s3 + $0x7d0] sm:$0xff]
  %v2916 = vld [vmem:[%s3 + $0x7d8] sm:$0xff]
  %v2917 = vld [vmem:[%s3 + $0x7e0] sm:$0xff]
  %v2918 = vld [vmem:[%s3 + $0x7e8] sm:$0xff]
  %v2919 = vld [vmem:[%s3 + $0x7f0] sm:$0xff]
  %v2920 = vld [vmem:[%s3 + $0x7f8] sm:$0xff]
  %v2921 = vld [vmem:[%s3 + $0x800] sm:$0xff]
  %v2922 = vld [vmem:[%s3 + $0x808] sm:$0xff]
  %v2923 = vld [vmem:[%s3 + $0x810] sm:$0xff]
  %v2924 = vld [vmem:[%s3 + $0x818] sm:$0xff]
  %v2925 = vld [vmem:[%s3 + $0x820] sm:$0xff]
  %v2926 = vld [vmem:[%s3 + $0x828] sm:$0xff]
  %v2927 = vld [vmem:[%s3 + $0x830] sm:$0xff]
  %v2928 = vld [vmem:[%s3 + $0x838] sm:$0xff]
  %v2929 = vld [vmem:[%s3 + $0x840] sm:$0xff]
  %v2930 = vld [vmem:[%s3 + $0x848] sm:$0xff]
  %v2931 = vld [vmem:[%s3 + $0x850] sm:$0xff]
  %v2932 = vld [vmem:[%s3 + $0x858] sm:$0xff]
  %v2933 = vld [vmem:[%s3 + $0x860] sm:$0xff]
  %v2934 = vld [vmem:[%s3 + $0x868] sm:$0xff]
  %v2935 = vld [vmem:[%s3 + $0x870] sm:$0xff]
  %v2936 = vld [vmem:[%s3 + $0x878] sm:$0xff]
  %v2937 = vld [vmem:[%s3 + $0x880] sm:$0xff]
  %v2938 = vld [vmem:[%s3 + $0x888] sm:$0xff]
  %v2939 = vld [vmem:[%s3 + $0x890] sm:$0xff]
  %v2940 = vld [vmem:[%s3 + $0x898] sm:$0xff]
  %v2941 = vld [vmem:[%s3 + $0x8a0] sm:$0xff]
  %v2942 = vld [vmem:[%s3 + $0x8a8] sm:$0xff]
  %v2943 = vld [vmem:[%s3 + $0x8b0] sm:$0xff]
  %v2944 = vld [vmem:[%s3 + $0x8b8] sm:$0xff]
  %v2945 = vld [vmem:[%s3 + $0x8c0] sm:$0xff]
  %v2946 = vld [vmem:[%s3 + $0x8c8] sm:$0xff]
  %v2947 = vld [vmem:[%s3 + $0x8d0] sm:$0xff]
  %v2948 = vld [vmem:[%s3 + $0x8d8] sm:$0xff]
  %v2949 = vld [vmem:[%s3 + $0x8e0] sm:$0xff]
  %v2950 = vld [vmem:[%s3 + $0x8e8] sm:$0xff]
  %v2951 = vld [vmem:[%s3 + $0x8f0] sm:$0xff]
  %v2952 = vld [vmem:[%s3 + $0x8f8] sm:$0xff]
  %v2953 = vld [vmem:[%s3 + $0x900] sm:$0xff]
  %v2954 = vld [vmem:[%s3 + $0x908] sm:$0xff]
  %v2955 = vld [vmem:[%s3 + $0x910] sm:$0xff]
  %v2956 = vld [vmem:[%s3 + $0x918] sm:$0xff]
  %v2957 = vld [vmem:[%s3 + $0x920] sm:$0xff]
  %v2958 = vld [vmem:[%s3 + $0x928] sm:$0xff]
  %v2959 = vld [vmem:[%s3 + $0x930] sm:$0xff]
  %v2960 = vld [vmem:[%s3 + $0x938] sm:$0xff]
  %v2961 = vld [vmem:[%s3 + $0x940] sm:$0xff]
  %v2962 = vld [vmem:[%s3 + $0x948] sm:$0xff]
  %v2963 = vld [vmem:[%s3 + $0x950] sm:$0xff]
  %v2964 = vld [vmem:[%s3 + $0x958] sm:$0xff]
  %v2965 = vld [vmem:[%s3 + $0x960] sm:$0xff]
  %v2966 = vld [vmem:[%s3 + $0x968] sm:$0xff]
  %v2967 = vld [vmem:[%s3 + $0x970] sm:$0xff]
  %v2968 = vld [vmem:[%s3 + $0x978] sm:$0xff]
  %v2969 = vld [vmem:[%s3 + $0x980] sm:$0xff]
  %v2970 = vld [vmem:[%s3 + $0x988] sm:$0xff]
  %v2971 = vld [vmem:[%s3 + $0x990] sm:$0xff]
  %v2972 = vld [vmem:[%s3 + $0x998] sm:$0xff]
  %v2973 = vld [vmem:[%s3 + $0x9a0] sm:$0xff]
  %v2974 = vld [vmem:[%s3 + $0x9a8] sm:$0xff]
  %v2975 = vld [vmem:[%s3 + $0x9b0] sm:$0xff]
  %v2976 = vld [vmem:[%s3 + $0x9b8] sm:$0xff]
  %v2977 = vld [vmem:[%s3 + $0x9c0] sm:$0xff]
  %v2978 = vld [vmem:[%s3 + $0x9c8] sm:$0xff]
  %v2979 = vld [vmem:[%s3 + $0x9d0] sm:$0xff]
  %v2980 = vld [vmem:[%s3 + $0x9d8] sm:$0xff]
  %v2981 = vld [vmem:[%s3 + $0x9e0] sm:$0xff]
  %v2982 = vld [vmem:[%s3 + $0x9e8] sm:$0xff]
  %v2983 = vld [vmem:[%s3 + $0x9f0] sm:$0xff]
  %v2984 = vld [vmem:[%s3 + $0x9f8] sm:$0xff]
  %v2985 = vld [vmem:[%s3 + $0xa00] sm:$0xff]
  %v2986 = vld [vmem:[%s3 + $0xa08] sm:$0xff]
  %v2987 = vld [vmem:[%s3 + $0xa10] sm:$0xff]
  %v2988 = vld [vmem:[%s3 + $0xa18] sm:$0xff]
  %v2989 = vld [vmem:[%s3 + $0xa20] sm:$0xff]
  %v2990 = vld [vmem:[%s3 + $0xa28] sm:$0xff]
  %v2991 = vld [vmem:[%s3 + $0xa30] sm:$0xff]
  %v2992 = vld [vmem:[%s3 + $0xa38] sm:$0xff]
  %v2993 = vld [vmem:[%s3 + $0xa40] sm:$0xff]
  %v2994 = vld [vmem:[%s3 + $0xa48] sm:$0xff]
  %v2995 = vld [vmem:[%s3 + $0xa50] sm:$0xff]
  %v2996 = vld [vmem:[%s3 + $0xa58] sm:$0xff]
  %v2997 = vld [vmem:[%s3 + $0xa60] sm:$0xff]
  %v2998 = vld [vmem:[%s3 + $0xa68] sm:$0xff]
  %v2999 = vld [vmem:[%s3 + $0xa70] sm:$0xff]
  %v3000 = vld [vmem:[%s3 + $0xa78] sm:$0xff]
  %v3001 = vld [vmem:[%s3 + $0xa80] sm:$0xff]
  %v3002 = vld [vmem:[%s3 + $0xa88] sm:$0xff]
  %v3003 = vld [vmem:[%s3 + $0xa90] sm:$0xff]
  %v3004 = vld [vmem:[%s3 + $0xa98] sm:$0xff]
  %v3005 = vld [vmem:[%s3 + $0xaa0] sm:$0xff]
  %v3006 = vld [vmem:[%s3 + $0xaa8] sm:$0xff]
  %v3007 = vld [vmem:[%s3 + $0xab0] sm:$0xff]
  %v3008 = vld [vmem:[%s3 + $0xab8] sm:$0xff]
  %v3009 = vld [vmem:[%s3 + $0xac0] sm:$0xff]
  %v3010 = vld [vmem:[%s3 + $0xac8] sm:$0xff]
  %v3011 = vld [vmem:[%s3 + $0xad0] sm:$0xff]
  %v3012 = vld [vmem:[%s3 + $0xad8] sm:$0xff]
  %v3013 = vld [vmem:[%s3 + $0xae0] sm:$0xff]
  %v3014 = vld [vmem:[%s3 + $0xae8] sm:$0xff]
  %v3015 = vld [vmem:[%s3 + $0xaf0] sm:$0xff]
  %v3016 = vld [vmem:[%s3 + $0xaf8] sm:$0xff]
  %v3017 = vld [vmem:[%s3 + $0xb00] sm:$0xff]
  %v3018 = vld [vmem:[%s3 + $0xb08] sm:$0xff]
  %v3019 = vld [vmem:[%s3 + $0xb10] sm:$0xff]
  %v3020 = vld [vmem:[%s3 + $0xb18] sm:$0xff]
  %v3021 = vld [vmem:[%s3 + $0xb20] sm:$0xff]
  %v3022 = vld [vmem:[%s3 + $0xb28] sm:$0xff]
  %v3023 = vld [vmem:[%s3 + $0xb30] sm:$0xff]
  %v3024 = vld [vmem:[%s3 + $0xb38] sm:$0xff]
  %v3025 = vld [vmem:[%s3 + $0xb40] sm:$0xff]
  %v3026 = vld [vmem:[%s3 + $0xb48] sm:$0xff]
  %v3027 = vld [vmem:[%s3 + $0xb50] sm:$0xff]
  %v3028 = vld [vmem:[%s3 + $0xb58] sm:$0xff]
  %v3029 = vld [vmem:[%s3 + $0xb60] sm:$0xff]
  %v3030 = vld [vmem:[%s3 + $0xb68] sm:$0xff]
  %v3031 = vld [vmem:[%s3 + $0xb70] sm:$0xff]
  %v3032 = vld [vmem:[%s3 + $0xb78] sm:$0xff]
  %v3033 = vld [vmem:[%s3 + $0xb80] sm:$0xff]
  %v3034 = vld [vmem:[%s3 + $0xb88] sm:$0xff]
  %v3035 = vld [vmem:[%s3 + $0xb90] sm:$0xff]
  %v3036 = vld [vmem:[%s3 + $0xb98] sm:$0xff]
  %v3037 = vld [vmem:[%s3 + $0xba0] sm:$0xff]
  %v3038 = vld [vmem:[%s3 + $0xba8] sm:$0xff]
  %v3039 = vld [vmem:[%s3 + $0xbb0] sm:$0xff]
  %v3040 = vld [vmem:[%s3 + $0xbb8] sm:$0xff]
  %v3041 = vld [vmem:[%s3 + $0xbc0] sm:$0xff]
  %v3042 = vld [vmem:[%s3 + $0xbc8] sm:$0xff]
  %v3043 = vld [vmem:[%s3 + $0xbd0] sm:$0xff]
  %v3044 = vld [vmem:[%s3 + $0xbd8] sm:$0xff]
  %v3045 = vld [vmem:[%s3 + $0xbe0] sm:$0xff]
  %v3046 = vld [vmem:[%s3 + $0xbe8] sm:$0xff]
  %v3047 = vld [vmem:[%s3 + $0xbf0] sm:$0xff]
  %v3048 = vld [vmem:[%s3 + $0xbf8] sm:$0xff]
  %v3049 = vld [vmem:[%s3 + $0xc00] sm:$0xff]
  %v3050 = vld [vmem:[%s3 + $0xc08] sm:$0xff]
  %v3051 = vld [vmem:[%s3 + $0xc10] sm:$0xff]
  %v3052 = vld [vmem:[%s3 + $0xc18] sm:$0xff]
  %v3053 = vld [vmem:[%s3 + $0xc20] sm:$0xff]
  %v3054 = vld [vmem:[%s3 + $0xc28] sm:$0xff]
  %v3055 = vld [vmem:[%s3 + $0xc30] sm:$0xff]
  %v3056 = vld [vmem:[%s3 + $0xc38] sm:$0xff]
  %v3057 = vld [vmem:[%s3 + $0xc40] sm:$0xff]
  %v3058 = vld [vmem:[%s3 + $0xc48] sm:$0xff]
  %v3059 = vld [vmem:[%s3 + $0xc50] sm:$0xff]
  %v3060 = vld [vmem:[%s3 + $0xc58] sm:$0xff]
  %v3061 = vld [vmem:[%s3 + $0xc60] sm:$0xff]
  %v3062 = vld [vmem:[%s3 + $0xc68] sm:$0xff]
  %v3063 = vld [vmem:[%s3 + $0xc70] sm:$0xff]
  %v3064 = vld [vmem:[%s3 + $0xc78] sm:$0xff]
  %v3065 = vld [vmem:[%s3 + $0xc80] sm:$0xff]
  %v3066 = vld [vmem:[%s3 + $0xc88] sm:$0xff]
  %v3067 = vld [vmem:[%s3 + $0xc90] sm:$0xff]
  %v3068 = vld [vmem:[%s3 + $0xc98] sm:$0xff]
  %v3069 = vld [vmem:[%s3 + $0xca0] sm:$0xff]
  %v3070 = vld [vmem:[%s3 + $0xca8] sm:$0xff]
  %v3071 = vld [vmem:[%s3 + $0xcb0] sm:$0xff]
  %v3072 = vld [vmem:[%s3 + $0xcb8] sm:$0xff]
  %v3073 = vld [vmem:[%s3 + $0xcc0] sm:$0xff]
  %v3074 = vld [vmem:[%s3 + $0xcc8] sm:$0xff]
  %v3075 = vld [vmem:[%s3 + $0xcd0] sm:$0xff]
  %v3076 = vld [vmem:[%s3 + $0xcd8] sm:$0xff]
  %v3077 = vld [vmem:[%s3 + $0xce0] sm:$0xff]
  %v3078 = vld [vmem:[%s3 + $0xce8] sm:$0xff]
  %v3079 = vld [vmem:[%s3 + $0xcf0] sm:$0xff]
  %v3080 = vld [vmem:[%s3 + $0xcf8] sm:$0xff]
  %v3081 = vld [vmem:[%s3 + $0xd00] sm:$0xff]
  %v3082 = vld [vmem:[%s3 + $0xd08] sm:$0xff]
  %v3083 = vld [vmem:[%s3 + $0xd10] sm:$0xff]
  %v3084 = vld [vmem:[%s3 + $0xd18] sm:$0xff]
  %v3085 = vld [vmem:[%s3 + $0xd20] sm:$0xff]
  %v3086 = vld [vmem:[%s3 + $0xd28] sm:$0xff]
  %v3087 = vld [vmem:[%s3 + $0xd30] sm:$0xff]
  %v3088 = vld [vmem:[%s3 + $0xd38] sm:$0xff]
  %v3089 = vld [vmem:[%s3 + $0xd40] sm:$0xff]
  %v3090 = vld [vmem:[%s3 + $0xd48] sm:$0xff]
  %v3091 = vld [vmem:[%s3 + $0xd50] sm:$0xff]
  %v3092 = vld [vmem:[%s3 + $0xd58] sm:$0xff]
  %v3093 = vld [vmem:[%s3 + $0xd60] sm:$0xff]
  %v3094 = vld [vmem:[%s3 + $0xd68] sm:$0xff]
  %v3095 = vld [vmem:[%s3 + $0xd70] sm:$0xff]
  %v3096 = vld [vmem:[%s3 + $0xd78] sm:$0xff]
  %v3097 = vld [vmem:[%s3 + $0xd80] sm:$0xff]
  %v3098 = vld [vmem:[%s3 + $0xd88] sm:$0xff]
  %v3099 = vld [vmem:[%s3 + $0xd90] sm:$0xff]
  %v3100 = vld [vmem:[%s3 + $0xd98] sm:$0xff]
  %v3101 = vld [vmem:[%s3 + $0xda0] sm:$0xff]
  %v3102 = vld [vmem:[%s3 + $0xda8] sm:$0xff]
  %v3103 = vld [vmem:[%s3 + $0xdb0] sm:$0xff]
  %v3104 = vld [vmem:[%s3 + $0xdb8] sm:$0xff]
  %v3105 = vld [vmem:[%s3 + $0xdc0] sm:$0xff]
  %v3106 = vld [vmem:[%s3 + $0xdc8] sm:$0xff]
  %v3107 = vld [vmem:[%s3 + $0xdd0] sm:$0xff]
  %v3108 = vld [vmem:[%s3 + $0xdd8] sm:$0xff]
  %v3109 = vld [vmem:[%s3 + $0xde0] sm:$0xff]
  %v3110 = vld [vmem:[%s3 + $0xde8] sm:$0xff]
  %v3111 = vld [vmem:[%s3 + $0xdf0] sm:$0xff]
  %v3112 = vld [vmem:[%s3 + $0xdf8] sm:$0xff]
  %v3113 = vld [vmem:[%s3 + $0xe00] sm:$0xff]
  %v3114 = vld [vmem:[%s3 + $0xe08] sm:$0xff]
  %v3115 = vld [vmem:[%s3 + $0xe10] sm:$0xff]
  %v3116 = vld [vmem:[%s3 + $0xe18] sm:$0xff]
  %v3117 = vld [vmem:[%s3 + $0xe20] sm:$0xff]
  %v3118 = vld [vmem:[%s3 + $0xe28] sm:$0xff]
  %v3119 = vld [vmem:[%s3 + $0xe30] sm:$0xff]
  %v3120 = vld [vmem:[%s3 + $0xe38] sm:$0xff]
  %v3121 = vld [vmem:[%s3 + $0xe40] sm:$0xff]
  %v3122 = vld [vmem:[%s3 + $0xe48] sm:$0xff]
  %v3123 = vld [vmem:[%s3 + $0xe50] sm:$0xff]
  %v3124 = vld [vmem:[%s3 + $0xe58] sm:$0xff]
  %v3125 = vld [vmem:[%s3 + $0xe60] sm:$0xff]
  %v3126 = vld [vmem:[%s3 + $0xe68] sm:$0xff]
  %v3127 = vld [vmem:[%s3 + $0xe70] sm:$0xff]
  %v3128 = vld [vmem:[%s3 + $0xe78] sm:$0xff]
  %v3129 = vld [vmem:[%s3 + $0xe80] sm:$0xff]
  %v3130 = vld [vmem:[%s3 + $0xe88] sm:$0xff]
  %v3131 = vld [vmem:[%s3 + $0xe90] sm:$0xff]
  %v3132 = vld [vmem:[%s3 + $0xe98] sm:$0xff]
  %v3133 = vld [vmem:[%s3 + $0xea0] sm:$0xff]
  %v3134 = vld [vmem:[%s3 + $0xea8] sm:$0xff]
  %v3135 = vld [vmem:[%s3 + $0xeb0] sm:$0xff]
  %v3136 = vld [vmem:[%s3 + $0xeb8] sm:$0xff]
  %v3137 = vld [vmem:[%s3 + $0xec0] sm:$0xff]
  %v3138 = vld [vmem:[%s3 + $0xec8] sm:$0xff]
  %v3139 = vld [vmem:[%s3 + $0xed0] sm:$0xff]
  %v3140 = vld [vmem:[%s3 + $0xed8] sm:$0xff]
  %v3141 = vld [vmem:[%s3 + $0xee0] sm:$0xff]
  %v3142 = vld [vmem:[%s3 + $0xee8] sm:$0xff]
  %v3143 = vld [vmem:[%s3 + $0xef0] sm:$0xff]
  %v3144 = vld [vmem:[%s3 + $0xef8] sm:$0xff]
  %v3145 = vld [vmem:[%s3 + $0xf00] sm:$0xff]
  %v3146 = vld [vmem:[%s3 + $0xf08] sm:$0xff]
  %v3147 = vld [vmem:[%s3 + $0xf10] sm:$0xff]
  %v3148 = vld [vmem:[%s3 + $0xf18] sm:$0xff]
  %v3149 = vld [vmem:[%s3 + $0xf20] sm:$0xff]
  %v3150 = vld [vmem:[%s3 + $0xf28] sm:$0xff]
  %v3151 = vld [vmem:[%s3 + $0xf30] sm:$0xff]
  %v3152 = vld [vmem:[%s3 + $0xf38] sm:$0xff]
  %v3153 = vld [vmem:[%s3 + $0xf40] sm:$0xff]
  %v3154 = vld [vmem:[%s3 + $0xf48] sm:$0xff]
  %v3155 = vld [vmem:[%s3 + $0xf50] sm:$0xff]
  %v3156 = vld [vmem:[%s3 + $0xf58] sm:$0xff]
  %v3157 = vld [vmem:[%s3 + $0xf60] sm:$0xff]
  %v3158 = vld [vmem:[%s3 + $0xf68] sm:$0xff]
  %v3159 = vld [vmem:[%s3 + $0xf70] sm:$0xff]
  %v3160 = vld [vmem:[%s3 + $0xf78] sm:$0xff]
  %v3161 = vld [vmem:[%s3 + $0xf80] sm:$0xff]
  %v3162 = vld [vmem:[%s3 + $0xf88] sm:$0xff]
  %v3163 = vld [vmem:[%s3 + $0xf90] sm:$0xff]
  %v3164 = vld [vmem:[%s3 + $0xf98] sm:$0xff]
  %v3165 = vld [vmem:[%s3 + $0xfa0] sm:$0xff]
  %v3166 = vld [vmem:[%s3 + $0xfa8] sm:$0xff]
  %v3167 = vld [vmem:[%s3 + $0xfb0] sm:$0xff]
  %v3168 = vld [vmem:[%s3 + $0xfb8] sm:$0xff]
  %v3169 = vld [vmem:[%s3 + $0xfc0] sm:$0xff]
  %v3170 = vld [vmem:[%s3 + $0xfc8] sm:$0xff]
  %v3171 = vld [vmem:[%s3 + $0xfd0] sm:$0xff]
  %v3172 = vld [vmem:[%s3 + $0xfd8] sm:$0xff]
  %v3173 = vld [vmem:[%s3 + $0xfe0] sm:$0xff]
  %v3174 = vld [vmem:[%s3 + $0xfe8] sm:$0xff]
  %v3175 = vld [vmem:[%s3 + $0xff0] sm:$0xff]
  %v3176 = vld [vmem:[%s3 + $0xff8] sm:$0xff]
  %v3177 = vmul.f32 %v2153, %v2665
  %v3178 = vmul.f32 %v2154, %v2666
  %v3179 = vmul.f32 %v2155, %v2667
  %v3180 = vmul.f32 %v2156, %v2668
  %v3181 = vmul.f32 %v2157, %v2669
  %v3182 = vmul.f32 %v2158, %v2670
  %v3183 = vmul.f32 %v2159, %v2671
  %v3184 = vmul.f32 %v2160, %v2672
  %v3185 = vmul.f32 %v2161, %v2673
  %v3186 = vmul.f32 %v2162, %v2674
  %v3187 = vmul.f32 %v2163, %v2675
  %v3188 = vmul.f32 %v2164, %v2676
  %v3189 = vmul.f32 %v2165, %v2677
  %v3190 = vmul.f32 %v2166, %v2678
  %v3191 = vmul.f32 %v2167, %v2679
  %v3192 = vmul.f32 %v2168, %v2680
  %v3193 = vmul.f32 %v2169, %v2681
  %v3194 = vmul.f32 %v2170, %v2682
  %v3195 = vmul.f32 %v2171, %v2683
  %v3196 = vmul.f32 %v2172, %v2684
  %v3197 = vmul.f32 %v2173, %v2685
  %v3198 = vmul.f32 %v2174, %v2686
  %v3199 = vmul.f32 %v2175, %v2687
  %v3200 = vmul.f32 %v2176, %v2688
  %v3201 = vmul.f32 %v2177, %v2689
  %v3202 = vmul.f32 %v2178, %v2690
  %v3203 = vmul.f32 %v2179, %v2691
  %v3204 = vmul.f32 %v2180, %v2692
  %v3205 = vmul.f32 %v2181, %v2693
  %v3206 = vmul.f32 %v2182, %v2694
  %v3207 = vmul.f32 %v2183, %v2695
  %v3208 = vmul.f32 %v2184, %v2696
  %v3209 = vmul.f32 %v2185, %v2697
  %v3210 = vmul.f32 %v2186, %v2698
  %v3211 = vmul.f32 %v2187, %v2699
  %v3212 = vmul.f32 %v2188, %v2700
  %v3213 = vmul.f32 %v2189, %v2701
  %v3214 = vmul.f32 %v2190, %v2702
  %v3215 = vmul.f32 %v2191, %v2703
  %v3216 = vmul.f32 %v2192, %v2704
  %v3217 = vmul.f32 %v2193, %v2705
  %v3218 = vmul.f32 %v2194, %v2706
  %v3219 = vmul.f32 %v2195, %v2707
  %v3220 = vmul.f32 %v2196, %v2708
  %v3221 = vmul.f32 %v2197, %v2709
  %v3222 = vmul.f32 %v2198, %v2710
  %v3223 = vmul.f32 %v2199, %v2711
  %v3224 = vmul.f32 %v2200, %v2712
  %v3225 = vmul.f32 %v2201, %v2713
  %v3226 = vmul.f32 %v2202, %v2714
  %v3227 = vmul.f32 %v2203, %v2715
  %v3228 = vmul.f32 %v2204, %v2716
  %v3229 = vmul.f32 %v2205, %v2717
  %v3230 = vmul.f32 %v2206, %v2718
  %v3231 = vmul.f32 %v2207, %v2719
  %v3232 = vmul.f32 %v2208, %v2720
  %v3233 = vmul.f32 %v2209, %v2721
  %v3234 = vmul.f32 %v2210, %v2722
  %v3235 = vmul.f32 %v2211, %v2723
  %v3236 = vmul.f32 %v2212, %v2724
  %v3237 = vmul.f32 %v2213, %v2725
  %v3238 = vmul.f32 %v2214, %v2726
  %v3239 = vmul.f32 %v2215, %v2727
  %v3240 = vmul.f32 %v2216, %v2728
  %v3241 = vmul.f32 %v2217, %v2729
  %v3242 = vmul.f32 %v2218, %v2730
  %v3243 = vmul.f32 %v2219, %v2731
  %v3244 = vmul.f32 %v2220, %v2732
  %v3245 = vmul.f32 %v2221, %v2733
  %v3246 = vmul.f32 %v2222, %v2734
  %v3247 = vmul.f32 %v2223, %v2735
  %v3248 = vmul.f32 %v2224, %v2736
  %v3249 = vmul.f32 %v2225, %v2737
  %v3250 = vmul.f32 %v2226, %v2738
  %v3251 = vmul.f32 %v2227, %v2739
  %v3252 = vmul.f32 %v2228, %v2740
  %v3253 = vmul.f32 %v2229, %v2741
  %v3254 = vmul.f32 %v2230, %v2742
  %v3255 = vmul.f32 %v2231, %v2743
  %v3256 = vmul.f32 %v2232, %v2744
  %v3257 = vmul.f32 %v2233, %v2745
  %v3258 = vmul.f32 %v2234, %v2746
  %v3259 = vmul.f32 %v2235, %v2747
  %v3260 = vmul.f32 %v2236, %v2748
  %v3261 = vmul.f32 %v2237, %v2749
  %v3262 = vmul.f32 %v2238, %v2750
  %v3263 = vmul.f32 %v2239, %v2751
  %v3264 = vmul.f32 %v2240, %v2752
  %v3265 = vmul.f32 %v2241, %v2753
  %v3266 = vmul.f32 %v2242, %v2754
  %v3267 = vmul.f32 %v2243, %v2755
  %v3268 = vmul.f32 %v2244, %v2756
  %v3269 = vmul.f32 %v2245, %v2757
  %v3270 = vmul.f32 %v2246, %v2758
  %v3271 = vmul.f32 %v2247, %v2759
  %v3272 = vmul.f32 %v2248, %v2760
  %v3273 = vmul.f32 %v2249, %v2761
  %v3274 = vmul.f32 %v2250, %v2762
  %v3275 = vmul.f32 %v2251, %v2763
  %v3276 = vmul.f32 %v2252, %v2764
  %v3277 = vmul.f32 %v2253, %v2765
  %v3278 = vmul.f32 %v2254, %v2766
  %v3279 = vmul.f32 %v2255, %v2767
  %v3280 = vmul.f32 %v2256, %v2768
  %v3281 = vmul.f32 %v2257, %v2769
  %v3282 = vmul.f32 %v2258, %v2770
  %v3283 = vmul.f32 %v2259, %v2771
  %v3284 = vmul.f32 %v2260, %v2772
  %v3285 = vmul.f32 %v2261, %v2773
  %v3286 = vmul.f32 %v2262, %v2774
  %v3287 = vmul.f32 %v2263, %v2775
  %v3288 = vmul.f32 %v2264, %v2776
  %v3289 = vmul.f32 %v2265, %v2777
  %v3290 = vmul.f32 %v2266, %v2778
  %v3291 = vmul.f32 %v2267, %v2779
  %v3292 = vmul.f32 %v2268, %v2780
  %v3293 = vmul.f32 %v2269, %v2781
  %v3294 = vmul.f32 %v2270, %v2782
  %v3295 = vmul.f32 %v2271, %v2783
  %v3296 = vmul.f32 %v2272, %v2784
  %v3297 = vmul.f32 %v2273, %v2785
  %v3298 = vmul.f32 %v2274, %v2786
  %v3299 = vmul.f32 %v2275, %v2787
  %v3300 = vmul.f32 %v2276, %v2788
  %v3301 = vmul.f32 %v2277, %v2789
  %v3302 = vmul.f32 %v2278, %v2790
  %v3303 = vmul.f32 %v2279, %v2791
  %v3304 = vmul.f32 %v2280, %v2792
  %v3305 = vmul.f32 %v2281, %v2793
  %v3306 = vmul.f32 %v2282, %v2794
  %v3307 = vmul.f32 %v2283, %v2795
  %v3308 = vmul.f32 %v2284, %v2796
  %v3309 = vmul.f32 %v2285, %v2797
  %v3310 = vmul.f32 %v2286, %v2798
  %v3311 = vmul.f32 %v2287, %v2799
  %v3312 = vmul.f32 %v2288, %v2800
  %v3313 = vmul.f32 %v2289, %v2801
  %v3314 = vmul.f32 %v2290, %v2802
  %v3315 = vmul.f32 %v2291, %v2803
  %v3316 = vmul.f32 %v2292, %v2804
  %v3317 = vmul.f32 %v2293, %v2805
  %v3318 = vmul.f32 %v2294, %v2806
  %v3319 = vmul.f32 %v2295, %v2807
  %v3320 = vmul.f32 %v2296, %v2808
  %v3321 = vmul.f32 %v2297, %v2809
  %v3322 = vmul.f32 %v2298, %v2810
  %v3323 = vmul.f32 %v2299, %v2811
  %v3324 = vmul.f32 %v2300, %v2812
  %v3325 = vmul.f32 %v2301, %v2813
  %v3326 = vmul.f32 %v2302, %v2814
  %v3327 = vmul.f32 %v2303, %v2815
  %v3328 = vmul.f32 %v2304, %v2816
  %v3329 = vmul.f32 %v2305, %v2817
  %v3330 = vmul.f32 %v2306, %v2818
  %v3331 = vmul.f32 %v2307, %v2819
  %v3332 = vmul.f32 %v2308, %v2820
  %v3333 = vmul.f32 %v2309, %v2821
  %v3334 = vmul.f32 %v2310, %v2822
  %v3335 = vmul.f32 %v2311, %v2823
  %v3336 = vmul.f32 %v2312, %v2824
  %v3337 = vmul.f32 %v2313, %v2825
  %v3338 = vmul.f32 %v2314, %v2826
  %v3339 = vmul.f32 %v2315, %v2827
  %v3340 = vmul.f32 %v2316, %v2828
  %v3341 = vmul.f32 %v2317, %v2829
  %v3342 = vmul.f32 %v2318, %v2830
  %v3343 = vmul.f32 %v2319, %v2831
  %v3344 = vmul.f32 %v2320, %v2832
  %v3345 = vmul.f32 %v2321, %v2833
  %v3346 = vmul.f32 %v2322, %v2834
  %v3347 = vmul.f32 %v2323, %v2835
  %v3348 = vmul.f32 %v2324, %v2836
  %v3349 = vmul.f32 %v2325, %v2837
  %v3350 = vmul.f32 %v2326, %v2838
  %v3351 = vmul.f32 %v2327, %v2839
  %v3352 = vmul.f32 %v2328, %v2840
  %v3353 = vmul.f32 %v2329, %v2841
  %v3354 = vmul.f32 %v2330, %v2842
  %v3355 = vmul.f32 %v2331, %v2843
  %v3356 = vmul.f32 %v2332, %v2844
  %v3357 = vmul.f32 %v2333, %v2845
  %v3358 = vmul.f32 %v2334, %v2846
  %v3359 = vmul.f32 %v2335, %v2847
  %v3360 = vmul.f32 %v2336, %v2848
  %v3361 = vmul.f32 %v2337, %v2849
  %v3362 = vmul.f32 %v2338, %v2850
  %v3363 = vmul.f32 %v2339, %v2851
  %v3364 = vmul.f32 %v2340, %v2852
  %v3365 = vmul.f32 %v2341, %v2853
  %v3366 = vmul.f32 %v2342, %v2854
  %v3367 = vmul.f32 %v2343, %v2855
  %v3368 = vmul.f32 %v2344, %v2856
  %v3369 = vmul.f32 %v2345, %v2857
  %v3370 = vmul.f32 %v2346, %v2858
  %v3371 = vmul.f32 %v2347, %v2859
  %v3372 = vmul.f32 %v2348, %v2860
  %v3373 = vmul.f32 %v2349, %v2861
  %v3374 = vmul.f32 %v2350, %v2862
  %v3375 = vmul.f32 %v2351, %v2863
  %v3376 = vmul.f32 %v2352, %v2864
  %v3377 = vmul.f32 %v2353, %v2865
  %v3378 = vmul.f32 %v2354, %v2866
  %v3379 = vmul.f32 %v2355, %v2867
  %v3380 = vmul.f32 %v2356, %v2868
  %v3381 = vmul.f32 %v2357, %v2869
  %v3382 = vmul.f32 %v2358, %v2870
  %v3383 = vmul.f32 %v2359, %v2871
  %v3384 = vmul.f32 %v2360, %v2872
  %v3385 = vmul.f32 %v2361, %v2873
  %v3386 = vmul.f32 %v2362, %v2874
  %v3387 = vmul.f32 %v2363, %v2875
  %v3388 = vmul.f32 %v2364, %v2876
  %v3389 = vmul.f32 %v2365, %v2877
  %v3390 = vmul.f32 %v2366, %v2878
  %v3391 = vmul.f32 %v2367, %v2879
  %v3392 = vmul.f32 %v2368, %v2880
  %v3393 = vmul.f32 %v2369, %v2881
  %v3394 = vmul.f32 %v2370, %v2882
  %v3395 = vmul.f32 %v2371, %v2883
  %v3396 = vmul.f32 %v2372, %v2884
  %v3397 = vmul.f32 %v2373, %v2885
  %v3398 = vmul.f32 %v2374, %v2886
  %v3399 = vmul.f32 %v2375, %v2887
  %v3400 = vmul.f32 %v2376, %v2888
  %v3401 = vmul.f32 %v2377, %v2889
  %v3402 = vmul.f32 %v2378, %v2890
  %v3403 = vmul.f32 %v2379, %v2891
  %v3404 = vmul.f32 %v2380, %v2892
  %v3405 = vmul.f32 %v2381, %v2893
  %v3406 = vmul.f32 %v2382, %v2894
  %v3407 = vmul.f32 %v2383, %v2895
  %v3408 = vmul.f32 %v2384, %v2896
  %v3409 = vmul.f32 %v2385, %v2897
  %v3410 = vmul.f32 %v2386, %v2898
  %v3411 = vmul.f32 %v2387, %v2899
  %v3412 = vmul.f32 %v2388, %v2900
  %v3413 = vmul.f32 %v2389, %v2901
  %v3414 = vmul.f32 %v2390, %v2902
  %v3415 = vmul.f32 %v2391, %v2903
  %v3416 = vmul.f32 %v2392, %v2904
  %v3417 = vmul.f32 %v2393, %v2905
  %v3418 = vmul.f32 %v2394, %v2906
  %v3419 = vmul.f32 %v2395, %v2907
  %v3420 = vmul.f32 %v2396, %v2908
  %v3421 = vmul.f32 %v2397, %v2909
  %v3422 = vmul.f32 %v2398, %v2910
  %v3423 = vmul.f32 %v2399, %v2911
  %v3424 = vmul.f32 %v2400, %v2912
  %v3425 = vmul.f32 %v2401, %v2913
  %v3426 = vmul.f32 %v2402, %v2914
  %v3427 = vmul.f32 %v2403, %v2915
  %v3428 = vmul.f32 %v2404, %v2916
  %v3429 = vmul.f32 %v2405, %v2917
  %v3430 = vmul.f32 %v2406, %v2918
  %v3431 = vmul.f32 %v2407, %v2919
  %v3432 = vmul.f32 %v2408, %v2920
  %v3433 = vmul.f32 %v2409, %v2921
  %v3434 = vmul.f32 %v2410, %v2922
  %v3435 = vmul.f32 %v2411, %v2923
  %v3436 = vmul.f32 %v2412, %v2924
  %v3437 = vmul.f32 %v2413, %v2925
  %v3438 = vmul.f32 %v2414, %v2926
  %v3439 = vmul.f32 %v2415, %v2927
  %v3440 = vmul.f32 %v2416, %v2928
  %v3441 = vmul.f32 %v2417, %v2929
  %v3442 = vmul.f32 %v2418, %v2930
  %v3443 = vmul.f32 %v2419, %v2931
  %v3444 = vmul.f32 %v2420, %v2932
  %v3445 = vmul.f32 %v2421, %v2933
  %v3446 = vmul.f32 %v2422, %v2934
  %v3447 = vmul.f32 %v2423, %v2935
  %v3448 = vmul.f32 %v2424, %v2936
  %v3449 = vmul.f32 %v2425, %v2937
  %v3450 = vmul.f32 %v2426, %v2938
  %v3451 = vmul.f32 %v2427, %v2939
  %v3452 = vmul.f32 %v2428, %v2940
  %v3453 = vmul.f32 %v2429, %v2941
  %v3454 = vmul.f32 %v2430, %v2942
  %v3455 = vmul.f32 %v2431, %v2943
  %v3456 = vmul.f32 %v2432, %v2944
  %v3457 = vmul.f32 %v2433, %v2945
  %v3458 = vmul.f32 %v2434, %v2946
  %v3459 = vmul.f32 %v2435, %v2947
  %v3460 = vmul.f32 %v2436, %v2948
  %v3461 = vmul.f32 %v2437, %v2949
  %v3462 = vmul.f32 %v2438, %v2950
  %v3463 = vmul.f32 %v2439, %v2951
  %v3464 = vmul.f32 %v2440, %v2952
  %v3465 = vmul.f32 %v2441, %v2953
  %v3466 = vmul.f32 %v2442, %v2954
  %v3467 = vmul.f32 %v2443, %v2955
  %v3468 = vmul.f32 %v2444, %v2956
  %v3469 = vmul.f32 %v2445, %v2957
  %v3470 = vmul.f32 %v2446, %v2958
  %v3471 = vmul.f32 %v2447, %v2959
  %v3472 = vmul.f32 %v2448, %v2960
  %v3473 = vmul.f32 %v2449, %v2961
  %v3474 = vmul.f32 %v2450, %v2962
  %v3475 = vmul.f32 %v2451, %v2963
  %v3476 = vmul.f32 %v2452, %v2964
  %v3477 = vmul.f32 %v2453, %v2965
  %v3478 = vmul.f32 %v2454, %v2966
  %v3479 = vmul.f32 %v2455, %v2967
  %v3480 = vmul.f32 %v2456, %v2968
  %v3481 = vmul.f32 %v2457, %v2969
  %v3482 = vmul.f32 %v2458, %v2970
  %v3483 = vmul.f32 %v2459, %v2971
  %v3484 = vmul.f32 %v2460, %v2972
  %v3485 = vmul.f32 %v2461, %v2973
  %v3486 = vmul.f32 %v2462, %v2974
  %v3487 = vmul.f32 %v2463, %v2975
  %v3488 = vmul.f32 %v2464, %v2976
  %v3489 = vmul.f32 %v2465, %v2977
  %v3490 = vmul.f32 %v2466, %v2978
  %v3491 = vmul.f32 %v2467, %v2979
  %v3492 = vmul.f32 %v2468, %v2980
  %v3493 = vmul.f32 %v2469, %v2981
  %v3494 = vmul.f32 %v2470, %v2982
  %v3495 = vmul.f32 %v2471, %v2983
  %v3496 = vmul.f32 %v2472, %v2984
  %v3497 = vmul.f32 %v2473, %v2985
  %v3498 = vmul.f32 %v2474, %v2986
  %v3499 = vmul.f32 %v2475, %v2987
  %v3500 = vmul.f32 %v2476, %v2988
  %v3501 = vmul.f32 %v2477, %v2989
  %v3502 = vmul.f32 %v2478, %v2990
  %v3503 = vmul.f32 %v2479, %v2991
  %v3504 = vmul.f32 %v2480, %v2992
  %v3505 = vmul.f32 %v2481, %v2993
  %v3506 = vmul.f32 %v2482, %v2994
  %v3507 = vmul.f32 %v2483, %v2995
  %v3508 = vmul.f32 %v2484, %v2996
  %v3509 = vmul.f32 %v2485, %v2997
  %v3510 = vmul.f32 %v2486, %v2998
  %v3511 = vmul.f32 %v2487, %v2999
  %v3512 = vmul.f32 %v2488, %v3000
  %v3513 = vmul.f32 %v2489, %v3001
  %v3514 = vmul.f32 %v2490, %v3002
  %v3515 = vmul.f32 %v2491, %v3003
  %v3516 = vmul.f32 %v2492, %v3004
  %v3517 = vmul.f32 %v2493, %v3005
  %v3518 = vmul.f32 %v2494, %v3006
  %v3519 = vmul.f32 %v2495, %v3007
  %v3520 = vmul.f32 %v2496, %v3008
  %v3521 = vmul.f32 %v2497, %v3009
  %v3522 = vmul.f32 %v2498, %v3010
  %v3523 = vmul.f32 %v2499, %v3011
  %v3524 = vmul.f32 %v2500, %v3012
  %v3525 = vmul.f32 %v2501, %v3013
  %v3526 = vmul.f32 %v2502, %v3014
  %v3527 = vmul.f32 %v2503, %v3015
  %v3528 = vmul.f32 %v2504, %v3016
  %v3529 = vmul.f32 %v2505, %v3017
  %v3530 = vmul.f32 %v2506, %v3018
  %v3531 = vmul.f32 %v2507, %v3019
  %v3532 = vmul.f32 %v2508, %v3020
  %v3533 = vmul.f32 %v2509, %v3021
  %v3534 = vmul.f32 %v2510, %v3022
  %v3535 = vmul.f32 %v2511, %v3023
  %v3536 = vmul.f32 %v2512, %v3024
  %v3537 = vmul.f32 %v2513, %v3025
  %v3538 = vmul.f32 %v2514, %v3026
  %v3539 = vmul.f32 %v2515, %v3027
  %v3540 = vmul.f32 %v2516, %v3028
  %v3541 = vmul.f32 %v2517, %v3029
  %v3542 = vmul.f32 %v2518, %v3030
  %v3543 = vmul.f32 %v2519, %v3031
  %v3544 = vmul.f32 %v2520, %v3032
  %v3545 = vmul.f32 %v2521, %v3033
  %v3546 = vmul.f32 %v2522, %v3034
  %v3547 = vmul.f32 %v2523, %v3035
  %v3548 = vmul.f32 %v2524, %v3036
  %v3549 = vmul.f32 %v2525, %v3037
  %v3550 = vmul.f32 %v2526, %v3038
  %v3551 = vmul.f32 %v2527, %v3039
  %v3552 = vmul.f32 %v2528, %v3040
  %v3553 = vmul.f32 %v2529, %v3041
  %v3554 = vmul.f32 %v2530, %v3042
  %v3555 = vmul.f32 %v2531, %v3043
  %v3556 = vmul.f32 %v2532, %v3044
  %v3557 = vmul.f32 %v2533, %v3045
  %v3558 = vmul.f32 %v2534, %v3046
  %v3559 = vmul.f32 %v2535, %v3047
  %v3560 = vmul.f32 %v2536, %v3048
  %v3561 = vmul.f32 %v2537, %v3049
  %v3562 = vmul.f32 %v2538, %v3050
  %v3563 = vmul.f32 %v2539, %v3051
  %v3564 = vmul.f32 %v2540, %v3052
  %v3565 = vmul.f32 %v2541, %v3053
  %v3566 = vmul.f32 %v2542, %v3054
  %v3567 = vmul.f32 %v2543, %v3055
  %v3568 = vmul.f32 %v2544, %v3056
  %v3569 = vmul.f32 %v2545, %v3057
  %v3570 = vmul.f32 %v2546, %v3058
  %v3571 = vmul.f32 %v2547, %v3059
  %v3572 = vmul.f32 %v2548, %v3060
  %v3573 = vmul.f32 %v2549, %v3061
  %v3574 = vmul.f32 %v2550, %v3062
  %v3575 = vmul.f32 %v2551, %v3063
  %v3576 = vmul.f32 %v2552, %v3064
  %v3577 = vmul.f32 %v2553, %v3065
  %v3578 = vmul.f32 %v2554, %v3066
  %v3579 = vmul.f32 %v2555, %v3067
  %v3580 = vmul.f32 %v2556, %v3068
  %v3581 = vmul.f32 %v2557, %v3069
  %v3582 = vmul.f32 %v2558, %v3070
  %v3583 = vmul.f32 %v2559, %v3071
  %v3584 = vmul.f32 %v2560, %v3072
  %v3585 = vmul.f32 %v2561, %v3073
  %v3586 = vmul.f32 %v2562, %v3074
  %v3587 = vmul.f32 %v2563, %v3075
  %v3588 = vmul.f32 %v2564, %v3076
  %v3589 = vmul.f32 %v2565, %v3077
  %v3590 = vmul.f32 %v2566, %v3078
  %v3591 = vmul.f32 %v2567, %v3079
  %v3592 = vmul.f32 %v2568, %v3080
  %v3593 = vmul.f32 %v2569, %v3081
  %v3594 = vmul.f32 %v2570, %v3082
  %v3595 = vmul.f32 %v2571, %v3083
  %v3596 = vmul.f32 %v2572, %v3084
  %v3597 = vmul.f32 %v2573, %v3085
  %v3598 = vmul.f32 %v2574, %v3086
  %v3599 = vmul.f32 %v2575, %v3087
  %v3600 = vmul.f32 %v2576, %v3088
  %v3601 = vmul.f32 %v2577, %v3089
  %v3602 = vmul.f32 %v2578, %v3090
  %v3603 = vmul.f32 %v2579, %v3091
  %v3604 = vmul.f32 %v2580, %v3092
  %v3605 = vmul.f32 %v2581, %v3093
  %v3606 = vmul.f32 %v2582, %v3094
  %v3607 = vmul.f32 %v2583, %v3095
  %v3608 = vmul.f32 %v2584, %v3096
  %v3609 = vmul.f32 %v2585, %v3097
  %v3610 = vmul.f32 %v2586, %v3098
  %v3611 = vmul.f32 %v2587, %v3099
  %v3612 = vmul.f32 %v2588, %v3100
  %v3613 = vmul.f32 %v2589, %v3101
  %v3614 = vmul.f32 %v2590, %v3102
  %v3615 = vmul.f32 %v2591, %v3103
  %v3616 = vmul.f32 %v2592, %v3104
  %v3617 = vmul.f32 %v2593, %v3105
  %v3618 = vmul.f32 %v2594, %v3106
  %v3619 = vmul.f32 %v2595, %v3107
  %v3620 = vmul.f32 %v2596, %v3108
  %v3621 = vmul.f32 %v2597, %v3109
  %v3622 = vmul.f32 %v2598, %v3110
  %v3623 = vmul.f32 %v2599, %v3111
  %v3624 = vmul.f32 %v2600, %v3112
  %v3625 = vmul.f32 %v2601, %v3113
  %v3626 = vmul.f32 %v2602, %v3114
  %v3627 = vmul.f32 %v2603, %v3115
  %v3628 = vmul.f32 %v2604, %v3116
  %v3629 = vmul.f32 %v2605, %v3117
  %v3630 = vmul.f32 %v2606, %v3118
  %v3631 = vmul.f32 %v2607, %v3119
  %v3632 = vmul.f32 %v2608, %v3120
  %v3633 = vmul.f32 %v2609, %v3121
  %v3634 = vmul.f32 %v2610, %v3122
  %v3635 = vmul.f32 %v2611, %v3123
  %v3636 = vmul.f32 %v2612, %v3124
  %v3637 = vmul.f32 %v2613, %v3125
  %v3638 = vmul.f32 %v2614, %v3126
  %v3639 = vmul.f32 %v2615, %v3127
  %v3640 = vmul.f32 %v2616, %v3128
  %v3641 = vmul.f32 %v2617, %v3129
  %v3642 = vmul.f32 %v2618, %v3130
  %v3643 = vmul.f32 %v2619, %v3131
  %v3644 = vmul.f32 %v2620, %v3132
  %v3645 = vmul.f32 %v2621, %v3133
  %v3646 = vmul.f32 %v2622, %v3134
  %v3647 = vmul.f32 %v2623, %v3135
  %v3648 = vmul.f32 %v2624, %v3136
  %v3649 = vmul.f32 %v2625, %v3137
  %v3650 = vmul.f32 %v2626, %v3138
  %v3651 = vmul.f32 %v2627, %v3139
  %v3652 = vmul.f32 %v2628, %v3140
  %v3653 = vmul.f32 %v2629, %v3141
  %v3654 = vmul.f32 %v2630, %v3142
  %v3655 = vmul.f32 %v2631, %v3143
  %v3656 = vmul.f32 %v2632, %v3144
  %v3657 = vmul.f32 %v2633, %v3145
  %v3658 = vmul.f32 %v2634, %v3146
  %v3659 = vmul.f32 %v2635, %v3147
  %v3660 = vmul.f32 %v2636, %v3148
  %v3661 = vmul.f32 %v2637, %v3149
  %v3662 = vmul.f32 %v2638, %v3150
  %v3663 = vmul.f32 %v2639, %v3151
  %v3664 = vmul.f32 %v2640, %v3152
  %v3665 = vmul.f32 %v2641, %v3153
  %v3666 = vmul.f32 %v2642, %v3154
  %v3667 = vmul.f32 %v2643, %v3155
  %v3668 = vmul.f32 %v2644, %v3156
  %v3669 = vmul.f32 %v2645, %v3157
  %v3670 = vmul.f32 %v2646, %v3158
  %v3671 = vmul.f32 %v2647, %v3159
  %v3672 = vmul.f32 %v2648, %v3160
  %v3673 = vmul.f32 %v2649, %v3161
  %v3674 = vmul.f32 %v2650, %v3162
  %v3675 = vmul.f32 %v2651, %v3163
  %v3676 = vmul.f32 %v2652, %v3164
  %v3677 = vmul.f32 %v2653, %v3165
  %v3678 = vmul.f32 %v2654, %v3166
  %v3679 = vmul.f32 %v2655, %v3167
  %v3680 = vmul.f32 %v2656, %v3168
  %v3681 = vmul.f32 %v2657, %v3169
  %v3682 = vmul.f32 %v2658, %v3170
  %v3683 = vmul.f32 %v2659, %v3171
  %v3684 = vmul.f32 %v2660, %v3172
  %v3685 = vmul.f32 %v2661, %v3173
  %v3686 = vmul.f32 %v2662, %v3174
  %v3687 = vmul.f32 %v2663, %v3175
  %v3688 = vmul.f32 %v2664, %v3176
  %v3689 = vadd.f32 %v3177, %v3193
  %v3690 = vadd.f32 %v3689, %v3209
  %v3691 = vadd.f32 %v3690, %v3225
  %v3692 = vadd.f32 %v3691, %v3241
  %v3693 = vadd.f32 %v3692, %v3257
  %v3694 = vadd.f32 %v3693, %v3273
  %v3695 = vadd.f32 %v3694, %v3289
  %v3696 = vadd.f32 %v3695, %v3305
  %v3697 = vadd.f32 %v3696, %v3321
  %v3698 = vadd.f32 %v3697, %v3337
  %v3699 = vadd.f32 %v3698, %v3353
  %v3700 = vadd.f32 %v3699, %v3369
  %v3701 = vadd.f32 %v3700, %v3385
  %v3702 = vadd.f32 %v3701, %v3401
  %v3703 = vadd.f32 %v3702, %v3417
  %v3704 = vadd.f32 %v3703, %v3433
  %v3705 = vadd.f32 %v3704, %v3449
  %v3706 = vadd.f32 %v3705, %v3465
  %v3707 = vadd.f32 %v3706, %v3481
  %v3708 = vadd.f32 %v3707, %v3497
  %v3709 = vadd.f32 %v3708, %v3513
  %v3710 = vadd.f32 %v3709, %v3529
  %v3711 = vadd.f32 %v3710, %v3545
  %v3712 = vadd.f32 %v3711, %v3561
  %v3713 = vadd.f32 %v3712, %v3577
  %v3714 = vadd.f32 %v3713, %v3593
  %v3715 = vadd.f32 %v3714, %v3609
  %v3716 = vadd.f32 %v3715, %v3625
  %v3717 = vadd.f32 %v3716, %v3641
  %v3718 = vadd.f32 %v3717, %v3657
  %v3719 = vadd.f32 %v3718, %v3673
  %v3720 = vrot.slane %v3719, 4
  %v3721 = vadd.f32 %v3719, %v3720
  %v3722 = vrot.slane %v3721, 2
  %v3723 = vadd.f32 %v3721, %v3722
  %v3724 = vrot.slane %v3723, 1
  %v3725 = vadd.f32 %v3723, %v3724
  %v3726 = vadd.f32 %v3178, %v3194
  %v3727 = vadd.f32 %v3726, %v3210
  %v3728 = vadd.f32 %v3727, %v3226
  %v3729 = vadd.f32 %v3728, %v3242
  %v3730 = vadd.f32 %v3729, %v3258
  %v3731 = vadd.f32 %v3730, %v3274
  %v3732 = vadd.f32 %v3731, %v3290
  %v3733 = vadd.f32 %v3732, %v3306
  %v3734 = vadd.f32 %v3733, %v3322
  %v3735 = vadd.f32 %v3734, %v3338
  %v3736 = vadd.f32 %v3735, %v3354
  %v3737 = vadd.f32 %v3736, %v3370
  %v3738 = vadd.f32 %v3737, %v3386
  %v3739 = vadd.f32 %v3738, %v3402
  %v3740 = vadd.f32 %v3739, %v3418
  %v3741 = vadd.f32 %v3740, %v3434
  %v3742 = vadd.f32 %v3741, %v3450
  %v3743 = vadd.f32 %v3742, %v3466
  %v3744 = vadd.f32 %v3743, %v3482
  %v3745 = vadd.f32 %v3744, %v3498
  %v3746 = vadd.f32 %v3745, %v3514
  %v3747 = vadd.f32 %v3746, %v3530
  %v3748 = vadd.f32 %v3747, %v3546
  %v3749 = vadd.f32 %v3748, %v3562
  %v3750 = vadd.f32 %v3749, %v3578
  %v3751 = vadd.f32 %v3750, %v3594
  %v3752 = vadd.f32 %v3751, %v3610
  %v3753 = vadd.f32 %v3752, %v3626
  %v3754 = vadd.f32 %v3753, %v3642
  %v3755 = vadd.f32 %v3754, %v3658
  %v3756 = vadd.f32 %v3755, %v3674
  %v3757 = vrot.slane %v3756, 4
  %v3758 = vadd.f32 %v3756, %v3757
  %v3759 = vrot.slane %v3758, 2
  %v3760 = vadd.f32 %v3758, %v3759
  %v3761 = vrot.slane %v3760, 1
  %v3762 = vadd.f32 %v3760, %v3761
  %v3763 = vadd.f32 %v3179, %v3195
  %v3764 = vadd.f32 %v3763, %v3211
  %v3765 = vadd.f32 %v3764, %v3227
  %v3766 = vadd.f32 %v3765, %v3243
  %v3767 = vadd.f32 %v3766, %v3259
  %v3768 = vadd.f32 %v3767, %v3275
  %v3769 = vadd.f32 %v3768, %v3291
  %v3770 = vadd.f32 %v3769, %v3307
  %v3771 = vadd.f32 %v3770, %v3323
  %v3772 = vadd.f32 %v3771, %v3339
  %v3773 = vadd.f32 %v3772, %v3355
  %v3774 = vadd.f32 %v3773, %v3371
  %v3775 = vadd.f32 %v3774, %v3387
  %v3776 = vadd.f32 %v3775, %v3403
  %v3777 = vadd.f32 %v3776, %v3419
  %v3778 = vadd.f32 %v3777, %v3435
  %v3779 = vadd.f32 %v3778, %v3451
  %v3780 = vadd.f32 %v3779, %v3467
  %v3781 = vadd.f32 %v3780, %v3483
  %v3782 = vadd.f32 %v3781, %v3499
  %v3783 = vadd.f32 %v3782, %v3515
  %v3784 = vadd.f32 %v3783, %v3531
  %v3785 = vadd.f32 %v3784, %v3547
  %v3786 = vadd.f32 %v3785, %v3563
  %v3787 = vadd.f32 %v3786, %v3579
  %v3788 = vadd.f32 %v3787, %v3595
  %v3789 = vadd.f32 %v3788, %v3611
  %v3790 = vadd.f32 %v3789, %v3627
  %v3791 = vadd.f32 %v3790, %v3643
  %v3792 = vadd.f32 %v3791, %v3659
  %v3793 = vadd.f32 %v3792, %v3675
  %v3794 = vrot.slane %v3793, 4
  %v3795 = vadd.f32 %v3793, %v3794
  %v3796 = vrot.slane %v3795, 2
  %v3797 = vadd.f32 %v3795, %v3796
  %v3798 = vrot.slane %v3797, 1
  %v3799 = vadd.f32 %v3797, %v3798
  %v3800 = vadd.f32 %v3180, %v3196
  %v3801 = vadd.f32 %v3800, %v3212
  %v3802 = vadd.f32 %v3801, %v3228
  %v3803 = vadd.f32 %v3802, %v3244
  %v3804 = vadd.f32 %v3803, %v3260
  %v3805 = vadd.f32 %v3804, %v3276
  %v3806 = vadd.f32 %v3805, %v3292
  %v3807 = vadd.f32 %v3806, %v3308
  %v3808 = vadd.f32 %v3807, %v3324
  %v3809 = vadd.f32 %v3808, %v3340
  %v3810 = vadd.f32 %v3809, %v3356
  %v3811 = vadd.f32 %v3810, %v3372
  %v3812 = vadd.f32 %v3811, %v3388
  %v3813 = vadd.f32 %v3812, %v3404
  %v3814 = vadd.f32 %v3813, %v3420
  %v3815 = vadd.f32 %v3814, %v3436
  %v3816 = vadd.f32 %v3815, %v3452
  %v3817 = vadd.f32 %v3816, %v3468
  %v3818 = vadd.f32 %v3817, %v3484
  %v3819 = vadd.f32 %v3818, %v3500
  %v3820 = vadd.f32 %v3819, %v3516
  %v3821 = vadd.f32 %v3820, %v3532
  %v3822 = vadd.f32 %v3821, %v3548
  %v3823 = vadd.f32 %v3822, %v3564
  %v3824 = vadd.f32 %v3823, %v3580
  %v3825 = vadd.f32 %v3824, %v3596
  %v3826 = vadd.f32 %v3825, %v3612
  %v3827 = vadd.f32 %v3826, %v3628
  %v3828 = vadd.f32 %v3827, %v3644
  %v3829 = vadd.f32 %v3828, %v3660
  %v3830 = vadd.f32 %v3829, %v3676
  %v3831 = vrot.slane %v3830, 4
  %v3832 = vadd.f32 %v3830, %v3831
  %v3833 = vrot.slane %v3832, 2
  %v3834 = vadd.f32 %v3832, %v3833
  %v3835 = vrot.slane %v3834, 1
  %v3836 = vadd.f32 %v3834, %v3835
  %v3837 = vadd.f32 %v3181, %v3197
  %v3838 = vadd.f32 %v3837, %v3213
  %v3839 = vadd.f32 %v3838, %v3229
  %v3840 = vadd.f32 %v3839, %v3245
  %v3841 = vadd.f32 %v3840, %v3261
  %v3842 = vadd.f32 %v3841, %v3277
  %v3843 = vadd.f32 %v3842, %v3293
  %v3844 = vadd.f32 %v3843, %v3309
  %v3845 = vadd.f32 %v3844, %v3325
  %v3846 = vadd.f32 %v3845, %v3341
  %v3847 = vadd.f32 %v3846, %v3357
  %v3848 = vadd.f32 %v3847, %v3373
  %v3849 = vadd.f32 %v3848, %v3389
  %v3850 = vadd.f32 %v3849, %v3405
  %v3851 = vadd.f32 %v3850, %v3421
  %v3852 = vadd.f32 %v3851, %v3437
  %v3853 = vadd.f32 %v3852, %v3453
  %v3854 = vadd.f32 %v3853, %v3469
  %v3855 = vadd.f32 %v3854, %v3485
  %v3856 = vadd.f32 %v3855, %v3501
  %v3857 = vadd.f32 %v3856, %v3517
  %v3858 = vadd.f32 %v3857, %v3533
  %v3859 = vadd.f32 %v3858, %v3549
  %v3860 = vadd.f32 %v3859, %v3565
  %v3861 = vadd.f32 %v3860, %v3581
  %v3862 = vadd.f32 %v3861, %v3597
  %v3863 = vadd.f32 %v3862, %v3613
  %v3864 = vadd.f32 %v3863, %v3629
  %v3865 = vadd.f32 %v3864, %v3645
  %v3866 = vadd.f32 %v3865, %v3661
  %v3867 = vadd.f32 %v3866, %v3677
  %v3868 = vrot.slane %v3867, 4
  %v3869 = vadd.f32 %v3867, %v3868
  %v3870 = vrot.slane %v3869, 2
  %v3871 = vadd.f32 %v3869, %v3870
  %v3872 = vrot.slane %v3871, 1
  %v3873 = vadd.f32 %v3871, %v3872
  %v3874 = vadd.f32 %v3182, %v3198
  %v3875 = vadd.f32 %v3874, %v3214
  %v3876 = vadd.f32 %v3875, %v3230
  %v3877 = vadd.f32 %v3876, %v3246
  %v3878 = vadd.f32 %v3877, %v3262
  %v3879 = vadd.f32 %v3878, %v3278
  %v3880 = vadd.f32 %v3879, %v3294
  %v3881 = vadd.f32 %v3880, %v3310
  %v3882 = vadd.f32 %v3881, %v3326
  %v3883 = vadd.f32 %v3882, %v3342
  %v3884 = vadd.f32 %v3883, %v3358
  %v3885 = vadd.f32 %v3884, %v3374
  %v3886 = vadd.f32 %v3885, %v3390
  %v3887 = vadd.f32 %v3886, %v3406
  %v3888 = vadd.f32 %v3887, %v3422
  %v3889 = vadd.f32 %v3888, %v3438
  %v3890 = vadd.f32 %v3889, %v3454
  %v3891 = vadd.f32 %v3890, %v3470
  %v3892 = vadd.f32 %v3891, %v3486
  %v3893 = vadd.f32 %v3892, %v3502
  %v3894 = vadd.f32 %v3893, %v3518
  %v3895 = vadd.f32 %v3894, %v3534
  %v3896 = vadd.f32 %v3895, %v3550
  %v3897 = vadd.f32 %v3896, %v3566
  %v3898 = vadd.f32 %v3897, %v3582
  %v3899 = vadd.f32 %v3898, %v3598
  %v3900 = vadd.f32 %v3899, %v3614
  %v3901 = vadd.f32 %v3900, %v3630
  %v3902 = vadd.f32 %v3901, %v3646
  %v3903 = vadd.f32 %v3902, %v3662
  %v3904 = vadd.f32 %v3903, %v3678
  %v3905 = vrot.slane %v3904, 4
  %v3906 = vadd.f32 %v3904, %v3905
  %v3907 = vrot.slane %v3906, 2
  %v3908 = vadd.f32 %v3906, %v3907
  %v3909 = vrot.slane %v3908, 1
  %v3910 = vadd.f32 %v3908, %v3909
  %v3911 = vadd.f32 %v3183, %v3199
  %v3912 = vadd.f32 %v3911, %v3215
  %v3913 = vadd.f32 %v3912, %v3231
  %v3914 = vadd.f32 %v3913, %v3247
  %v3915 = vadd.f32 %v3914, %v3263
  %v3916 = vadd.f32 %v3915, %v3279
  %v3917 = vadd.f32 %v3916, %v3295
  %v3918 = vadd.f32 %v3917, %v3311
  %v3919 = vadd.f32 %v3918, %v3327
  %v3920 = vadd.f32 %v3919, %v3343
  %v3921 = vadd.f32 %v3920, %v3359
  %v3922 = vadd.f32 %v3921, %v3375
  %v3923 = vadd.f32 %v3922, %v3391
  %v3924 = vadd.f32 %v3923, %v3407
  %v3925 = vadd.f32 %v3924, %v3423
  %v3926 = vadd.f32 %v3925, %v3439
  %v3927 = vadd.f32 %v3926, %v3455
  %v3928 = vadd.f32 %v3927, %v3471
  %v3929 = vadd.f32 %v3928, %v3487
  %v3930 = vadd.f32 %v3929, %v3503
  %v3931 = vadd.f32 %v3930, %v3519
  %v3932 = vadd.f32 %v3931, %v3535
  %v3933 = vadd.f32 %v3932, %v3551
  %v3934 = vadd.f32 %v3933, %v3567
  %v3935 = vadd.f32 %v3934, %v3583
  %v3936 = vadd.f32 %v3935, %v3599
  %v3937 = vadd.f32 %v3936, %v3615
  %v3938 = vadd.f32 %v3937, %v3631
  %v3939 = vadd.f32 %v3938, %v3647
  %v3940 = vadd.f32 %v3939, %v3663
  %v3941 = vadd.f32 %v3940, %v3679
  %v3942 = vrot.slane %v3941, 4
  %v3943 = vadd.f32 %v3941, %v3942
  %v3944 = vrot.slane %v3943, 2
  %v3945 = vadd.f32 %v3943, %v3944
  %v3946 = vrot.slane %v3945, 1
  %v3947 = vadd.f32 %v3945, %v3946
  %v3948 = vadd.f32 %v3184, %v3200
  %v3949 = vadd.f32 %v3948, %v3216
  %v3950 = vadd.f32 %v3949, %v3232
  %v3951 = vadd.f32 %v3950, %v3248
  %v3952 = vadd.f32 %v3951, %v3264
  %v3953 = vadd.f32 %v3952, %v3280
  %v3954 = vadd.f32 %v3953, %v3296
  %v3955 = vadd.f32 %v3954, %v3312
  %v3956 = vadd.f32 %v3955, %v3328
  %v3957 = vadd.f32 %v3956, %v3344
  %v3958 = vadd.f32 %v3957, %v3360
  %v3959 = vadd.f32 %v3958, %v3376
  %v3960 = vadd.f32 %v3959, %v3392
  %v3961 = vadd.f32 %v3960, %v3408
  %v3962 = vadd.f32 %v3961, %v3424
  %v3963 = vadd.f32 %v3962, %v3440
  %v3964 = vadd.f32 %v3963, %v3456
  %v3965 = vadd.f32 %v3964, %v3472
  %v3966 = vadd.f32 %v3965, %v3488
  %v3967 = vadd.f32 %v3966, %v3504
  %v3968 = vadd.f32 %v3967, %v3520
  %v3969 = vadd.f32 %v3968, %v3536
  %v3970 = vadd.f32 %v3969, %v3552
  %v3971 = vadd.f32 %v3970, %v3568
  %v3972 = vadd.f32 %v3971, %v3584
  %v3973 = vadd.f32 %v3972, %v3600
  %v3974 = vadd.f32 %v3973, %v3616
  %v3975 = vadd.f32 %v3974, %v3632
  %v3976 = vadd.f32 %v3975, %v3648
  %v3977 = vadd.f32 %v3976, %v3664
  %v3978 = vadd.f32 %v3977, %v3680
  %v3979 = vrot.slane %v3978, 4
  %v3980 = vadd.f32 %v3978, %v3979
  %v3981 = vrot.slane %v3980, 2
  %v3982 = vadd.f32 %v3980, %v3981
  %v3983 = vrot.slane %v3982, 1
  %v3984 = vadd.f32 %v3982, %v3983
  %v3985 = vadd.f32 %v3185, %v3201
  %v3986 = vadd.f32 %v3985, %v3217
  %v3987 = vadd.f32 %v3986, %v3233
  %v3988 = vadd.f32 %v3987, %v3249
  %v3989 = vadd.f32 %v3988, %v3265
  %v3990 = vadd.f32 %v3989, %v3281
  %v3991 = vadd.f32 %v3990, %v3297
  %v3992 = vadd.f32 %v3991, %v3313
  %v3993 = vadd.f32 %v3992, %v3329
  %v3994 = vadd.f32 %v3993, %v3345
  %v3995 = vadd.f32 %v3994, %v3361
  %v3996 = vadd.f32 %v3995, %v3377
  %v3997 = vadd.f32 %v3996, %v3393
  %v3998 = vadd.f32 %v3997, %v3409
  %v3999 = vadd.f32 %v3998, %v3425
  %v4000 = vadd.f32 %v3999, %v3441
  %v4001 = vadd.f32 %v4000, %v3457
  %v4002 = vadd.f32 %v4001, %v3473
  %v4003 = vadd.f32 %v4002, %v3489
  %v4004 = vadd.f32 %v4003, %v3505
  %v4005 = vadd.f32 %v4004, %v3521
  %v4006 = vadd.f32 %v4005, %v3537
  %v4007 = vadd.f32 %v4006, %v3553
  %v4008 = vadd.f32 %v4007, %v3569
  %v4009 = vadd.f32 %v4008, %v3585
  %v4010 = vadd.f32 %v4009, %v3601
  %v4011 = vadd.f32 %v4010, %v3617
  %v4012 = vadd.f32 %v4011, %v3633
  %v4013 = vadd.f32 %v4012, %v3649
  %v4014 = vadd.f32 %v4013, %v3665
  %v4015 = vadd.f32 %v4014, %v3681
  %v4016 = vrot.slane %v4015, 4
  %v4017 = vadd.f32 %v4015, %v4016
  %v4018 = vrot.slane %v4017, 2
  %v4019 = vadd.f32 %v4017, %v4018
  %v4020 = vrot.slane %v4019, 1
  %v4021 = vadd.f32 %v4019, %v4020
  %v4022 = vadd.f32 %v3186, %v3202
  %v4023 = vadd.f32 %v4022, %v3218
  %v4024 = vadd.f32 %v4023, %v3234
  %v4025 = vadd.f32 %v4024, %v3250
  %v4026 = vadd.f32 %v4025, %v3266
  %v4027 = vadd.f32 %v4026, %v3282
  %v4028 = vadd.f32 %v4027, %v3298
  %v4029 = vadd.f32 %v4028, %v3314
  %v4030 = vadd.f32 %v4029, %v3330
  %v4031 = vadd.f32 %v4030, %v3346
  %v4032 = vadd.f32 %v4031, %v3362
  %v4033 = vadd.f32 %v4032, %v3378
  %v4034 = vadd.f32 %v4033, %v3394
  %v4035 = vadd.f32 %v4034, %v3410
  %v4036 = vadd.f32 %v4035, %v3426
  %v4037 = vadd.f32 %v4036, %v3442
  %v4038 = vadd.f32 %v4037, %v3458
  %v4039 = vadd.f32 %v4038, %v3474
  %v4040 = vadd.f32 %v4039, %v3490
  %v4041 = vadd.f32 %v4040, %v3506
  %v4042 = vadd.f32 %v4041, %v3522
  %v4043 = vadd.f32 %v4042, %v3538
  %v4044 = vadd.f32 %v4043, %v3554
  %v4045 = vadd.f32 %v4044, %v3570
  %v4046 = vadd.f32 %v4045, %v3586
  %v4047 = vadd.f32 %v4046, %v3602
  %v4048 = vadd.f32 %v4047, %v3618
  %v4049 = vadd.f32 %v4048, %v3634
  %v4050 = vadd.f32 %v4049, %v3650
  %v4051 = vadd.f32 %v4050, %v3666
  %v4052 = vadd.f32 %v4051, %v3682
  %v4053 = vrot.slane %v4052, 4
  %v4054 = vadd.f32 %v4052, %v4053
  %v4055 = vrot.slane %v4054, 2
  %v4056 = vadd.f32 %v4054, %v4055
  %v4057 = vrot.slane %v4056, 1
  %v4058 = vadd.f32 %v4056, %v4057
  %v4059 = vadd.f32 %v3187, %v3203
  %v4060 = vadd.f32 %v4059, %v3219
  %v4061 = vadd.f32 %v4060, %v3235
  %v4062 = vadd.f32 %v4061, %v3251
  %v4063 = vadd.f32 %v4062, %v3267
  %v4064 = vadd.f32 %v4063, %v3283
  %v4065 = vadd.f32 %v4064, %v3299
  %v4066 = vadd.f32 %v4065, %v3315
  %v4067 = vadd.f32 %v4066, %v3331
  %v4068 = vadd.f32 %v4067, %v3347
  %v4069 = vadd.f32 %v4068, %v3363
  %v4070 = vadd.f32 %v4069, %v3379
  %v4071 = vadd.f32 %v4070, %v3395
  %v4072 = vadd.f32 %v4071, %v3411
  %v4073 = vadd.f32 %v4072, %v3427
  %v4074 = vadd.f32 %v4073, %v3443
  %v4075 = vadd.f32 %v4074, %v3459
  %v4076 = vadd.f32 %v4075, %v3475
  %v4077 = vadd.f32 %v4076, %v3491
  %v4078 = vadd.f32 %v4077, %v3507
  %v4079 = vadd.f32 %v4078, %v3523
  %v4080 = vadd.f32 %v4079, %v3539
  %v4081 = vadd.f32 %v4080, %v3555
  %v4082 = vadd.f32 %v4081, %v3571
  %v4083 = vadd.f32 %v4082, %v3587
  %v4084 = vadd.f32 %v4083, %v3603
  %v4085 = vadd.f32 %v4084, %v3619
  %v4086 = vadd.f32 %v4085, %v3635
  %v4087 = vadd.f32 %v4086, %v3651
  %v4088 = vadd.f32 %v4087, %v3667
  %v4089 = vadd.f32 %v4088, %v3683
  %v4090 = vrot.slane %v4089, 4
  %v4091 = vadd.f32 %v4089, %v4090
  %v4092 = vrot.slane %v4091, 2
  %v4093 = vadd.f32 %v4091, %v4092
  %v4094 = vrot.slane %v4093, 1
  %v4095 = vadd.f32 %v4093, %v4094
  %v4096 = vadd.f32 %v3188, %v3204
  %v4097 = vadd.f32 %v4096, %v3220
  %v4098 = vadd.f32 %v4097, %v3236
  %v4099 = vadd.f32 %v4098, %v3252
  %v4100 = vadd.f32 %v4099, %v3268
  %v4101 = vadd.f32 %v4100, %v3284
  %v4102 = vadd.f32 %v4101, %v3300
  %v4103 = vadd.f32 %v4102, %v3316
  %v4104 = vadd.f32 %v4103, %v3332
  %v4105 = vadd.f32 %v4104, %v3348
  %v4106 = vadd.f32 %v4105, %v3364
  %v4107 = vadd.f32 %v4106, %v3380
  %v4108 = vadd.f32 %v4107, %v3396
  %v4109 = vadd.f32 %v4108, %v3412
  %v4110 = vadd.f32 %v4109, %v3428
  %v4111 = vadd.f32 %v4110, %v3444
  %v4112 = vadd.f32 %v4111, %v3460
  %v4113 = vadd.f32 %v4112, %v3476
  %v4114 = vadd.f32 %v4113, %v3492
  %v4115 = vadd.f32 %v4114, %v3508
  %v4116 = vadd.f32 %v4115, %v3524
  %v4117 = vadd.f32 %v4116, %v3540
  %v4118 = vadd.f32 %v4117, %v3556
  %v4119 = vadd.f32 %v4118, %v3572
  %v4120 = vadd.f32 %v4119, %v3588
  %v4121 = vadd.f32 %v4120, %v3604
  %v4122 = vadd.f32 %v4121, %v3620
  %v4123 = vadd.f32 %v4122, %v3636
  %v4124 = vadd.f32 %v4123, %v3652
  %v4125 = vadd.f32 %v4124, %v3668
  %v4126 = vadd.f32 %v4125, %v3684
  %v4127 = vrot.slane %v4126, 4
  %v4128 = vadd.f32 %v4126, %v4127
  %v4129 = vrot.slane %v4128, 2
  %v4130 = vadd.f32 %v4128, %v4129
  %v4131 = vrot.slane %v4130, 1
  %v4132 = vadd.f32 %v4130, %v4131
  %v4133 = vadd.f32 %v3189, %v3205
  %v4134 = vadd.f32 %v4133, %v3221
  %v4135 = vadd.f32 %v4134, %v3237
  %v4136 = vadd.f32 %v4135, %v3253
  %v4137 = vadd.f32 %v4136, %v3269
  %v4138 = vadd.f32 %v4137, %v3285
  %v4139 = vadd.f32 %v4138, %v3301
  %v4140 = vadd.f32 %v4139, %v3317
  %v4141 = vadd.f32 %v4140, %v3333
  %v4142 = vadd.f32 %v4141, %v3349
  %v4143 = vadd.f32 %v4142, %v3365
  %v4144 = vadd.f32 %v4143, %v3381
  %v4145 = vadd.f32 %v4144, %v3397
  %v4146 = vadd.f32 %v4145, %v3413
  %v4147 = vadd.f32 %v4146, %v3429
  %v4148 = vadd.f32 %v4147, %v3445
  %v4149 = vadd.f32 %v4148, %v3461
  %v4150 = vadd.f32 %v4149, %v3477
  %v4151 = vadd.f32 %v4150, %v3493
  %v4152 = vadd.f32 %v4151, %v3509
  %v4153 = vadd.f32 %v4152, %v3525
  %v4154 = vadd.f32 %v4153, %v3541
  %v4155 = vadd.f32 %v4154, %v3557
  %v4156 = vadd.f32 %v4155, %v3573
  %v4157 = vadd.f32 %v4156, %v3589
  %v4158 = vadd.f32 %v4157, %v3605
  %v4159 = vadd.f32 %v4158, %v3621
  %v4160 = vadd.f32 %v4159, %v3637
  %v4161 = vadd.f32 %v4160, %v3653
  %v4162 = vadd.f32 %v4161, %v3669
  %v4163 = vadd.f32 %v4162, %v3685
  %v4164 = vrot.slane %v4163, 4
  %v4165 = vadd.f32 %v4163, %v4164
  %v4166 = vrot.slane %v4165, 2
  %v4167 = vadd.f32 %v4165, %v4166
  %v4168 = vrot.slane %v4167, 1
  %v4169 = vadd.f32 %v4167, %v4168
  %v4170 = vadd.f32 %v3190, %v3206
  %v4171 = vadd.f32 %v4170, %v3222
  %v4172 = vadd.f32 %v4171, %v3238
  %v4173 = vadd.f32 %v4172, %v3254
  %v4174 = vadd.f32 %v4173, %v3270
  %v4175 = vadd.f32 %v4174, %v3286
  %v4176 = vadd.f32 %v4175, %v3302
  %v4177 = vadd.f32 %v4176, %v3318
  %v4178 = vadd.f32 %v4177, %v3334
  %v4179 = vadd.f32 %v4178, %v3350
  %v4180 = vadd.f32 %v4179, %v3366
  %v4181 = vadd.f32 %v4180, %v3382
  %v4182 = vadd.f32 %v4181, %v3398
  %v4183 = vadd.f32 %v4182, %v3414
  %v4184 = vadd.f32 %v4183, %v3430
  %v4185 = vadd.f32 %v4184, %v3446
  %v4186 = vadd.f32 %v4185, %v3462
  %v4187 = vadd.f32 %v4186, %v3478
  %v4188 = vadd.f32 %v4187, %v3494
  %v4189 = vadd.f32 %v4188, %v3510
  %v4190 = vadd.f32 %v4189, %v3526
  %v4191 = vadd.f32 %v4190, %v3542
  %v4192 = vadd.f32 %v4191, %v3558
  %v4193 = vadd.f32 %v4192, %v3574
  %v4194 = vadd.f32 %v4193, %v3590
  %v4195 = vadd.f32 %v4194, %v3606
  %v4196 = vadd.f32 %v4195, %v3622
  %v4197 = vadd.f32 %v4196, %v3638
  %v4198 = vadd.f32 %v4197, %v3654
  %v4199 = vadd.f32 %v4198, %v3670
  %v4200 = vadd.f32 %v4199, %v3686
  %v4201 = vrot.slane %v4200, 4
  %v4202 = vadd.f32 %v4200, %v4201
  %v4203 = vrot.slane %v4202, 2
  %v4204 = vadd.f32 %v4202, %v4203
  %v4205 = vrot.slane %v4204, 1
  %v4206 = vadd.f32 %v4204, %v4205
  %v4207 = vadd.f32 %v3191, %v3207
  %v4208 = vadd.f32 %v4207, %v3223
  %v4209 = vadd.f32 %v4208, %v3239
  %v4210 = vadd.f32 %v4209, %v3255
  %v4211 = vadd.f32 %v4210, %v3271
  %v4212 = vadd.f32 %v4211, %v3287
  %v4213 = vadd.f32 %v4212, %v3303
  %v4214 = vadd.f32 %v4213, %v3319
  %v4215 = vadd.f32 %v4214, %v3335
  %v4216 = vadd.f32 %v4215, %v3351
  %v4217 = vadd.f32 %v4216, %v3367
  %v4218 = vadd.f32 %v4217, %v3383
  %v4219 = vadd.f32 %v4218, %v3399
  %v4220 = vadd.f32 %v4219, %v3415
  %v4221 = vadd.f32 %v4220, %v3431
  %v4222 = vadd.f32 %v4221, %v3447
  %v4223 = vadd.f32 %v4222, %v3463
  %v4224 = vadd.f32 %v4223, %v3479
  %v4225 = vadd.f32 %v4224, %v3495
  %v4226 = vadd.f32 %v4225, %v3511
  %v4227 = vadd.f32 %v4226, %v3527
  %v4228 = vadd.f32 %v4227, %v3543
  %v4229 = vadd.f32 %v4228, %v3559
  %v4230 = vadd.f32 %v4229, %v3575
  %v4231 = vadd.f32 %v4230, %v3591
  %v4232 = vadd.f32 %v4231, %v3607
  %v4233 = vadd.f32 %v4232, %v3623
  %v4234 = vadd.f32 %v4233, %v3639
  %v4235 = vadd.f32 %v4234, %v3655
  %v4236 = vadd.f32 %v4235, %v3671
  %v4237 = vadd.f32 %v4236, %v3687
  %v4238 = vrot.slane %v4237, 4
  %v4239 = vadd.f32 %v4237, %v4238
  %v4240 = vrot.slane %v4239, 2
  %v4241 = vadd.f32 %v4239, %v4240
  %v4242 = vrot.slane %v4241, 1
  %v4243 = vadd.f32 %v4241, %v4242
  %v4244 = vadd.f32 %v3192, %v3208
  %v4245 = vadd.f32 %v4244, %v3224
  %v4246 = vadd.f32 %v4245, %v3240
  %v4247 = vadd.f32 %v4246, %v3256
  %v4248 = vadd.f32 %v4247, %v3272
  %v4249 = vadd.f32 %v4248, %v3288
  %v4250 = vadd.f32 %v4249, %v3304
  %v4251 = vadd.f32 %v4250, %v3320
  %v4252 = vadd.f32 %v4251, %v3336
  %v4253 = vadd.f32 %v4252, %v3352
  %v4254 = vadd.f32 %v4253, %v3368
  %v4255 = vadd.f32 %v4254, %v3384
  %v4256 = vadd.f32 %v4255, %v3400
  %v4257 = vadd.f32 %v4256, %v3416
  %v4258 = vadd.f32 %v4257, %v3432
  %v4259 = vadd.f32 %v4258, %v3448
  %v4260 = vadd.f32 %v4259, %v3464
  %v4261 = vadd.f32 %v4260, %v3480
  %v4262 = vadd.f32 %v4261, %v3496
  %v4263 = vadd.f32 %v4262, %v3512
  %v4264 = vadd.f32 %v4263, %v3528
  %v4265 = vadd.f32 %v4264, %v3544
  %v4266 = vadd.f32 %v4265, %v3560
  %v4267 = vadd.f32 %v4266, %v3576
  %v4268 = vadd.f32 %v4267, %v3592
  %v4269 = vadd.f32 %v4268, %v3608
  %v4270 = vadd.f32 %v4269, %v3624
  %v4271 = vadd.f32 %v4270, %v3640
  %v4272 = vadd.f32 %v4271, %v3656
  %v4273 = vadd.f32 %v4272, %v3672
  %v4274 = vadd.f32 %v4273, %v3688
  %v4275 = vrot.slane %v4274, 4
  %v4276 = vadd.f32 %v4274, %v4275
  %v4277 = vrot.slane %v4276, 2
  %v4278 = vadd.f32 %v4276, %v4277
  %v4279 = vrot.slane %v4278, 1
  %v4280 = vadd.f32 %v4278, %v4279
  %s4281 = sld [smem:[#allocation2]]
  %v4282 = vstv %s4281
  %v4283 = vadd.f32 %v3725, %v4282
  %v4284 = vadd.f32 %v3762, %v4282
  %v4285 = vadd.f32 %v3799, %v4282
  %v4286 = vadd.f32 %v3836, %v4282
  %v4287 = vadd.f32 %v3873, %v4282
  %v4288 = vadd.f32 %v3910, %v4282
  %v4289 = vadd.f32 %v3947, %v4282
  %v4290 = vadd.f32 %v3984, %v4282
  %v4291 = vadd.f32 %v4021, %v4282
  %v4292 = vadd.f32 %v4058, %v4282
  %v4293 = vadd.f32 %v4095, %v4282
  %v4294 = vadd.f32 %v4132, %v4282
  %v4295 = vadd.f32 %v4169, %v4282
  %v4296 = vadd.f32 %v4206, %v4282
  %v4297 = vadd.f32 %v4243, %v4282
  %v4298 = vadd.f32 %v4280, %v4282
  %v4315 = vcombine.low %v4283, %v4284
  %v4316 = vcombine.low %v4285, %v4286
  %v4317 = vcombine.low %v4287, %v4288
  %v4318 = vcombine.low %v4289, %v4290
  %v4320 = vunpack.c.l.s4 1966171168
  %v4321 = vunpack.c.0.s8 %v4320
  %v4322 = vlaneseq
  %v4323 = vshrl.u32 %v4322, 7
  %v4324 = vsub.s32 %v4321, %v4323
  %v4325 = vrot.slane %v4315, %v4324
  %v4327 = vunpack.c.l.s4 1966171168
  %v4328 = vunpack.c.0.s8 %v4327
  %v4329 = vlaneseq
  %v4330 = vshrl.u32 %v4329, 7
  %v4331 = vsub.s32 %v4328, %v4330
  %v4332 = vrot.slane %v4316, %v4331
  %v4334 = vunpack.c.l.s4 1966171168
  %v4335 = vunpack.c.0.s8 %v4334
  %v4336 = vlaneseq
  %v4337 = vshrl.u32 %v4336, 7
  %v4338 = vsub.s32 %v4335, %v4337
  %v4339 = vrot.slane %v4317, %v4338
  %v4341 = vunpack.c.l.s4 1966171168
  %v4342 = vunpack.c.0.s8 %v4341
  %v4343 = vlaneseq
  %v4344 = vshrl.u32 %v4343, 7
  %v4345 = vsub.s32 %v4342, %v4344
  %v4346 = vrot.slane %v4318, %v4345
  %v4347 = vcombine.low %v4325, %v4332
  %v4348 = vcombine.low %v4339, %v4346
  %v4350 = vunpack.c.l.s4 1966171168
  %v4351 = vunpack.c.0.s8 %v4350
  %v4352 = vlaneseq
  %v4353 = vshrl.u32 %v4352, 7
  %v4354 = vsub.s32 %v4351, %v4353
  %v4355 = vrot.slane %v4347, %v4354
  %v4357 = vunpack.c.l.s4 1966171168
  %v4358 = vunpack.c.0.s8 %v4357
  %v4359 = vlaneseq
  %v4360 = vshrl.u32 %v4359, 7
  %v4361 = vsub.s32 %v4358, %v4360
  %v4362 = vrot.slane %v4348, %v4361
  %v4363 = vcombine.low %v4355, %v4362
  %v4364 = vcombine.low %v4291, %v4292
  %v4365 = vcombine.low %v4293, %v4294
  %v4366 = vcombine.low %v4295, %v4296
  %v4367 = vcombine.low %v4297, %v4298
  %v4369 = vunpack.c.l.s4 1966171168
  %v4370 = vunpack.c.0.s8 %v4369
  %v4371 = vlaneseq
  %v4372 = vshrl.u32 %v4371, 7
  %v4373 = vsub.s32 %v4370, %v4372
  %v4374 = vrot.slane %v4364, %v4373
  %v4376 = vunpack.c.l.s4 1966171168
  %v4377 = vunpack.c.0.s8 %v4376
  %v4378 = vlaneseq
  %v4379 = vshrl.u32 %v4378, 7
  %v4380 = vsub.s32 %v4377, %v4379
  %v4381 = vrot.slane %v4365, %v4380
  %v4383 = vunpack.c.l.s4 1966171168
  %v4384 = vunpack.c.0.s8 %v4383
  %v4385 = vlaneseq
  %v4386 = vshrl.u32 %v4385, 7
  %v4387 = vsub.s32 %v4384, %v4386
  %v4388 = vrot.slane %v4366, %v4387
  %v4390 = vunpack.c.l.s4 1966171168
  %v4391 = vunpack.c.0.s8 %v4390
  %v4392 = vlaneseq
  %v4393 = vshrl.u32 %v4392, 7
  %v4394 = vsub.s32 %v4391, %v4393
  %v4395 = vrot.slane %v4367, %v4394
  %v4396 = vcombine.low %v4374, %v4381
  %v4397 = vcombine.low %v4388, %v4395
  %v4399 = vunpack.c.l.s4 1966171168
  %v4400 = vunpack.c.0.s8 %v4399
  %v4401 = vlaneseq
  %v4402 = vshrl.u32 %v4401, 7
  %v4403 = vsub.s32 %v4400, %v4402
  %v4404 = vrot.slane %v4396, %v4403
  %v4406 = vunpack.c.l.s4 1966171168
  %v4407 = vunpack.c.0.s8 %v4406
  %v4408 = vlaneseq
  %v4409 = vshrl.u32 %v4408, 7
  %v4410 = vsub.s32 %v4407, %v4409
  %v4411 = vrot.slane %v4397, %v4410
  %v4412 = vcombine.low %v4404, %v4411
  %4415 = vst [vmem:[%s5] sm:$0xff] %v4363
  %4416 = vst [vmem:[%s5 + $0x8] sm:$0xff] %v4412
  // Predicated region
  $region22: #{kernelnet_forward.1} parent=0 // pred_check
    _
  $region23: #{kernelnet_forward.1} parent=0 // pred_check_branch
    %4418 = sbr.rel (0) target = $region25
  $region24: #{kernelnet_forward.1} parent=0 // pred_region
    _
  $region25: #{kernelnet_forward.1} parent=0 // pred_fallthru
    _
  // Predicated region
  $region26: #{kernelnet_forward.1} parent=0 // pred_check
    _
  $region27: #{kernelnet_forward.1} parent=0 // pred_check_branch
    %4420 = sbr.rel (0) target = $region29
  $region28: #{kernelnet_forward.1} parent=0 // pred_region
    _
  $region29: #{kernelnet_forward.1} parent=0 // pred_fallthru
    _

</llo_original>
